<compile_context>
chip_gen: v6e
topology: v6e:2x2x1
jax: 0.10.0
libtpu: 0.0.40
codegen_flags: <defaults>
</compile_context>

<pallas_src>
import functools
import math

import jax
import jax.numpy as jnp
from jax import lax
from jax.experimental import pallas as pl
from jax.experimental.pallas import tpu as pltpu


def basic_block_kernel(x_ref, w1_ref, s1_ref, b1_ref, w2_ref, s2_ref, b2_ref,
                       o_ref, patch_ref, midp_ref, *, TH, W, C):
    """One (batch, row-tile) step of the fused BasicBlock.

    x_ref    : (H+4, W+2, C)   compute dtype  padded input (whole image, resident)
    w*_ref   : (9*C, C)        compute dtype  im2col conv weights ((kh,kw,ci) x co)
    s*, b*   : (1, C)          f32            folded eval-mode BatchNorm scale/bias
    o_ref    : (TH, W, C)      f32            output row tile
    patch_ref: (Me, 9*C)       compute dtype  im2col patch scratch (reused by both convs)
    midp_ref : (TH+2, W+2, C)  compute dtype  W-padded conv1 rows (+1 conv2 halo row each side)
    """
    r = pl.program_id(1)
    last_r = pl.num_programs(1) - 1
    row0 = pl.multiple_of(r * TH, TH)          # first output row of this tile
    THe = TH + 2                               # mid rows incl. conv2 halo
    Me, M = THe * W, TH * W

    # ---- conv1: build the (Me, 9C) im2col patch directly in a VMEM scratch
    # (no lane-axis concatenate) -> ONE MXU matmul with K = 9*C.
    for kh in range(3):
        for kw in range(3):
            c0 = (kh * 3 + kw) * C
            tap = x_ref[pl.ds(row0 + kh, THe), pl.ds(kw, W), :]
            patch_ref[:, c0:c0 + C] = tap.reshape(Me, C)
    acc1 = jnp.dot(patch_ref[...], w1_ref[...],
                   preferred_element_type=jnp.float32)

    # bn1 (folded, eval mode) + relu, in f32
    mid = jnp.maximum(acc1 * s1_ref[...] + b1_ref[...], 0.0)          # (Me, C)

    # Stage the W-padded mid rows; zero ONLY the 1-px halo columns.
    zcol = jnp.zeros((THe, 1, C), midp_ref.dtype)
    midp_ref[:, 0:1, :] = zcol
    midp_ref[:, W + 1:W + 2, :] = zcol
    midp_ref[:, 1:W + 1, :] = mid.reshape(THe, W, C).astype(midp_ref.dtype)

    # conv2's zero padding of conv1's output: only the FIRST tile's top halo
    # row and the LAST tile's bottom halo row fall outside the image.  Gate the
    # zeroing with pl.when (interior tiles pay nothing) instead of a full-tile
    # iota + where.
    @pl.when(r == 0)
    def _():
        midp_ref[0:1, :, :] = jnp.zeros((1, W + 2, C), midp_ref.dtype)

    @pl.when(r == last_r)
    def _():
        midp_ref[THe - 1:THe, :, :] = jnp.zeros((1, W + 2, C), midp_ref.dtype)

    # ---- conv2: reuse the same patch scratch (first M rows) -> ONE MXU matmul
    for kh in range(3):
        for kw in range(3):
            c0 = (kh * 3 + kw) * C
            patch_ref[0:M, c0:c0 + C] = (
                midp_ref[kh:kh + TH, kw:kw + W, :].reshape(M, C))
    acc2 = jnp.dot(patch_ref[0:M, :], w2_ref[...],
                   preferred_element_type=jnp.float32)

    # ---- bn2 + residual (identity re-read from the resident input) + relu ----
    identity = x_ref[pl.ds(row0 + 2, TH), pl.ds(1, W), :].astype(jnp.float32)
    out = acc2 * s2_ref[...] + b2_ref[...] + identity.reshape(M, C)
    out = jnp.maximum(out, 0.0)
    o_ref[...] = out.reshape(TH, W, C).astype(o_ref.dtype)


def _fold_bn(gamma, beta, mean, var, eps):
    scale = (gamma / jnp.sqrt(var + eps)).astype(jnp.float32)
    bias = (beta - mean * scale).astype(jnp.float32)
    return scale.reshape(1, -1), bias.reshape(1, -1)


def _auto_tile_h(H):
    """Largest divisor of H in [8, 32]: big matmul streams per step, >= 2 row
    tiles (so v7x's 2 TensorCores both get 'parallel' work), bounded VMEM."""
    for th in range(min(32, H // 2), 7, -1):
        if H % th == 0:
            return th
    return H


def basic_block(x_nchw, params, *, compute_dtype=jnp.bfloat16, tile_h=None,
                eps=1e-5):
    """BasicBlock forward (stride=1, downsample=None). x_nchw: (N, C, H, W)."""
    N, C, H, W = x_nchw.shape
    if tile_h is None:
        tile_h = _auto_tile_h(H)
    if H < tile_h or H % tile_h != 0:
        tile_h = H                              # single row-tile fallback
    R = H // tile_h
    TH, THe = tile_h, tile_h + 2

    # NCHW -> NHWC in the MXU compute dtype (halves pad pass / input DMA /
    # resident VMEM vs f32); pad H by 2 (room to recompute conv2's halo rows of
    # the conv1 output inside each tile) and W by 1.  One fused XLA op.
    x = jnp.transpose(x_nchw, (0, 2, 3, 1)).astype(compute_dtype)
    xp = jnp.pad(x, ((0, 0), (2, 2), (1, 1), (0, 0)))

    def im2col_w(w_oihw):
        # OIHW -> (kh, kw, ci, co) -> (9*Cin, Cout); row = (kh*3 + kw)*Cin + ci,
        # matching the in-kernel patch column order.
        return jnp.transpose(w_oihw, (2, 3, 1, 0)).reshape(9 * C, C).astype(
            compute_dtype)

    w1 = im2col_w(params["w1"])
    w2 = im2col_w(params["w2"])
    s1, b1 = _fold_bn(params["g1"], params["be1"], params["m1"], params["v1"], eps)
    s2, b2 = _fold_bn(params["g2"], params["be2"], params["m2"], params["v2"], eps)

    # VMEM budget from the actual buffers (double-buffered I/O blocks + single-
    # buffered scratch) instead of a hard-coded limit: stays under v7x's
    # 64 MiB/TC ceiling with headroom, while v5e/v6e (128 MiB) are unaffected.
    isz = jnp.dtype(compute_dtype).itemsize
    x_blk = (H + 4) * (W + 2) * C * isz
    w_blk = 2 * 9 * C * C * isz + 4 * C * 4
    o_blk = TH * W * C * 4
    patch = THe * W * 9 * C * isz
    midp = THe * (W + 2) * C * isz
    need = 2 * (x_blk + w_blk + o_blk) + patch + midp
    vmem_limit = min(max(int(1.5 * need) + (2 << 20), 4 << 20), 40 << 20)
    vmem_limit = max(vmem_limit, need + (1 << 20))

    def _const(shape):
        return pl.BlockSpec(shape, lambda *_: (0,) * len(shape))

    kernel = functools.partial(basic_block_kernel, TH=TH, W=W, C=C)

    out = pl.pallas_call(
        kernel,
        out_shape=jax.ShapeDtypeStruct((N, H, W, C), jnp.float32),
        grid=(N, R),
        in_specs=[
            # padded input: one batch element, resident across its row tiles
            pl.BlockSpec((None, H + 4, W + 2, C), lambda n, r: (n, 0, 0, 0)),
            _const((9 * C, C)),     # w1 (im2col)
            _const((1, C)),         # bn1 scale
            _const((1, C)),         # bn1 bias
            _const((9 * C, C)),     # w2 (im2col)
            _const((1, C)),         # bn2 scale
            _const((1, C)),         # bn2 bias
        ],
        out_specs=pl.BlockSpec((None, TH, W, C), lambda n, r: (n, r, 0, 0)),
        scratch_shapes=[
            pltpu.VMEM((THe * W, 9 * C), compute_dtype),   # im2col patches
            pltpu.VMEM((THe, W + 2, C), compute_dtype),    # W-padded conv1 rows
        ],
        compiler_params=pltpu.CompilerParams(
            dimension_semantics=("parallel", "parallel"),
            vmem_limit_bytes=int(vmem_limit),
        ),
    )(xp, w1, s1, b1, w2, s2, b2)

    return jnp.transpose(out, (0, 3, 1, 2))     # back to NCHW


# ----------------------- pure-JAX reference (NCHW) -----------------------
def basic_block_ref(x, params, eps=1e-5):
    def conv(x, w):
        return lax.conv_general_dilated(
            x, w, window_strides=(1, 1), padding=((1, 1), (1, 1)),
            dimension_numbers=("NCHW", "OIHW", "NCHW"),
            precision=lax.Precision.HIGHEST)

    def bn(x, g, b, m, v):
        r = lambda a: a.reshape(1, -1, 1, 1)
        return (x - r(m)) / jnp.sqrt(r(v) + eps) * r(g) + r(b)

    out = jax.nn.relu(bn(conv(x, params["w1"]),
                         params["g1"], params["be1"], params["m1"], params["v1"]))
    out = bn(conv(out, params["w2"]),
             params["g2"], params["be2"], params["m2"], params["v2"])
    return jax.nn.relu(out + x)


if __name__ == "__main__":
    N, C, H, W = 2, 8, 16, 16   # inplanes == planes (required: downsample=None)

    key = jax.random.PRNGKey(0)
    kx, k1, k2 = jax.random.split(key, 3)

    x = jax.random.normal(kx, (N, C, H, W), jnp.float32)

    std = math.sqrt(2.0 / (C * 3 * 3))  # kaiming-style deterministic init
    params = {
        "w1": jax.random.normal(k1, (C, C, 3, 3), jnp.float32) * std,
        "w2": jax.random.normal(k2, (C, C, 3, 3), jnp.float32) * std,
        "g1": 1.0 + 0.10 * jnp.arange(C, dtype=jnp.float32),
        "be1": 0.05 * jnp.arange(C, dtype=jnp.float32),
        "m1": 0.02 * jnp.arange(C, dtype=jnp.float32) - 0.05,
        "v1": 1.0 + 0.03 * jnp.arange(C, dtype=jnp.float32),
        "g2": 1.0 - 0.05 * jnp.arange(C, dtype=jnp.float32),
        "be2": -0.03 * jnp.arange(C, dtype=jnp.float32),
        "m2": 0.01 * jnp.arange(C, dtype=jnp.float32),
        "v2": 1.0 + 0.05 * jnp.arange(C, dtype=jnp.float32),
    }

    ref = basic_block_ref(x, params)

    # Primary (fast) path: bf16 activations/weights on the MXU, f32
    # accumulation / BN / residual.  Tolerance is loosened vs. the f32
    # HIGHEST-precision reference because conv inputs and the identity are
    # rounded to bf16.
    out_bf16 = jax.block_until_ready(jax.jit(basic_block)(x, params))
    if not jnp.allclose(out_bf16, ref, atol=5e-2, rtol=5e-2):
        raise AssertionError("Pallas BasicBlock (bf16 MXU) does not match reference")

    # Strict path: f32 everywhere, tight tolerance (validates tiling/indexing,
    # halo handling and the im2col patch assembly).
    run_f32 = jax.jit(functools.partial(basic_block, compute_dtype=jnp.float32))
    out_f32 = jax.block_until_ready(run_f32(x, params))
    if not jnp.allclose(out_f32, ref, atol=1e-3, rtol=1e-3):
        raise AssertionError("Pallas BasicBlock (f32) does not match reference")

    print("KERNEL_OK")
</pallas_src>

<mosaic_0001>
module attributes {stable_mosaic.version = 11 : i64} {
  func.func @basic_block_kernel(%arg0: i32, %arg1: i32, %arg2: memref<1x20x18x8xbf16, #tpu.memory_space<vmem>>, %arg3: memref<72x8xbf16, #tpu.memory_space<vmem>>, %arg4: memref<1x8xf32, #tpu.memory_space<vmem>>, %arg5: memref<1x8xf32, #tpu.memory_space<vmem>>, %arg6: memref<72x8xbf16, #tpu.memory_space<vmem>>, %arg7: memref<1x8xf32, #tpu.memory_space<vmem>>, %arg8: memref<1x8xf32, #tpu.memory_space<vmem>>, %arg9: memref<1x8x16x8xf32, #tpu.memory_space<vmem>>, %arg10: memref<160x72xbf16, #tpu.memory_space<vmem>>, %arg11: memref<10x18x8xbf16, #tpu.memory_space<vmem>>) attributes {dimension_semantics = [#tpu.dimension_semantics<parallel>, #tpu.dimension_semantics<parallel>], iteration_bounds = array<i64: 2, 2>, scalar_prefetch = 0 : i64, scratch_operands = 2 : i64, tpu.core_type = #tpu.core_type<tc>, window_params = [{transform_indices = @transform_0, window_bounds = array<i64: 1, 20, 18, 8>}, {pipeline_mode = #tpu.pipeline_mode<synchronous>, transform_indices = @transform_1, window_bounds = array<i64: 72, 8>}, {pipeline_mode = #tpu.pipeline_mode<synchronous>, transform_indices = @transform_2, window_bounds = array<i64: 1, 8>}, {pipeline_mode = #tpu.pipeline_mode<synchronous>, transform_indices = @transform_3, window_bounds = array<i64: 1, 8>}, {pipeline_mode = #tpu.pipeline_mode<synchronous>, transform_indices = @transform_4, window_bounds = array<i64: 72, 8>}, {pipeline_mode = #tpu.pipeline_mode<synchronous>, transform_indices = @transform_5, window_bounds = array<i64: 1, 8>}, {pipeline_mode = #tpu.pipeline_mode<synchronous>, transform_indices = @transform_6, window_bounds = array<i64: 1, 8>}, {transform_indices = @transform_7, window_bounds = array<i64: 1, 8, 16, 8>}]} {
    %c8_i32 = arith.constant 8 : i32
    %0 = arith.muli %arg1, %c8_i32 : i32
    %1 = tpu.assume_multiple %0, 8 : i32
    %c0_i32 = arith.constant 0 : i32
    %2 = arith.addi %1, %c0_i32 : i32
    %c0 = arith.constant 0 : index
    %3 = arith.index_cast %2 : i32 to index
    %c0_0 = arith.constant 0 : index
    %c0_1 = arith.constant 0 : index
    %4 = vector.load %arg2[%c0, %3, %c0_0, %c0_1] : memref<1x20x18x8xbf16, #tpu.memory_space<vmem>>, vector<1x10x16x8xbf16>
    %5 = vector.shape_cast %4 : vector<1x10x16x8xbf16> to vector<10x16x8xbf16>
    %6 = vector.shape_cast %5 : vector<10x16x8xbf16> to vector<160x8xbf16>
    %c0_2 = arith.constant 0 : index
    %c0_3 = arith.constant 0 : index
    %7 = vector.load %arg10[%c0_2, %c0_3] : memref<160x72xbf16, #tpu.memory_space<vmem>>, vector<160x8xbf16>
    tpu.vector_store %arg10[%c0_2, %c0_3], %6 {strides = array<i32>} : memref<160x72xbf16, #tpu.memory_space<vmem>>, vector<160x8xbf16>,
    %c0_i32_4 = arith.constant 0 : i32
    %8 = arith.addi %1, %c0_i32_4 : i32
    %c0_5 = arith.constant 0 : index
    %9 = arith.index_cast %8 : i32 to index
    %c1 = arith.constant 1 : index
    %c0_6 = arith.constant 0 : index
    %10 = vector.load %arg2[%c0_5, %9, %c1, %c0_6] : memref<1x20x18x8xbf16, #tpu.memory_space<vmem>>, vector<1x10x16x8xbf16>
    %11 = vector.shape_cast %10 : vector<1x10x16x8xbf16> to vector<10x16x8xbf16>
    %12 = vector.shape_cast %11 : vector<10x16x8xbf16> to vector<160x8xbf16>
    %c0_7 = arith.constant 0 : index
    %c8 = arith.constant 8 : index
    %13 = vector.load %arg10[%c0_7, %c8] : memref<160x72xbf16, #tpu.memory_space<vmem>>, vector<160x8xbf16>
    tpu.vector_store %arg10[%c0_7, %c8], %12 {strides = array<i32>} : memref<160x72xbf16, #tpu.memory_space<vmem>>, vector<160x8xbf16>,
    %c0_i32_8 = arith.constant 0 : i32
    %14 = arith.addi %1, %c0_i32_8 : i32
    %c0_9 = arith.constant 0 : index
    %15 = arith.index_cast %14 : i32 to index
    %c2 = arith.constant 2 : index
    %c0_10 = arith.constant 0 : index
    %16 = vector.load %arg2[%c0_9, %15, %c2, %c0_10] : memref<1x20x18x8xbf16, #tpu.memory_space<vmem>>, vector<1x10x16x8xbf16>
    %17 = vector.shape_cast %16 : vector<1x10x16x8xbf16> to vector<10x16x8xbf16>
    %18 = vector.shape_cast %17 : vector<10x16x8xbf16> to vector<160x8xbf16>
    %c0_11 = arith.constant 0 : index
    %c16 = arith.constant 16 : index
    %19 = vector.load %arg10[%c0_11, %c16] : memref<160x72xbf16, #tpu.memory_space<vmem>>, vector<160x8xbf16>
    tpu.vector_store %arg10[%c0_11, %c16], %18 {strides = array<i32>} : memref<160x72xbf16, #tpu.memory_space<vmem>>, vector<160x8xbf16>,
    %c1_i32 = arith.constant 1 : i32
    %20 = arith.addi %1, %c1_i32 : i32
    %c0_12 = arith.constant 0 : index
    %21 = arith.index_cast %20 : i32 to index
    %c0_13 = arith.constant 0 : index
    %c0_14 = arith.constant 0 : index
    %22 = vector.load %arg2[%c0_12, %21, %c0_13, %c0_14] : memref<1x20x18x8xbf16, #tpu.memory_space<vmem>>, vector<1x10x16x8xbf16>
    %23 = vector.shape_cast %22 : vector<1x10x16x8xbf16> to vector<10x16x8xbf16>
    %24 = vector.shape_cast %23 : vector<10x16x8xbf16> to vector<160x8xbf16>
    %c0_15 = arith.constant 0 : index
    %c24 = arith.constant 24 : index
    %25 = vector.load %arg10[%c0_15, %c24] : memref<160x72xbf16, #tpu.memory_space<vmem>>, vector<160x8xbf16>
    tpu.vector_store %arg10[%c0_15, %c24], %24 {strides = array<i32>} : memref<160x72xbf16, #tpu.memory_space<vmem>>, vector<160x8xbf16>,
    %c1_i32_16 = arith.constant 1 : i32
    %26 = arith.addi %1, %c1_i32_16 : i32
    %c0_17 = arith.constant 0 : index
    %27 = arith.index_cast %26 : i32 to index
    %c1_18 = arith.constant 1 : index
    %c0_19 = arith.constant 0 : index
    %28 = vector.load %arg2[%c0_17, %27, %c1_18, %c0_19] : memref<1x20x18x8xbf16, #tpu.memory_space<vmem>>, vector<1x10x16x8xbf16>
    %29 = vector.shape_cast %28 : vector<1x10x16x8xbf16> to vector<10x16x8xbf16>
    %30 = vector.shape_cast %29 : vector<10x16x8xbf16> to vector<160x8xbf16>
    %c0_20 = arith.constant 0 : index
    %c32 = arith.constant 32 : index
    %31 = vector.load %arg10[%c0_20, %c32] : memref<160x72xbf16, #tpu.memory_space<vmem>>, vector<160x8xbf16>
    tpu.vector_store %arg10[%c0_20, %c32], %30 {strides = array<i32>} : memref<160x72xbf16, #tpu.memory_space<vmem>>, vector<160x8xbf16>,
    %c1_i32_21 = arith.constant 1 : i32
    %32 = arith.addi %1, %c1_i32_21 : i32
    %c0_22 = arith.constant 0 : index
    %33 = arith.index_cast %32 : i32 to index
    %c2_23 = arith.constant 2 : index
    %c0_24 = arith.constant 0 : index
    %34 = vector.load %arg2[%c0_22, %33, %c2_23, %c0_24] : memref<1x20x18x8xbf16, #tpu.memory_space<vmem>>, vector<1x10x16x8xbf16>
    %35 = vector.shape_cast %34 : vector<1x10x16x8xbf16> to vector<10x16x8xbf16>
    %36 = vector.shape_cast %35 : vector<10x16x8xbf16> to vector<160x8xbf16>
    %c0_25 = arith.constant 0 : index
    %c40 = arith.constant 40 : index
    %37 = vector.load %arg10[%c0_25, %c40] : memref<160x72xbf16, #tpu.memory_space<vmem>>, vector<160x8xbf16>
    tpu.vector_store %arg10[%c0_25, %c40], %36 {strides = array<i32>} : memref<160x72xbf16, #tpu.memory_space<vmem>>, vector<160x8xbf16>,
    %c2_i32 = arith.constant 2 : i32
    %38 = arith.addi %1, %c2_i32 : i32
    %c0_26 = arith.constant 0 : index
    %39 = arith.index_cast %38 : i32 to index
    %c0_27 = arith.constant 0 : index
    %c0_28 = arith.constant 0 : index
    %40 = vector.load %arg2[%c0_26, %39, %c0_27, %c0_28] : memref<1x20x18x8xbf16, #tpu.memory_space<vmem>>, vector<1x10x16x8xbf16>
    %41 = vector.shape_cast %40 : vector<1x10x16x8xbf16> to vector<10x16x8xbf16>
    %42 = vector.shape_cast %41 : vector<10x16x8xbf16> to vector<160x8xbf16>
    %c0_29 = arith.constant 0 : index
    %c48 = arith.constant 48 : index
    %43 = vector.load %arg10[%c0_29, %c48] : memref<160x72xbf16, #tpu.memory_space<vmem>>, vector<160x8xbf16>
    tpu.vector_store %arg10[%c0_29, %c48], %42 {strides = array<i32>} : memref<160x72xbf16, #tpu.memory_space<vmem>>, vector<160x8xbf16>,
    %c2_i32_30 = arith.constant 2 : i32
    %44 = arith.addi %1, %c2_i32_30 : i32
    %c0_31 = arith.constant 0 : index
    %45 = arith.index_cast %44 : i32 to index
    %c1_32 = arith.constant 1 : index
    %c0_33 = arith.constant 0 : index
    %46 = vector.load %arg2[%c0_31, %45, %c1_32, %c0_33] : memref<1x20x18x8xbf16, #tpu.memory_space<vmem>>, vector<1x10x16x8xbf16>
    %47 = vector.shape_cast %46 : vector<1x10x16x8xbf16> to vector<10x16x8xbf16>
    %48 = vector.shape_cast %47 : vector<10x16x8xbf16> to vector<160x8xbf16>
    %c0_34 = arith.constant 0 : index
    %c56 = arith.constant 56 : index
    %49 = vector.load %arg10[%c0_34, %c56] : memref<160x72xbf16, #tpu.memory_space<vmem>>, vector<160x8xbf16>
    tpu.vector_store %arg10[%c0_34, %c56], %48 {strides = array<i32>} : memref<160x72xbf16, #tpu.memory_space<vmem>>, vector<160x8xbf16>,
    %c2_i32_35 = arith.constant 2 : i32
    %50 = arith.addi %1, %c2_i32_35 : i32
    %c0_36 = arith.constant 0 : index
    %51 = arith.index_cast %50 : i32 to index
    %c2_37 = arith.constant 2 : index
    %c0_38 = arith.constant 0 : index
    %52 = vector.load %arg2[%c0_36, %51, %c2_37, %c0_38] : memref<1x20x18x8xbf16, #tpu.memory_space<vmem>>, vector<1x10x16x8xbf16>
    %53 = vector.shape_cast %52 : vector<1x10x16x8xbf16> to vector<10x16x8xbf16>
    %54 = vector.shape_cast %53 : vector<10x16x8xbf16> to vector<160x8xbf16>
    %c0_39 = arith.constant 0 : index
    %c64 = arith.constant 64 : index
    %55 = vector.load %arg10[%c0_39, %c64] : memref<160x72xbf16, #tpu.memory_space<vmem>>, vector<160x8xbf16>
    tpu.vector_store %arg10[%c0_39, %c64], %54 {strides = array<i32>} : memref<160x72xbf16, #tpu.memory_space<vmem>>, vector<160x8xbf16>,
    %c0_40 = arith.constant 0 : index
    %c0_41 = arith.constant 0 : index
    %56 = vector.load %arg10[%c0_40, %c0_41] : memref<160x72xbf16, #tpu.memory_space<vmem>>, vector<160x72xbf16>
    %c0_42 = arith.constant 0 : index
    %c0_43 = arith.constant 0 : index
    %57 = vector.load %arg3[%c0_42, %c0_43] : memref<72x8xbf16, #tpu.memory_space<vmem>>, vector<72x8xbf16>
    %cst = arith.constant dense<0.000000e+00> : vector<160x8xf32>
    %58 = tpu.matmul %56, %57, %cst {dimension_numbers = #tpu.dot_dimension_numbers<[1], [0], [0], [1], [0, 0, 1, 1], [], []>} : vector<160x72xbf16>, vector<72x8xbf16>, vector<160x8xf32> -> vector<160x8xf32>
    %c0_44 = arith.constant 0 : index
    %c0_45 = arith.constant 0 : index
    %59 = vector.load %arg4[%c0_44, %c0_45] : memref<1x8xf32, #tpu.memory_space<vmem>>, vector<1x8xf32>
    %60 = vector.broadcast %59 : vector<1x8xf32> to vector<160x8xf32>
    %61 = arith.mulf %58, %60 : vector<160x8xf32>
    %c0_46 = arith.constant 0 : index
    %c0_47 = arith.constant 0 : index
    %62 = vector.load %arg5[%c0_46, %c0_47] : memref<1x8xf32, #tpu.memory_space<vmem>>, vector<1x8xf32>
    %63 = vector.broadcast %62 : vector<1x8xf32> to vector<160x8xf32>
    %64 = arith.addf %61, %63 : vector<160x8xf32>
    %cst_48 = arith.constant 0.000000e+00 : f32
    %65 = vector.broadcast %cst_48 : f32 to vector<160x8xf32>
    %66 = arith.maximumf %64, %65 : vector<160x8xf32>
    %cst_49 = arith.constant 0.000000e+00 : bf16
    %67 = vector.broadcast %cst_49 : bf16 to vector<10x1x8xbf16>
    %c0_50 = arith.constant 0 : index
    %c0_51 = arith.constant 0 : index
    %c0_52 = arith.constant 0 : index
    %68 = vector.load %arg11[%c0_50, %c0_51, %c0_52] : memref<10x18x8xbf16, #tpu.memory_space<vmem>>, vector<10x1x8xbf16>
    tpu.vector_store %arg11[%c0_50, %c0_51, %c0_52], %67 {strides = array<i32>} : memref<10x18x8xbf16, #tpu.memory_space<vmem>>, vector<10x1x8xbf16>,
    %c0_53 = arith.constant 0 : index
    %c17 = arith.constant 17 : index
    %c0_54 = arith.constant 0 : index
    %69 = vector.load %arg11[%c0_53, %c17, %c0_54] : memref<10x18x8xbf16, #tpu.memory_space<vmem>>, vector<10x1x8xbf16>
    tpu.vector_store %arg11[%c0_53, %c17, %c0_54], %67 {strides = array<i32>} : memref<10x18x8xbf16, #tpu.memory_space<vmem>>, vector<10x1x8xbf16>,
    %70 = vector.shape_cast %66 : vector<160x8xf32> to vector<10x16x8xf32>
    %71 = arith.truncf %70 : vector<10x16x8xf32> to vector<10x16x8xbf16>
    %c0_55 = arith.constant 0 : index
    %c1_56 = arith.constant 1 : index
    %c0_57 = arith.constant 0 : index
    %72 = vector.load %arg11[%c0_55, %c1_56, %c0_57] : memref<10x18x8xbf16, #tpu.memory_space<vmem>>, vector<10x16x8xbf16>
    tpu.vector_store %arg11[%c0_55, %c1_56, %c0_57], %71 {strides = array<i32>} : memref<10x18x8xbf16, #tpu.memory_space<vmem>>, vector<10x16x8xbf16>,
    %c0_i32_58 = arith.constant 0 : i32
    %73 = arith.cmpi eq, %arg1, %c0_i32_58 : i32
    %74 = arith.extui %73 : i1 to i32
    %c0_i32_59 = arith.constant 0 : i32
    %75 = arith.cmpi ne, %74, %c0_i32_59 : i32
    scf.if %75 {
      %cst_125 = arith.constant 0.000000e+00 : bf16
      %128 = vector.broadcast %cst_125 : bf16 to vector<1x18x8xbf16>
      %c0_126 = arith.constant 0 : index
      %c0_127 = arith.constant 0 : index
      %c0_128 = arith.constant 0 : index
      %129 = vector.load %arg11[%c0_126, %c0_127, %c0_128] : memref<10x18x8xbf16, #tpu.memory_space<vmem>>, vector<1x18x8xbf16>
      tpu.vector_store %arg11[%c0_126, %c0_127, %c0_128], %128 {strides = array<i32>} : memref<10x18x8xbf16, #tpu.memory_space<vmem>>, vector<1x18x8xbf16>,
    } else {
    }
    %c1_i32_60 = arith.constant 1 : i32
    %76 = arith.cmpi eq, %arg1, %c1_i32_60 : i32
    %77 = arith.extui %76 : i1 to i32
    %c0_i32_61 = arith.constant 0 : i32
    %78 = arith.cmpi ne, %77, %c0_i32_61 : i32
    scf.if %78 {
      %cst_125 = arith.constant 0.000000e+00 : bf16
      %128 = vector.broadcast %cst_125 : bf16 to vector<1x18x8xbf16>
      %c9 = arith.constant 9 : index
      %c0_126 = arith.constant 0 : index
      %c0_127 = arith.constant 0 : index
      %129 = vector.load %arg11[%c9, %c0_126, %c0_127] : memref<10x18x8xbf16, #tpu.memory_space<vmem>>, vector<1x18x8xbf16>
      tpu.vector_store %arg11[%c9, %c0_126, %c0_127], %128 {strides = array<i32>} : memref<10x18x8xbf16, #tpu.memory_space<vmem>>, vector<1x18x8xbf16>,
    } else {
    }
    %c0_62 = arith.constant 0 : index
    %c0_63 = arith.constant 0 : index
    %c0_64 = arith.constant 0 : index
    %79 = vector.load %arg11[%c0_62, %c0_63, %c0_64] : memref<10x18x8xbf16, #tpu.memory_space<vmem>>, vector<8x16x8xbf16>
    %80 = vector.shape_cast %79 : vector<8x16x8xbf16> to vector<128x8xbf16>
    %c0_65 = arith.constant 0 : index
    %c0_66 = arith.constant 0 : index
    %81 = vector.load %arg10[%c0_65, %c0_66] : memref<160x72xbf16, #tpu.memory_space<vmem>>, vector<128x8xbf16>
    tpu.vector_store %arg10[%c0_65, %c0_66], %80 {strides = array<i32>} : memref<160x72xbf16, #tpu.memory_space<vmem>>, vector<128x8xbf16>,
    %c0_67 = arith.constant 0 : index
    %c1_68 = arith.constant 1 : index
    %c0_69 = arith.constant 0 : index
    %82 = vector.load %arg11[%c0_67, %c1_68, %c0_69] : memref<10x18x8xbf16, #tpu.memory_space<vmem>>, vector<8x16x8xbf16>
    %83 = vector.shape_cast %82 : vector<8x16x8xbf16> to vector<128x8xbf16>
    %c0_70 = arith.constant 0 : index
    %c8_71 = arith.constant 8 : index
    %84 = vector.load %arg10[%c0_70, %c8_71] : memref<160x72xbf16, #tpu.memory_space<vmem>>, vector<128x8xbf16>
    tpu.vector_store %arg10[%c0_70, %c8_71], %83 {strides = array<i32>} : memref<160x72xbf16, #tpu.memory_space<vmem>>, vector<128x8xbf16>,
    %c0_72 = arith.constant 0 : index
    %c2_73 = arith.constant 2 : index
    %c0_74 = arith.constant 0 : index
    %85 = vector.load %arg11[%c0_72, %c2_73, %c0_74] : memref<10x18x8xbf16, #tpu.memory_space<vmem>>, vector<8x16x8xbf16>
    %86 = vector.shape_cast %85 : vector<8x16x8xbf16> to vector<128x8xbf16>
    %c0_75 = arith.constant 0 : index
    %c16_76 = arith.constant 16 : index
    %87 = vector.load %arg10[%c0_75, %c16_76] : memref<160x72xbf16, #tpu.memory_space<vmem>>, vector<128x8xbf16>
    tpu.vector_store %arg10[%c0_75, %c16_76], %86 {strides = array<i32>} : memref<160x72xbf16, #tpu.memory_space<vmem>>, vector<128x8xbf16>,
    %c1_77 = arith.constant 1 : index
    %c0_78 = arith.constant 0 : index
    %c0_79 = arith.constant 0 : index
    %88 = vector.load %arg11[%c1_77, %c0_78, %c0_79] : memref<10x18x8xbf16, #tpu.memory_space<vmem>>, vector<8x16x8xbf16>
    %89 = vector.shape_cast %88 : vector<8x16x8xbf16> to vector<128x8xbf16>
    %c0_80 = arith.constant 0 : index
    %c24_81 = arith.constant 24 : index
    %90 = vector.load %arg10[%c0_80, %c24_81] : memref<160x72xbf16, #tpu.memory_space<vmem>>, vector<128x8xbf16>
    tpu.vector_store %arg10[%c0_80, %c24_81], %89 {strides = array<i32>} : memref<160x72xbf16, #tpu.memory_space<vmem>>, vector<128x8xbf16>,
    %c1_82 = arith.constant 1 : index
    %c1_83 = arith.constant 1 : index
    %c0_84 = arith.constant 0 : index
    %91 = vector.load %arg11[%c1_82, %c1_83, %c0_84] : memref<10x18x8xbf16, #tpu.memory_space<vmem>>, vector<8x16x8xbf16>
    %92 = vector.shape_cast %91 : vector<8x16x8xbf16> to vector<128x8xbf16>
    %c0_85 = arith.constant 0 : index
    %c32_86 = arith.constant 32 : index
    %93 = vector.load %arg10[%c0_85, %c32_86] : memref<160x72xbf16, #tpu.memory_space<vmem>>, vector<128x8xbf16>
    tpu.vector_store %arg10[%c0_85, %c32_86], %92 {strides = array<i32>} : memref<160x72xbf16, #tpu.memory_space<vmem>>, vector<128x8xbf16>,
    %c1_87 = arith.constant 1 : index
    %c2_88 = arith.constant 2 : index
    %c0_89 = arith.constant 0 : index
    %94 = vector.load %arg11[%c1_87, %c2_88, %c0_89] : memref<10x18x8xbf16, #tpu.memory_space<vmem>>, vector<8x16x8xbf16>
    %95 = vector.shape_cast %94 : vector<8x16x8xbf16> to vector<128x8xbf16>
    %c0_90 = arith.constant 0 : index
    %c40_91 = arith.constant 40 : index
    %96 = vector.load %arg10[%c0_90, %c40_91] : memref<160x72xbf16, #tpu.memory_space<vmem>>, vector<128x8xbf16>
    tpu.vector_store %arg10[%c0_90, %c40_91], %95 {strides = array<i32>} : memref<160x72xbf16, #tpu.memory_space<vmem>>, vector<128x8xbf16>,
    %c2_92 = arith.constant 2 : index
    %c0_93 = arith.constant 0 : index
    %c0_94 = arith.constant 0 : index
    %97 = vector.load %arg11[%c2_92, %c0_93, %c0_94] : memref<10x18x8xbf16, #tpu.memory_space<vmem>>, vector<8x16x8xbf16>
    %98 = vector.shape_cast %97 : vector<8x16x8xbf16> to vector<128x8xbf16>
    %c0_95 = arith.constant 0 : index
    %c48_96 = arith.constant 48 : index
    %99 = vector.load %arg10[%c0_95, %c48_96] : memref<160x72xbf16, #tpu.memory_space<vmem>>, vector<128x8xbf16>
    tpu.vector_store %arg10[%c0_95, %c48_96], %98 {strides = array<i32>} : memref<160x72xbf16, #tpu.memory_space<vmem>>, vector<128x8xbf16>,
    %c2_97 = arith.constant 2 : index
    %c1_98 = arith.constant 1 : index
    %c0_99 = arith.constant 0 : index
    %100 = vector.load %arg11[%c2_97, %c1_98, %c0_99] : memref<10x18x8xbf16, #tpu.memory_space<vmem>>, vector<8x16x8xbf16>
    %101 = vector.shape_cast %100 : vector<8x16x8xbf16> to vector<128x8xbf16>
    %c0_100 = arith.constant 0 : index
    %c56_101 = arith.constant 56 : index
    %102 = vector.load %arg10[%c0_100, %c56_101] : memref<160x72xbf16, #tpu.memory_space<vmem>>, vector<128x8xbf16>
    tpu.vector_store %arg10[%c0_100, %c56_101], %101 {strides = array<i32>} : memref<160x72xbf16, #tpu.memory_space<vmem>>, vector<128x8xbf16>,
    %c2_102 = arith.constant 2 : index
    %c2_103 = arith.constant 2 : index
    %c0_104 = arith.constant 0 : index
    %103 = vector.load %arg11[%c2_102, %c2_103, %c0_104] : memref<10x18x8xbf16, #tpu.memory_space<vmem>>, vector<8x16x8xbf16>
    %104 = vector.shape_cast %103 : vector<8x16x8xbf16> to vector<128x8xbf16>
    %c0_105 = arith.constant 0 : index
    %c64_106 = arith.constant 64 : index
    %105 = vector.load %arg10[%c0_105, %c64_106] : memref<160x72xbf16, #tpu.memory_space<vmem>>, vector<128x8xbf16>
    tpu.vector_store %arg10[%c0_105, %c64_106], %104 {strides = array<i32>} : memref<160x72xbf16, #tpu.memory_space<vmem>>, vector<128x8xbf16>,
    %c0_107 = arith.constant 0 : index
    %c0_108 = arith.constant 0 : index
    %106 = vector.load %arg10[%c0_107, %c0_108] : memref<160x72xbf16, #tpu.memory_space<vmem>>, vector<128x72xbf16>
    %c0_109 = arith.constant 0 : index
    %c0_110 = arith.constant 0 : index
    %107 = vector.load %arg6[%c0_109, %c0_110] : memref<72x8xbf16, #tpu.memory_space<vmem>>, vector<72x8xbf16>
    %cst_111 = arith.constant dense<0.000000e+00> : vector<128x8xf32>
    %108 = tpu.matmul %106, %107, %cst_111 {dimension_numbers = #tpu.dot_dimension_numbers<[1], [0], [0], [1], [0, 0, 1, 1], [], []>} : vector<128x72xbf16>, vector<72x8xbf16>, vector<128x8xf32> -> vector<128x8xf32>
    %c2_i32_112 = arith.constant 2 : i32
    %109 = arith.addi %1, %c2_i32_112 : i32
    %c0_113 = arith.constant 0 : index
    %110 = arith.index_cast %109 : i32 to index
    %c1_114 = arith.constant 1 : index
    %c0_115 = arith.constant 0 : index
    %111 = vector.load %arg2[%c0_113, %110, %c1_114, %c0_115] : memref<1x20x18x8xbf16, #tpu.memory_space<vmem>>, vector<1x8x16x8xbf16>
    %112 = vector.shape_cast %111 : vector<1x8x16x8xbf16> to vector<8x16x8xbf16>
    %113 = arith.extf %112 : vector<8x16x8xbf16> to vector<8x16x8xf32>
    %c0_116 = arith.constant 0 : index
    %c0_117 = arith.constant 0 : index
    %114 = vector.load %arg7[%c0_116, %c0_117] : memref<1x8xf32, #tpu.memory_space<vmem>>, vector<1x8xf32>
    %115 = vector.broadcast %114 : vector<1x8xf32> to vector<128x8xf32>
    %116 = arith.mulf %108, %115 : vector<128x8xf32>
    %c0_118 = arith.constant 0 : index
    %c0_119 = arith.constant 0 : index
    %117 = vector.load %arg8[%c0_118, %c0_119] : memref<1x8xf32, #tpu.memory_space<vmem>>, vector<1x8xf32>
    %118 = vector.broadcast %117 : vector<1x8xf32> to vector<128x8xf32>
    %119 = arith.addf %116, %118 : vector<128x8xf32>
    %120 = vector.shape_cast %113 : vector<8x16x8xf32> to vector<128x8xf32>
    %121 = arith.addf %119, %120 : vector<128x8xf32>
    %cst_120 = arith.constant 0.000000e+00 : f32
    %122 = vector.broadcast %cst_120 : f32 to vector<128x8xf32>
    %123 = arith.maximumf %121, %122 : vector<128x8xf32>
    %124 = vector.shape_cast %123 : vector<128x8xf32> to vector<8x16x8xf32>
    %c0_121 = arith.constant 0 : index
    %c0_122 = arith.constant 0 : index
    %c0_123 = arith.constant 0 : index
    %c0_124 = arith.constant 0 : index
    %125 = vector.load %arg9[%c0_121, %c0_122, %c0_123, %c0_124] : memref<1x8x16x8xf32, #tpu.memory_space<vmem>>, vector<1x8x16x8xf32>
    %126 = vector.shape_cast %125 : vector<1x8x16x8xf32> to vector<8x16x8xf32>
    %127 = vector.shape_cast %124 : vector<8x16x8xf32> to vector<1x8x16x8xf32>
    tpu.vector_store %arg9[%c0_121, %c0_122, %c0_123, %c0_124], %127 {strides = array<i32>} : memref<1x8x16x8xf32, #tpu.memory_space<vmem>>, vector<1x8x16x8xf32>,
    return
  }
  func.func @transform_0(%arg0: i32, %arg1: i32) -> (i32, i32, i32, i32) {
    %c0_i32 = arith.constant 0 : i32
    %c0_i32_0 = arith.constant 0 : i32
    %c0_i32_1 = arith.constant 0 : i32
    %c0_i32_2 = arith.constant 0 : i32
    return %arg0, %c0_i32, %c0_i32_0, %c0_i32_1 : i32, i32, i32, i32
  }
  func.func @transform_1(%arg0: i32, %arg1: i32) -> (i32, i32) {
    %c0_i32 = arith.constant 0 : i32
    %c0_i32_0 = arith.constant 0 : i32
    %c0_i32_1 = arith.constant 0 : i32
    return %c0_i32, %c0_i32_0 : i32, i32
  }
  func.func @transform_2(%arg0: i32, %arg1: i32) -> (i32, i32) {
    %c0_i32 = arith.constant 0 : i32
    %c0_i32_0 = arith.constant 0 : i32
    %c0_i32_1 = arith.constant 0 : i32
    return %c0_i32, %c0_i32_0 : i32, i32
  }
  func.func @transform_3(%arg0: i32, %arg1: i32) -> (i32, i32) {
    %c0_i32 = arith.constant 0 : i32
    %c0_i32_0 = arith.constant 0 : i32
    %c0_i32_1 = arith.constant 0 : i32
    return %c0_i32, %c0_i32_0 : i32, i32
  }
  func.func @transform_4(%arg0: i32, %arg1: i32) -> (i32, i32) {
    %c0_i32 = arith.constant 0 : i32
    %c0_i32_0 = arith.constant 0 : i32
    %c0_i32_1 = arith.constant 0 : i32
    return %c0_i32, %c0_i32_0 : i32, i32
  }
  func.func @transform_5(%arg0: i32, %arg1: i32) -> (i32, i32) {
    %c0_i32 = arith.constant 0 : i32
    %c0_i32_0 = arith.constant 0 : i32
    %c0_i32_1 = arith.constant 0 : i32
    return %c0_i32, %c0_i32_0 : i32, i32
  }
  func.func @transform_6(%arg0: i32, %arg1: i32) -> (i32, i32) {
    %c0_i32 = arith.constant 0 : i32
    %c0_i32_0 = arith.constant 0 : i32
    %c0_i32_1 = arith.constant 0 : i32
    return %c0_i32, %c0_i32_0 : i32, i32
  }
  func.func @transform_7(%arg0: i32, %arg1: i32) -> (i32, i32, i32, i32) {
    %c0_i32 = arith.constant 0 : i32
    %c0_i32_0 = arith.constant 0 : i32
    %c0_i32_1 = arith.constant 0 : i32
    return %arg0, %arg1, %c0_i32, %c0_i32_0 : i32, i32, i32, i32
  }
}

</mosaic_0001>

<llo_original>
// kernel: basic_block.1
$region0: #{basic_block.1}
  #allocation0 [shape = 'u32[]', space=smem, size = 0x4, offset = 0x4, fixed_abs, tag = 'smem constant byte address 0x4 - core index']
  #allocation1 [shape = 'u32[144,128]{1,0:T(1,128)}', space=vmem, size = 0x12000, scoped, tag = 'internal scratch']
  #allocation2 [shape = 'bf16[160,72]{1,0:T(8,128)(2,1)}', space=vmem, size = 0xa000, scoped, tag = 'scratch operand']
  #allocation3 [shape = 'bf16[10,18,8]{2,1,0:T(8,128)(2,1)}', space=vmem, size = 0xf000, scoped, tag = 'scratch operand']
  %s0 = inlined_call_operand.vmem [shape: bf16[2,20,18,8], index: 0, kind: input, shape index: {}]
  %s1 = inlined_call_operand.vmem [shape: bf16[72,8], index: 1, kind: input, shape index: {}]
  %s2 = inlined_call_operand.vmem [shape: f32[1,8], index: 2, kind: input, shape index: {}]
  %s3 = inlined_call_operand.vmem [shape: f32[1,8], index: 3, kind: input, shape index: {}]
  %s4 = inlined_call_operand.vmem [shape: bf16[72,8], index: 4, kind: input, shape index: {}]
  %s5 = inlined_call_operand.vmem [shape: f32[1,8], index: 5, kind: input, shape index: {}]
  %s6 = inlined_call_operand.vmem [shape: f32[1,8], index: 6, kind: input, shape index: {}]
  %s7 = inlined_call_operand.vmem [shape: f32[2,16,16,8], index: 7, kind: output, shape index: {}]
  %s8 = sld [smem:[#allocation0]]
  $region69: #{basic_block.1} parent=0
    _
  %s10 = ssub.s32 1, %s8
  %s11 = scalar_select 0, %s10, %s8
  loop: start=0, step=1, limit=6
  $region2: #{basic_block.1} parent=0 // loop_pre_header
    _
  $region3: #{basic_block.1} parent=0 // loop_header
    %s13 = sphi 0, %s17
    %p14 = scmp.ge.s32.totalorder %s13, 6
    %s20 = sphi 0, %s32
    %s21 = sphi 0, %s28
    %s22 = sphi 0, %s20
    %s23 = sphi 0, %s21
    %s24 = sphi 0, %s22
    %s25 = sphi 0, %s23
    %s35 = sphi 0, %s37
    %s38 = sphi 0, %s35
    %s39 = sphi 0, %s38
    %s55 = sphi 0, %s39
    %s59 = sphi 0, %s59
    %s61 = sphi 0, %s59
    %s62 = sphi 0, %s61
    %s76 = sphi 0, %s62
    %s80 = sphi 0, %s80
    %s82 = sphi 0, %s80
    %s83 = sphi 0, %s82
    %s97 = sphi 0, %s83
    %s101 = sphi 0, %s101
    %s103 = sphi 0, %s101
    %s104 = sphi 0, %s103
    %s118 = sphi 0, %s104
    %s122 = sphi 0, %s122
    %s124 = sphi 0, %s122
    %s125 = sphi 0, %s124
    %s139 = sphi 0, %s125
    %s143 = sphi 0, %s143
    %s145 = sphi 0, %s143
    %s146 = sphi 0, %s145
    %s160 = sphi 0, %s146
    %s164 = sphi 0, %s164
    %s166 = sphi 0, %s164
    %s167 = sphi 0, %s166
    %s181 = sphi 0, %s167
    %s189 = sphi 0, %s191
    %s192 = sphi 0, %s189
    %s193 = sphi 0, %s192
    %s209 = sphi 0, %s193
  $region4: #{basic_block.1} parent=0 // loop_header_branch
    %16 = sbr.rel (%p14) target = $region8
  $region5: #{basic_block.1} parent=0 // loop_body
    %s18 = ssub.s32 %s13, 1
    %s19 = ssub.s32 %s13, 2
    %s26 = sadd.s32 1, %s21
    %p27 = scmp.ge.s32.totalorder %s26, 2
    %s28 = scalar_select %p27, 0, %s26
    %s29 = sadd.s32 1, %s20
    %s30 = scalar_select %p27, %s29, %s20
    %p31 = scmp.ge.s32.totalorder %s30, 2
    %s32 = scalar_select %p31, 0, %s30
    %s33 = ssub.s32 %s20, %s32
    %p34 = scmp.eq.s32.totalorder %s33, 0
    %s36 = sadd.s32 %s35, 1
    %s37 = scalar_select %p34, %s35, %s36
    %p40 = pneg %p34
    %p41 = scmp.eq.s32.totalorder %s13, 3
    %p42 = por %p40, %p41
    %p43 = scmp.ne.s32.totalorder %s35, %s38
    %p44 = scmp.eq.s32.totalorder %s13, 0
    %p45 = por %p43, %p44
    %p46 = scmp.ne.s32.totalorder %s35, %s38
    %p47 = scmp.eq.s32.totalorder %s18, 3
    %p48 = por %p46, %p47
    %p49 = scmp.ne.s32.totalorder %s38, %s39
    %p50 = scmp.eq.s32.totalorder %s18, 0
    %p51 = por %p49, %p50
    %p52 = scmp.ne.s32.totalorder %s38, %s39
    %p53 = scmp.eq.s32.totalorder %s19, 3
    %p54 = por %p52, %p53
    %p56 = scmp.ne.s32.totalorder %s39, %s55
    %p57 = scmp.eq.s32.totalorder %s19, 0
    %p58 = por %p56, %p57
    %s60 = sadd.s32 %s59, 1
    %p63 = scmp.eq.s32.totalorder %s13, 3
    %p64 = scmp.ne.s32.totalorder %s59, %s61
    %p65 = scmp.eq.s32.totalorder %s13, 0
    %p66 = por %p64, %p65
    %p67 = scmp.ne.s32.totalorder %s59, %s61
    %p68 = scmp.eq.s32.totalorder %s18, 3
    %p69 = por %p67, %p68
    %p70 = scmp.ne.s32.totalorder %s61, %s62
    %p71 = scmp.eq.s32.totalorder %s18, 0
    %p72 = por %p70, %p71
    %p73 = scmp.ne.s32.totalorder %s61, %s62
    %p74 = scmp.eq.s32.totalorder %s19, 3
    %p75 = por %p73, %p74
    %p77 = scmp.ne.s32.totalorder %s62, %s76
    %p78 = scmp.eq.s32.totalorder %s19, 0
    %p79 = por %p77, %p78
    %s81 = sadd.s32 %s80, 1
    %p84 = scmp.eq.s32.totalorder %s13, 3
    %p85 = scmp.ne.s32.totalorder %s80, %s82
    %p86 = scmp.eq.s32.totalorder %s13, 0
    %p87 = por %p85, %p86
    %p88 = scmp.ne.s32.totalorder %s80, %s82
    %p89 = scmp.eq.s32.totalorder %s18, 3
    %p90 = por %p88, %p89
    %p91 = scmp.ne.s32.totalorder %s82, %s83
    %p92 = scmp.eq.s32.totalorder %s18, 0
    %p93 = por %p91, %p92
    %p94 = scmp.ne.s32.totalorder %s82, %s83
    %p95 = scmp.eq.s32.totalorder %s19, 3
    %p96 = por %p94, %p95
    %p98 = scmp.ne.s32.totalorder %s83, %s97
    %p99 = scmp.eq.s32.totalorder %s19, 0
    %p100 = por %p98, %p99
    %s102 = sadd.s32 %s101, 1
    %p105 = scmp.eq.s32.totalorder %s13, 3
    %p106 = scmp.ne.s32.totalorder %s101, %s103
    %p107 = scmp.eq.s32.totalorder %s13, 0
    %p108 = por %p106, %p107
    %p109 = scmp.ne.s32.totalorder %s101, %s103
    %p110 = scmp.eq.s32.totalorder %s18, 3
    %p111 = por %p109, %p110
    %p112 = scmp.ne.s32.totalorder %s103, %s104
    %p113 = scmp.eq.s32.totalorder %s18, 0
    %p114 = por %p112, %p113
    %p115 = scmp.ne.s32.totalorder %s103, %s104
    %p116 = scmp.eq.s32.totalorder %s19, 3
    %p117 = por %p115, %p116
    %p119 = scmp.ne.s32.totalorder %s104, %s118
    %p120 = scmp.eq.s32.totalorder %s19, 0
    %p121 = por %p119, %p120
    %s123 = sadd.s32 %s122, 1
    %p126 = scmp.eq.s32.totalorder %s13, 3
    %p127 = scmp.ne.s32.totalorder %s122, %s124
    %p128 = scmp.eq.s32.totalorder %s13, 0
    %p129 = por %p127, %p128
    %p130 = scmp.ne.s32.totalorder %s122, %s124
    %p131 = scmp.eq.s32.totalorder %s18, 3
    %p132 = por %p130, %p131
    %p133 = scmp.ne.s32.totalorder %s124, %s125
    %p134 = scmp.eq.s32.totalorder %s18, 0
    %p135 = por %p133, %p134
    %p136 = scmp.ne.s32.totalorder %s124, %s125
    %p137 = scmp.eq.s32.totalorder %s19, 3
    %p138 = por %p136, %p137
    %p140 = scmp.ne.s32.totalorder %s125, %s139
    %p141 = scmp.eq.s32.totalorder %s19, 0
    %p142 = por %p140, %p141
    %s144 = sadd.s32 %s143, 1
    %p147 = scmp.eq.s32.totalorder %s13, 3
    %p148 = scmp.ne.s32.totalorder %s143, %s145
    %p149 = scmp.eq.s32.totalorder %s13, 0
    %p150 = por %p148, %p149
    %p151 = scmp.ne.s32.totalorder %s143, %s145
    %p152 = scmp.eq.s32.totalorder %s18, 3
    %p153 = por %p151, %p152
    %p154 = scmp.ne.s32.totalorder %s145, %s146
    %p155 = scmp.eq.s32.totalorder %s18, 0
    %p156 = por %p154, %p155
    %p157 = scmp.ne.s32.totalorder %s145, %s146
    %p158 = scmp.eq.s32.totalorder %s19, 3
    %p159 = por %p157, %p158
    %p161 = scmp.ne.s32.totalorder %s146, %s160
    %p162 = scmp.eq.s32.totalorder %s19, 0
    %p163 = por %p161, %p162
    %s165 = sadd.s32 %s164, 1
    %p168 = scmp.eq.s32.totalorder %s13, 3
    %p169 = scmp.ne.s32.totalorder %s164, %s166
    %p170 = scmp.eq.s32.totalorder %s13, 0
    %p171 = por %p169, %p170
    %p172 = scmp.ne.s32.totalorder %s164, %s166
    %p173 = scmp.eq.s32.totalorder %s18, 3
    %p174 = por %p172, %p173
    %p175 = scmp.ne.s32.totalorder %s166, %s167
    %p176 = scmp.eq.s32.totalorder %s18, 0
    %p177 = por %p175, %p176
    %p178 = scmp.ne.s32.totalorder %s166, %s167
    %p179 = scmp.eq.s32.totalorder %s19, 3
    %p180 = por %p178, %p179
    %p182 = scmp.ne.s32.totalorder %s167, %s181
    %p183 = scmp.eq.s32.totalorder %s19, 0
    %p184 = por %p182, %p183
    %s185 = ssub.s32 %s20, %s32
    %s186 = ssub.s32 %s21, %s28
    %s187 = sor.u32 %s185, %s186
    %p188 = scmp.eq.s32.totalorder %s187, 0
    %s190 = sadd.s32 %s189, 1
    %s191 = scalar_select %p188, %s189, %s190
    %p194 = pneg %p188
    %p195 = scmp.eq.s32.totalorder %s13, 3
    %p196 = por %p194, %p195
    %p197 = scmp.ne.s32.totalorder %s189, %s192
    %p198 = scmp.eq.s32.totalorder %s13, 0
    %p199 = por %p197, %p198
    %p200 = scmp.ne.s32.totalorder %s189, %s192
    %p201 = scmp.eq.s32.totalorder %s18, 3
    %p202 = por %p200, %p201
    %p203 = scmp.ne.s32.totalorder %s192, %s193
    %p204 = scmp.eq.s32.totalorder %s18, 0
    %p205 = por %p203, %p204
    %p206 = scmp.ne.s32.totalorder %s192, %s193
    %p207 = scmp.eq.s32.totalorder %s19, 3
    %p208 = por %p206, %p207
    %p210 = scmp.ne.s32.totalorder %s193, %s209
    %p211 = scmp.eq.s32.totalorder %s19, 0
    %p212 = por %p210, %p211
    %p213 = scmp.le.s32.totalorder 1, %s13
    %p214 = scmp.lt.s32.totalorder %s13, 5
    %p215 = pnand %p213, %p214
    %p216 = pneg %p215
    // Predicated region
    $region9: #{basic_block.1} parent=5 // pred_check
      _
    $region10: #{basic_block.1} parent=5 // pred_check_branch
      %218 = sbr.rel (%p215) target = $region12
    $region11: #{basic_block.1} parent=5 // pred_region
      %s219 = ssub.s32 %s13, 1
      // Predicated region
      $region13: #{basic_block.1} parent=11 // pred_check
        %p220 = pneg %p72
      $region14: #{basic_block.1} parent=11 // pred_check_branch
        %222 = sbr.rel (%p220) target = $region16
      $region15: #{basic_block.1} parent=11 // pred_region
        _
      $region16: #{basic_block.1} parent=11 // pred_fallthru
        _
      // Predicated region
      $region17: #{basic_block.1} parent=11 // pred_check
        %p223 = pneg %p93
      $region18: #{basic_block.1} parent=11 // pred_check_branch
        %225 = sbr.rel (%p223) target = $region20
      $region19: #{basic_block.1} parent=11 // pred_region
        _
      $region20: #{basic_block.1} parent=11 // pred_fallthru
        _
      // Predicated region
      $region21: #{basic_block.1} parent=11 // pred_check
        %p226 = pneg %p114
      $region22: #{basic_block.1} parent=11 // pred_check_branch
        %228 = sbr.rel (%p226) target = $region24
      $region23: #{basic_block.1} parent=11 // pred_region
        _
      $region24: #{basic_block.1} parent=11 // pred_fallthru
        _
      // Predicated region
      $region25: #{basic_block.1} parent=11 // pred_check
        %p229 = pneg %p135
      $region26: #{basic_block.1} parent=11 // pred_check_branch
        %231 = sbr.rel (%p229) target = $region28
      $region27: #{basic_block.1} parent=11 // pred_region
        _
      $region28: #{basic_block.1} parent=11 // pred_fallthru
        _
      // Predicated region
      $region29: #{basic_block.1} parent=11 // pred_check
        %p232 = pneg %p156
      $region30: #{basic_block.1} parent=11 // pred_check_branch
        %234 = sbr.rel (%p232) target = $region32
      $region31: #{basic_block.1} parent=11 // pred_region
        _
      $region32: #{basic_block.1} parent=11 // pred_fallthru
        _
      // Predicated region
      $region33: #{basic_block.1} parent=11 // pred_check
        %p235 = pneg %p177
      $region34: #{basic_block.1} parent=11 // pred_check_branch
        %237 = sbr.rel (%p235) target = $region36
      $region35: #{basic_block.1} parent=11 // pred_region
        _
      $region36: #{basic_block.1} parent=11 // pred_fallthru
        _
    $region12: #{basic_block.1} parent=5 // pred_fallthru
      _
    %p238 = scmp.lt.s32.totalorder %s13, 4
    // Predicated region
    $region37: #{basic_block.1} parent=5 // pred_check
      %p239 = pneg %p238
    $region38: #{basic_block.1} parent=5 // pred_check_branch
      %241 = sbr.rel (%p239) target = $region40
    $region39: #{basic_block.1} parent=5 // pred_region
      // Predicated region
      $region41: #{basic_block.1} parent=39 // pred_check
        %p242 = pneg %p45
      $region42: #{basic_block.1} parent=39 // pred_check_branch
        %244 = sbr.rel (%p242) target = $region44
      $region43: #{basic_block.1} parent=39 // pred_region
        %p245 = scmp.lt.s32.totalorder %s20, 1
        %s246 = scalar_select %p245, %s20, 1
        %s247 = smul.addr %s246, 60
        %s248 = smul.addr %s247, 4
        %s249 = scalar_lea.vmem %s0, %s248
      $region44: #{basic_block.1} parent=39 // pred_fallthru
        _
    $region40: #{basic_block.1} parent=5 // pred_fallthru
      _
    %p250 = scmp.le.s32.totalorder 1, %s13
    %p251 = scmp.lt.s32.totalorder %s13, 5
    %p252 = pnand %p250, %p251
    %p253 = pneg %p252
    // Predicated region
    $region45: #{basic_block.1} parent=5 // pred_check
      _
    $region46: #{basic_block.1} parent=5 // pred_check_branch
      %255 = sbr.rel (%p252) target = $region48
    $region47: #{basic_block.1} parent=5 // pred_region
      %s256 = ssub.s32 %s13, 1
      %p257 = scmp.lt.s32.totalorder %s22, 1
      %s258 = scalar_select %p257, %s22, 1
      %s259 = smul.addr %s258, 60
      %s260 = smul.addr %s259, 4
      %s261 = scalar_lea.vmem %s0, %s260
      %p262 = pneg %p51
      %p263 = pneg %p48
      %p264 = pneg %p72
      %p265 = pneg %p69
      %p266 = pneg %p93
      %p267 = pneg %p90
      %p268 = pneg %p114
      %p269 = pneg %p111
      %p270 = pneg %p135
      %p271 = pneg %p132
      %p272 = pneg %p156
      %p273 = pneg %p153
      %p274 = pneg %p177
      %p275 = pneg %p174
      %p276 = pneg %p205
      %p277 = pneg %p202
      %s278 = smul.u32 8, %s23
      %p279 = scmp.lt.s32.totalorder %s22, 1
      %s280 = scalar_select %p279, %s22, 1
      %p281 = scmp.lt.s32.totalorder %s278, 15
      %s282 = scalar_select %p281, %s278, 15
      %s283 = smul.addr %s282, 2
      %s284 = smul.addr %s280, 32
      %s285 = sadd.s32 %s283, %s284
      %s286 = smul.addr %s285, 8
      %s287 = scalar_lea.vmem %s7, %s286
      %p288 = scmp.lt.s32.totalorder %s22, 1
      %s289 = scalar_select %p288, %s22, 1
      %s290 = smul.addr %s289, 60
      %s291 = smul.addr %s290, 4
      %s292 = scalar_lea.vmem %s0, %s291
      %s293 = smul.u32 8, %s23
      %p294 = scmp.lt.s32.totalorder %s22, 1
      %s295 = scalar_select %p294, %s22, 1
      %p296 = scmp.lt.s32.totalorder %s293, 15
      %s297 = scalar_select %p296, %s293, 15
      %s298 = smul.addr %s297, 2
      %s299 = smul.addr %s295, 32
      %s300 = sadd.s32 %s298, %s299
      %s301 = smul.addr %s300, 8
      %s302 = scalar_lea.vmem %s7, %s301
      %s303 = smul.u32 8, %s23
      %s305 = smul.u32 %s23, 8
      %s306 = smul.u32 %s305, 3
      %s307 = smul.addr %s306, 4
      %s308 = scalar_lea.vmem %s292, %s307
      %v309 = vld [vmem:[%s308] sm:$0xf]
      %v310 = vld [vmem:[%s308 + $0x4] sm:$0xf]
      %v311 = vld [vmem:[%s308 + $0xc] sm:$0xf]
      %v312 = vld [vmem:[%s308 + $0x10] sm:$0xf]
      %v313 = vld [vmem:[%s308 + $0x18] sm:$0xf]
      %v314 = vld [vmem:[%s308 + $0x1c] sm:$0xf]
      %v315 = vld [vmem:[%s308 + $0x24] sm:$0xf]
      %v316 = vld [vmem:[%s308 + $0x28] sm:$0xf]
      %v317 = vld [vmem:[%s308 + $0x30] sm:$0xf]
      %v318 = vld [vmem:[%s308 + $0x34] sm:$0xf]
      %v319 = vld [vmem:[%s308 + $0x3c] sm:$0xf]
      %v320 = vld [vmem:[%s308 + $0x40] sm:$0xf]
      %v321 = vld [vmem:[%s308 + $0x48] sm:$0xf]
      %v322 = vld [vmem:[%s308 + $0x4c] sm:$0xf]
      %v323 = vld [vmem:[%s308 + $0x54] sm:$0xf]
      %v324 = vld [vmem:[%s308 + $0x58] sm:$0xf]
      %v325 = vld [vmem:[%s308 + $0x60] sm:$0xf]
      %v326 = vld [vmem:[%s308 + $0x64] sm:$0xf]
      %v327 = vld [vmem:[%s308 + $0x6c] sm:$0xf]
      %v328 = vld [vmem:[%s308 + $0x70] sm:$0xf]
      %vm329 = vcmask 60416
      %330 = vst.msk [vmem:[#allocation2] sm:$0xf] %vm329, %v309
      %331 = vst.msk [vmem:[#allocation2 + $0x4] sm:$0xf] %vm329, %v310
      %332 = vst.msk [vmem:[#allocation2 + $0x8] sm:$0xf] %vm329, %v311
      %333 = vst.msk [vmem:[#allocation2 + $0xc] sm:$0xf] %vm329, %v312
      %334 = vst.msk [vmem:[#allocation2 + $0x10] sm:$0xf] %vm329, %v313
      %335 = vst.msk [vmem:[#allocation2 + $0x14] sm:$0xf] %vm329, %v314
      %336 = vst.msk [vmem:[#allocation2 + $0x18] sm:$0xf] %vm329, %v315
      %337 = vst.msk [vmem:[#allocation2 + $0x1c] sm:$0xf] %vm329, %v316
      %338 = vst.msk [vmem:[#allocation2 + $0x20] sm:$0xf] %vm329, %v317
      %339 = vst.msk [vmem:[#allocation2 + $0x24] sm:$0xf] %vm329, %v318
      %340 = vst.msk [vmem:[#allocation2 + $0x28] sm:$0xf] %vm329, %v319
      %341 = vst.msk [vmem:[#allocation2 + $0x2c] sm:$0xf] %vm329, %v320
      %342 = vst.msk [vmem:[#allocation2 + $0x30] sm:$0xf] %vm329, %v321
      %343 = vst.msk [vmem:[#allocation2 + $0x34] sm:$0xf] %vm329, %v322
      %344 = vst.msk [vmem:[#allocation2 + $0x38] sm:$0xf] %vm329, %v323
      %345 = vst.msk [vmem:[#allocation2 + $0x3c] sm:$0xf] %vm329, %v324
      %346 = vst.msk [vmem:[#allocation2 + $0x40] sm:$0xf] %vm329, %v325
      %347 = vst.msk [vmem:[#allocation2 + $0x44] sm:$0xf] %vm329, %v326
      %348 = vst.msk [vmem:[#allocation2 + $0x48] sm:$0xf] %vm329, %v327
      %349 = vst.msk [vmem:[#allocation2 + $0x4c] sm:$0xf] %vm329, %v328
      %v350 = vld [vmem:[%s308] sm:$0xf]
      %v351 = vld [vmem:[%s308 + $0x4] sm:$0xf]
      %v352 = vld [vmem:[%s308 + $0x8] sm:$0x1]
      %v353 = vld [vmem:[%s308 + $0xc] sm:$0xf]
      %v354 = vld [vmem:[%s308 + $0x10] sm:$0xf]
      %v355 = vld [vmem:[%s308 + $0x14] sm:$0x1]
      %v356 = vld [vmem:[%s308 + $0x18] sm:$0xf]
      %v357 = vld [vmem:[%s308 + $0x1c] sm:$0xf]
      %v358 = vld [vmem:[%s308 + $0x20] sm:$0x1]
      %v359 = vld [vmem:[%s308 + $0x24] sm:$0xf]
      %v360 = vld [vmem:[%s308 + $0x28] sm:$0xf]
      %v361 = vld [vmem:[%s308 + $0x2c] sm:$0x1]
      %v362 = vld [vmem:[%s308 + $0x30] sm:$0xf]
      %v363 = vld [vmem:[%s308 + $0x34] sm:$0xf]
      %v364 = vld [vmem:[%s308 + $0x38] sm:$0x1]
      %v365 = vld [vmem:[%s308 + $0x3c] sm:$0xf]
      %v366 = vld [vmem:[%s308 + $0x40] sm:$0xf]
      %v367 = vld [vmem:[%s308 + $0x44] sm:$0x1]
      %v368 = vld [vmem:[%s308 + $0x48] sm:$0xf]
      %v369 = vld [vmem:[%s308 + $0x4c] sm:$0xf]
      %v370 = vld [vmem:[%s308 + $0x50] sm:$0x1]
      %v371 = vld [vmem:[%s308 + $0x54] sm:$0xf]
      %v372 = vld [vmem:[%s308 + $0x58] sm:$0xf]
      %v373 = vld [vmem:[%s308 + $0x5c] sm:$0x1]
      %v374 = vld [vmem:[%s308 + $0x60] sm:$0xf]
      %v375 = vld [vmem:[%s308 + $0x64] sm:$0xf]
      %v376 = vld [vmem:[%s308 + $0x68] sm:$0x1]
      %v377 = vld [vmem:[%s308 + $0x6c] sm:$0xf]
      %v378 = vld [vmem:[%s308 + $0x70] sm:$0xf]
      %v379 = vld [vmem:[%s308 + $0x74] sm:$0x1]
      %vm380 = vsmask.f32 3328
      %vm381 = vsmask.f32 7440
      %vm382 = vmor %vm380, %vm381
      %v384 = vshrl.u32 %v350, 16
      %v386 = vrot.slane %v384, 4
      %v387 = vshll.u32 %v350, 16
      %v389 = vrot.slane %v387, 5
      %v390 = vor.u32 %v386, %v389
      %v391 = vrot.slane %v390, 4
      %v393 = vshll.u32 %v351, 16
      %v395 = vrot.slane %v393, 5
      %v396 = vsel %vm382, %v391, %v395
      %v397 = vshrl.u32 %v351, 16
      %v399 = vrot.slane %v397, 4
      %v400 = vor.u32 %v399, %v395
      %v401 = vrot.slane %v400, 4
      %v403 = vshll.u32 %v352, 16
      %v405 = vrot.slane %v403, 5
      %v406 = vsel %vm382, %v401, %v405
      %v408 = vshrl.u32 %v353, 16
      %v410 = vrot.slane %v408, 4
      %v411 = vshll.u32 %v353, 16
      %v413 = vrot.slane %v411, 5
      %v414 = vor.u32 %v410, %v413
      %v415 = vrot.slane %v414, 4
      %v417 = vshll.u32 %v354, 16
      %v419 = vrot.slane %v417, 5
      %v420 = vsel %vm382, %v415, %v419
      %v421 = vshrl.u32 %v354, 16
      %v423 = vrot.slane %v421, 4
      %v424 = vor.u32 %v423, %v419
      %v425 = vrot.slane %v424, 4
      %v427 = vshll.u32 %v355, 16
      %v429 = vrot.slane %v427, 5
      %v430 = vsel %vm382, %v425, %v429
      %v432 = vshrl.u32 %v356, 16
      %v434 = vrot.slane %v432, 4
      %v435 = vshll.u32 %v356, 16
      %v437 = vrot.slane %v435, 5
      %v438 = vor.u32 %v434, %v437
      %v439 = vrot.slane %v438, 4
      %v441 = vshll.u32 %v357, 16
      %v443 = vrot.slane %v441, 5
      %v444 = vsel %vm382, %v439, %v443
      %v445 = vshrl.u32 %v357, 16
      %v447 = vrot.slane %v445, 4
      %v448 = vor.u32 %v447, %v443
      %v449 = vrot.slane %v448, 4
      %v451 = vshll.u32 %v358, 16
      %v453 = vrot.slane %v451, 5
      %v454 = vsel %vm382, %v449, %v453
      %v456 = vshrl.u32 %v359, 16
      %v458 = vrot.slane %v456, 4
      %v459 = vshll.u32 %v359, 16
      %v461 = vrot.slane %v459, 5
      %v462 = vor.u32 %v458, %v461
      %v463 = vrot.slane %v462, 4
      %v465 = vshll.u32 %v360, 16
      %v467 = vrot.slane %v465, 5
      %v468 = vsel %vm382, %v463, %v467
      %v469 = vshrl.u32 %v360, 16
      %v471 = vrot.slane %v469, 4
      %v472 = vor.u32 %v471, %v467
      %v473 = vrot.slane %v472, 4
      %v475 = vshll.u32 %v361, 16
      %v477 = vrot.slane %v475, 5
      %v478 = vsel %vm382, %v473, %v477
      %v480 = vshrl.u32 %v362, 16
      %v482 = vrot.slane %v480, 4
      %v483 = vshll.u32 %v362, 16
      %v485 = vrot.slane %v483, 5
      %v486 = vor.u32 %v482, %v485
      %v487 = vrot.slane %v486, 4
      %v489 = vshll.u32 %v363, 16
      %v491 = vrot.slane %v489, 5
      %v492 = vsel %vm382, %v487, %v491
      %v493 = vshrl.u32 %v363, 16
      %v495 = vrot.slane %v493, 4
      %v496 = vor.u32 %v495, %v491
      %v497 = vrot.slane %v496, 4
      %v499 = vshll.u32 %v364, 16
      %v501 = vrot.slane %v499, 5
      %v502 = vsel %vm382, %v497, %v501
      %v504 = vshrl.u32 %v365, 16
      %v506 = vrot.slane %v504, 4
      %v507 = vshll.u32 %v365, 16
      %v509 = vrot.slane %v507, 5
      %v510 = vor.u32 %v506, %v509
      %v511 = vrot.slane %v510, 4
      %v513 = vshll.u32 %v366, 16
      %v515 = vrot.slane %v513, 5
      %v516 = vsel %vm382, %v511, %v515
      %v517 = vshrl.u32 %v366, 16
      %v519 = vrot.slane %v517, 4
      %v520 = vor.u32 %v519, %v515
      %v521 = vrot.slane %v520, 4
      %v523 = vshll.u32 %v367, 16
      %v525 = vrot.slane %v523, 5
      %v526 = vsel %vm382, %v521, %v525
      %v528 = vshrl.u32 %v368, 16
      %v530 = vrot.slane %v528, 4
      %v531 = vshll.u32 %v368, 16
      %v533 = vrot.slane %v531, 5
      %v534 = vor.u32 %v530, %v533
      %v535 = vrot.slane %v534, 4
      %v537 = vshll.u32 %v369, 16
      %v539 = vrot.slane %v537, 5
      %v540 = vsel %vm382, %v535, %v539
      %v541 = vshrl.u32 %v369, 16
      %v543 = vrot.slane %v541, 4
      %v544 = vor.u32 %v543, %v539
      %v545 = vrot.slane %v544, 4
      %v547 = vshll.u32 %v370, 16
      %v549 = vrot.slane %v547, 5
      %v550 = vsel %vm382, %v545, %v549
      %v552 = vshrl.u32 %v371, 16
      %v554 = vrot.slane %v552, 4
      %v555 = vshll.u32 %v371, 16
      %v557 = vrot.slane %v555, 5
      %v558 = vor.u32 %v554, %v557
      %v559 = vrot.slane %v558, 4
      %v561 = vshll.u32 %v372, 16
      %v563 = vrot.slane %v561, 5
      %v564 = vsel %vm382, %v559, %v563
      %v565 = vshrl.u32 %v372, 16
      %v567 = vrot.slane %v565, 4
      %v568 = vor.u32 %v567, %v563
      %v569 = vrot.slane %v568, 4
      %v571 = vshll.u32 %v373, 16
      %v573 = vrot.slane %v571, 5
      %v574 = vsel %vm382, %v569, %v573
      %v576 = vshrl.u32 %v374, 16
      %v578 = vrot.slane %v576, 4
      %v579 = vshll.u32 %v374, 16
      %v581 = vrot.slane %v579, 5
      %v582 = vor.u32 %v578, %v581
      %v583 = vrot.slane %v582, 4
      %v585 = vshll.u32 %v375, 16
      %v587 = vrot.slane %v585, 5
      %v588 = vsel %vm382, %v583, %v587
      %v589 = vshrl.u32 %v375, 16
      %v591 = vrot.slane %v589, 4
      %v592 = vor.u32 %v591, %v587
      %v593 = vrot.slane %v592, 4
      %v595 = vshll.u32 %v376, 16
      %v597 = vrot.slane %v595, 5
      %v598 = vsel %vm382, %v593, %v597
      %v600 = vshrl.u32 %v377, 16
      %v602 = vrot.slane %v600, 4
      %v603 = vshll.u32 %v377, 16
      %v605 = vrot.slane %v603, 5
      %v606 = vor.u32 %v602, %v605
      %v607 = vrot.slane %v606, 4
      %v609 = vshll.u32 %v378, 16
      %v611 = vrot.slane %v609, 5
      %v612 = vsel %vm382, %v607, %v611
      %v613 = vshrl.u32 %v378, 16
      %v615 = vrot.slane %v613, 4
      %v616 = vor.u32 %v615, %v611
      %v617 = vrot.slane %v616, 4
      %v619 = vshll.u32 %v379, 16
      %v621 = vrot.slane %v619, 5
      %v622 = vsel %vm382, %v617, %v621
      %623 = vrot.lane.b32.xlu0 %v396, 8
      %v624 = vpop.permute.xlu0 %623
      %625 = vrot.lane.b32.xlu0 %v406, 8
      %v626 = vpop.permute.xlu0 %625
      %627 = vrot.lane.b32.xlu0 %v420, 8
      %v628 = vpop.permute.xlu0 %627
      %629 = vrot.lane.b32.xlu0 %v430, 8
      %v630 = vpop.permute.xlu0 %629
      %631 = vrot.lane.b32.xlu0 %v444, 8
      %v632 = vpop.permute.xlu0 %631
      %633 = vrot.lane.b32.xlu0 %v454, 8
      %v634 = vpop.permute.xlu0 %633
      %635 = vrot.lane.b32.xlu0 %v468, 8
      %v636 = vpop.permute.xlu0 %635
      %637 = vrot.lane.b32.xlu0 %v478, 8
      %v638 = vpop.permute.xlu0 %637
      %639 = vrot.lane.b32.xlu0 %v492, 8
      %v640 = vpop.permute.xlu0 %639
      %641 = vrot.lane.b32.xlu0 %v502, 8
      %v642 = vpop.permute.xlu0 %641
      %643 = vrot.lane.b32.xlu0 %v516, 8
      %v644 = vpop.permute.xlu0 %643
      %645 = vrot.lane.b32.xlu0 %v526, 8
      %v646 = vpop.permute.xlu0 %645
      %647 = vrot.lane.b32.xlu0 %v540, 8
      %v648 = vpop.permute.xlu0 %647
      %649 = vrot.lane.b32.xlu0 %v550, 8
      %v650 = vpop.permute.xlu0 %649
      %651 = vrot.lane.b32.xlu0 %v564, 8
      %v652 = vpop.permute.xlu0 %651
      %653 = vrot.lane.b32.xlu0 %v574, 8
      %v654 = vpop.permute.xlu0 %653
      %655 = vrot.lane.b32.xlu0 %v588, 8
      %v656 = vpop.permute.xlu0 %655
      %657 = vrot.lane.b32.xlu0 %v598, 8
      %v658 = vpop.permute.xlu0 %657
      %659 = vrot.lane.b32.xlu0 %v612, 8
      %v660 = vpop.permute.xlu0 %659
      %661 = vrot.lane.b32.xlu0 %v622, 8
      %v662 = vpop.permute.xlu0 %661
      %vm683 = vcmask 126016
      %684 = vst.msk [vmem:[#allocation2] sm:$0xf] %vm683, %v624
      %685 = vst.msk [vmem:[#allocation2 + $0x4] sm:$0xf] %vm683, %v626
      %686 = vst.msk [vmem:[#allocation2 + $0x8] sm:$0xf] %vm683, %v628
      %687 = vst.msk [vmem:[#allocation2 + $0xc] sm:$0xf] %vm683, %v630
      %688 = vst.msk [vmem:[#allocation2 + $0x10] sm:$0xf] %vm683, %v632
      %689 = vst.msk [vmem:[#allocation2 + $0x14] sm:$0xf] %vm683, %v634
      %690 = vst.msk [vmem:[#allocation2 + $0x18] sm:$0xf] %vm683, %v636
      %691 = vst.msk [vmem:[#allocation2 + $0x1c] sm:$0xf] %vm683, %v638
      %692 = vst.msk [vmem:[#allocation2 + $0x20] sm:$0xf] %vm683, %v640
      %693 = vst.msk [vmem:[#allocation2 + $0x24] sm:$0xf] %vm683, %v642
      %694 = vst.msk [vmem:[#allocation2 + $0x28] sm:$0xf] %vm683, %v644
      %695 = vst.msk [vmem:[#allocation2 + $0x2c] sm:$0xf] %vm683, %v646
      %696 = vst.msk [vmem:[#allocation2 + $0x30] sm:$0xf] %vm683, %v648
      %697 = vst.msk [vmem:[#allocation2 + $0x34] sm:$0xf] %vm683, %v650
      %698 = vst.msk [vmem:[#allocation2 + $0x38] sm:$0xf] %vm683, %v652
      %699 = vst.msk [vmem:[#allocation2 + $0x3c] sm:$0xf] %vm683, %v654
      %700 = vst.msk [vmem:[#allocation2 + $0x40] sm:$0xf] %vm683, %v656
      %701 = vst.msk [vmem:[#allocation2 + $0x44] sm:$0xf] %vm683, %v658
      %702 = vst.msk [vmem:[#allocation2 + $0x48] sm:$0xf] %vm683, %v660
      %703 = vst.msk [vmem:[#allocation2 + $0x4c] sm:$0xf] %vm683, %v662
      %v704 = vld [vmem:[%s308] sm:$0xe]
      %v705 = vld [vmem:[%s308 + $0x4] sm:$0xf]
      %v706 = vld [vmem:[%s308 + $0x8] sm:$0x1]
      %v707 = vld [vmem:[%s308 + $0xc] sm:$0xe]
      %v708 = vld [vmem:[%s308 + $0x10] sm:$0xf]
      %v709 = vld [vmem:[%s308 + $0x14] sm:$0x1]
      %v710 = vld [vmem:[%s308 + $0x18] sm:$0xe]
      %v711 = vld [vmem:[%s308 + $0x1c] sm:$0xf]
      %v712 = vld [vmem:[%s308 + $0x20] sm:$0x1]
      %v713 = vld [vmem:[%s308 + $0x24] sm:$0xe]
      %v714 = vld [vmem:[%s308 + $0x28] sm:$0xf]
      %v715 = vld [vmem:[%s308 + $0x2c] sm:$0x1]
      %v716 = vld [vmem:[%s308 + $0x30] sm:$0xe]
      %v717 = vld [vmem:[%s308 + $0x34] sm:$0xf]
      %v718 = vld [vmem:[%s308 + $0x38] sm:$0x1]
      %v719 = vld [vmem:[%s308 + $0x3c] sm:$0xe]
      %v720 = vld [vmem:[%s308 + $0x40] sm:$0xf]
      %v721 = vld [vmem:[%s308 + $0x44] sm:$0x1]
      %v722 = vld [vmem:[%s308 + $0x48] sm:$0xe]
      %v723 = vld [vmem:[%s308 + $0x4c] sm:$0xf]
      %v724 = vld [vmem:[%s308 + $0x50] sm:$0x1]
      %v725 = vld [vmem:[%s308 + $0x54] sm:$0xe]
      %v726 = vld [vmem:[%s308 + $0x58] sm:$0xf]
      %v727 = vld [vmem:[%s308 + $0x5c] sm:$0x1]
      %v728 = vld [vmem:[%s308 + $0x60] sm:$0xe]
      %v729 = vld [vmem:[%s308 + $0x64] sm:$0xf]
      %v730 = vld [vmem:[%s308 + $0x68] sm:$0x1]
      %v731 = vld [vmem:[%s308 + $0x6c] sm:$0xe]
      %v732 = vld [vmem:[%s308 + $0x70] sm:$0xf]
      %v733 = vld [vmem:[%s308 + $0x74] sm:$0x1]
      %vm764 = vcmask 1042432
      %vm765 = vcmask 1046532
      %vm766 = vmor %vm764, %vm765
      %v767 = vrot.slane %v704, 5
      %v768 = vrot.slane %v767, 4
      %v769 = vrot.slane %v705, 5
      %v770 = vsel %vm766, %v768, %v769
      %v771 = vrot.slane %v769, 4
      %v772 = vrot.slane %v706, 5
      %v773 = vsel %vm766, %v771, %v772
      %v774 = vrot.slane %v707, 5
      %v775 = vrot.slane %v774, 4
      %v776 = vrot.slane %v708, 5
      %v777 = vsel %vm766, %v775, %v776
      %v778 = vrot.slane %v776, 4
      %v779 = vrot.slane %v709, 5
      %v780 = vsel %vm766, %v778, %v779
      %v781 = vrot.slane %v710, 5
      %v782 = vrot.slane %v781, 4
      %v783 = vrot.slane %v711, 5
      %v784 = vsel %vm766, %v782, %v783
      %v785 = vrot.slane %v783, 4
      %v786 = vrot.slane %v712, 5
      %v787 = vsel %vm766, %v785, %v786
      %v788 = vrot.slane %v713, 5
      %v789 = vrot.slane %v788, 4
      %v790 = vrot.slane %v714, 5
      %v791 = vsel %vm766, %v789, %v790
      %v792 = vrot.slane %v790, 4
      %v793 = vrot.slane %v715, 5
      %v794 = vsel %vm766, %v792, %v793
      %v795 = vrot.slane %v716, 5
      %v796 = vrot.slane %v795, 4
      %v797 = vrot.slane %v717, 5
      %v798 = vsel %vm766, %v796, %v797
      %v799 = vrot.slane %v797, 4
      %v800 = vrot.slane %v718, 5
      %v801 = vsel %vm766, %v799, %v800
      %v802 = vrot.slane %v719, 5
      %v803 = vrot.slane %v802, 4
      %v804 = vrot.slane %v720, 5
      %v805 = vsel %vm766, %v803, %v804
      %v806 = vrot.slane %v804, 4
      %v807 = vrot.slane %v721, 5
      %v808 = vsel %vm766, %v806, %v807
      %v809 = vrot.slane %v722, 5
      %v810 = vrot.slane %v809, 4
      %v811 = vrot.slane %v723, 5
      %v812 = vsel %vm766, %v810, %v811
      %v813 = vrot.slane %v811, 4
      %v814 = vrot.slane %v724, 5
      %v815 = vsel %vm766, %v813, %v814
      %v816 = vrot.slane %v725, 5
      %v817 = vrot.slane %v816, 4
      %v818 = vrot.slane %v726, 5
      %v819 = vsel %vm766, %v817, %v818
      %v820 = vrot.slane %v818, 4
      %v821 = vrot.slane %v727, 5
      %v822 = vsel %vm766, %v820, %v821
      %v823 = vrot.slane %v728, 5
      %v824 = vrot.slane %v823, 4
      %v825 = vrot.slane %v729, 5
      %v826 = vsel %vm766, %v824, %v825
      %v827 = vrot.slane %v825, 4
      %v828 = vrot.slane %v730, 5
      %v829 = vsel %vm766, %v827, %v828
      %v830 = vrot.slane %v731, 5
      %v831 = vrot.slane %v830, 4
      %v832 = vrot.slane %v732, 5
      %v833 = vsel %vm766, %v831, %v832
      %v834 = vrot.slane %v832, 4
      %v835 = vrot.slane %v733, 5
      %v836 = vsel %vm766, %v834, %v835
      %837 = vrot.lane.b32.xlu0 %v770, 16
      %v838 = vpop.permute.xlu0 %837
      %839 = vrot.lane.b32.xlu0 %v773, 16
      %v840 = vpop.permute.xlu0 %839
      %841 = vrot.lane.b32.xlu0 %v777, 16
      %v842 = vpop.permute.xlu0 %841
      %843 = vrot.lane.b32.xlu0 %v780, 16
      %v844 = vpop.permute.xlu0 %843
      %845 = vrot.lane.b32.xlu0 %v784, 16
      %v846 = vpop.permute.xlu0 %845
      %847 = vrot.lane.b32.xlu0 %v787, 16
      %v848 = vpop.permute.xlu0 %847
      %849 = vrot.lane.b32.xlu0 %v791, 16
      %v850 = vpop.permute.xlu0 %849
      %851 = vrot.lane.b32.xlu0 %v794, 16
      %v852 = vpop.permute.xlu0 %851
      %853 = vrot.lane.b32.xlu0 %v798, 16
      %v854 = vpop.permute.xlu0 %853
      %855 = vrot.lane.b32.xlu0 %v801, 16
      %v856 = vpop.permute.xlu0 %855
      %857 = vrot.lane.b32.xlu0 %v805, 16
      %v858 = vpop.permute.xlu0 %857
      %859 = vrot.lane.b32.xlu0 %v808, 16
      %v860 = vpop.permute.xlu0 %859
      %861 = vrot.lane.b32.xlu0 %v812, 16
      %v862 = vpop.permute.xlu0 %861
      %863 = vrot.lane.b32.xlu0 %v815, 16
      %v864 = vpop.permute.xlu0 %863
      %865 = vrot.lane.b32.xlu0 %v819, 16
      %v866 = vpop.permute.xlu0 %865
      %867 = vrot.lane.b32.xlu0 %v822, 16
      %v868 = vpop.permute.xlu0 %867
      %869 = vrot.lane.b32.xlu0 %v826, 16
      %v870 = vpop.permute.xlu0 %869
      %871 = vrot.lane.b32.xlu0 %v829, 16
      %v872 = vpop.permute.xlu0 %871
      %873 = vrot.lane.b32.xlu0 %v833, 16
      %v874 = vpop.permute.xlu0 %873
      %875 = vrot.lane.b32.xlu0 %v836, 16
      %v876 = vpop.permute.xlu0 %875
      %vm897 = vcmask 191616
      %898 = vst.msk [vmem:[#allocation2] sm:$0xf] %vm897, %v838
      %899 = vst.msk [vmem:[#allocation2 + $0x4] sm:$0xf] %vm897, %v840
      %900 = vst.msk [vmem:[#allocation2 + $0x8] sm:$0xf] %vm897, %v842
      %901 = vst.msk [vmem:[#allocation2 + $0xc] sm:$0xf] %vm897, %v844
      %902 = vst.msk [vmem:[#allocation2 + $0x10] sm:$0xf] %vm897, %v846
      %903 = vst.msk [vmem:[#allocation2 + $0x14] sm:$0xf] %vm897, %v848
      %904 = vst.msk [vmem:[#allocation2 + $0x18] sm:$0xf] %vm897, %v850
      %905 = vst.msk [vmem:[#allocation2 + $0x1c] sm:$0xf] %vm897, %v852
      %906 = vst.msk [vmem:[#allocation2 + $0x20] sm:$0xf] %vm897, %v854
      %907 = vst.msk [vmem:[#allocation2 + $0x24] sm:$0xf] %vm897, %v856
      %908 = vst.msk [vmem:[#allocation2 + $0x28] sm:$0xf] %vm897, %v858
      %909 = vst.msk [vmem:[#allocation2 + $0x2c] sm:$0xf] %vm897, %v860
      %910 = vst.msk [vmem:[#allocation2 + $0x30] sm:$0xf] %vm897, %v862
      %911 = vst.msk [vmem:[#allocation2 + $0x34] sm:$0xf] %vm897, %v864
      %912 = vst.msk [vmem:[#allocation2 + $0x38] sm:$0xf] %vm897, %v866
      %913 = vst.msk [vmem:[#allocation2 + $0x3c] sm:$0xf] %vm897, %v868
      %914 = vst.msk [vmem:[#allocation2 + $0x40] sm:$0xf] %vm897, %v870
      %915 = vst.msk [vmem:[#allocation2 + $0x44] sm:$0xf] %vm897, %v872
      %916 = vst.msk [vmem:[#allocation2 + $0x48] sm:$0xf] %vm897, %v874
      %917 = vst.msk [vmem:[#allocation2 + $0x4c] sm:$0xf] %vm897, %v876
      %s918 = sadd.s32 %s305, 1
      %s919 = smul.u32 %s918, 3
      %s920 = smul.addr %s919, 4
      %s921 = scalar_lea.vmem %s292, %s920
      %v922 = vld [vmem:[%s921] sm:$0xf]
      %v923 = vld [vmem:[%s921 + $0x4] sm:$0xf]
      %v924 = vld [vmem:[%s921 + $0xc] sm:$0xf]
      %v925 = vld [vmem:[%s921 + $0x10] sm:$0xf]
      %v926 = vld [vmem:[%s921 + $0x18] sm:$0xf]
      %v927 = vld [vmem:[%s921 + $0x1c] sm:$0xf]
      %v928 = vld [vmem:[%s921 + $0x24] sm:$0xf]
      %v929 = vld [vmem:[%s921 + $0x28] sm:$0xf]
      %v930 = vld [vmem:[%s921 + $0x30] sm:$0xf]
      %v931 = vld [vmem:[%s921 + $0x34] sm:$0xf]
      %v932 = vld [vmem:[%s921 + $0x3c] sm:$0xf]
      %v933 = vld [vmem:[%s921 + $0x40] sm:$0xf]
      %v934 = vld [vmem:[%s921 + $0x48] sm:$0xf]
      %v935 = vld [vmem:[%s921 + $0x4c] sm:$0xf]
      %v936 = vld [vmem:[%s921 + $0x54] sm:$0xf]
      %v937 = vld [vmem:[%s921 + $0x58] sm:$0xf]
      %v938 = vld [vmem:[%s921 + $0x60] sm:$0xf]
      %v939 = vld [vmem:[%s921 + $0x64] sm:$0xf]
      %v940 = vld [vmem:[%s921 + $0x6c] sm:$0xf]
      %v941 = vld [vmem:[%s921 + $0x70] sm:$0xf]
      %962 = vrot.lane.b32.xlu0 %v922, 24
      %v963 = vpop.permute.xlu0 %962
      %964 = vrot.lane.b32.xlu0 %v923, 24
      %v965 = vpop.permute.xlu0 %964
      %966 = vrot.lane.b32.xlu0 %v924, 24
      %v967 = vpop.permute.xlu0 %966
      %968 = vrot.lane.b32.xlu0 %v925, 24
      %v969 = vpop.permute.xlu0 %968
      %970 = vrot.lane.b32.xlu0 %v926, 24
      %v971 = vpop.permute.xlu0 %970
      %972 = vrot.lane.b32.xlu0 %v927, 24
      %v973 = vpop.permute.xlu0 %972
      %974 = vrot.lane.b32.xlu0 %v928, 24
      %v975 = vpop.permute.xlu0 %974
      %976 = vrot.lane.b32.xlu0 %v929, 24
      %v977 = vpop.permute.xlu0 %976
      %978 = vrot.lane.b32.xlu0 %v930, 24
      %v979 = vpop.permute.xlu0 %978
      %980 = vrot.lane.b32.xlu0 %v931, 24
      %v981 = vpop.permute.xlu0 %980
      %982 = vrot.lane.b32.xlu0 %v932, 24
      %v983 = vpop.permute.xlu0 %982
      %984 = vrot.lane.b32.xlu0 %v933, 24
      %v985 = vpop.permute.xlu0 %984
      %986 = vrot.lane.b32.xlu0 %v934, 24
      %v987 = vpop.permute.xlu0 %986
      %988 = vrot.lane.b32.xlu0 %v935, 24
      %v989 = vpop.permute.xlu0 %988
      %990 = vrot.lane.b32.xlu0 %v936, 24
      %v991 = vpop.permute.xlu0 %990
      %992 = vrot.lane.b32.xlu0 %v937, 24
      %v993 = vpop.permute.xlu0 %992
      %994 = vrot.lane.b32.xlu0 %v938, 24
      %v995 = vpop.permute.xlu0 %994
      %996 = vrot.lane.b32.xlu0 %v939, 24
      %v997 = vpop.permute.xlu0 %996
      %998 = vrot.lane.b32.xlu0 %v940, 24
      %v999 = vpop.permute.xlu0 %998
      %1000 = vrot.lane.b32.xlu0 %v941, 24
      %v1001 = vpop.permute.xlu0 %1000
      %vm1022 = vcmask 257216
      %1023 = vst.msk [vmem:[#allocation2] sm:$0xf] %vm1022, %v963
      %1024 = vst.msk [vmem:[#allocation2 + $0x4] sm:$0xf] %vm1022, %v965
      %1025 = vst.msk [vmem:[#allocation2 + $0x8] sm:$0xf] %vm1022, %v967
      %1026 = vst.msk [vmem:[#allocation2 + $0xc] sm:$0xf] %vm1022, %v969
      %1027 = vst.msk [vmem:[#allocation2 + $0x10] sm:$0xf] %vm1022, %v971
      %1028 = vst.msk [vmem:[#allocation2 + $0x14] sm:$0xf] %vm1022, %v973
      %1029 = vst.msk [vmem:[#allocation2 + $0x18] sm:$0xf] %vm1022, %v975
      %1030 = vst.msk [vmem:[#allocation2 + $0x1c] sm:$0xf] %vm1022, %v977
      %1031 = vst.msk [vmem:[#allocation2 + $0x20] sm:$0xf] %vm1022, %v979
      %1032 = vst.msk [vmem:[#allocation2 + $0x24] sm:$0xf] %vm1022, %v981
      %1033 = vst.msk [vmem:[#allocation2 + $0x28] sm:$0xf] %vm1022, %v983
      %1034 = vst.msk [vmem:[#allocation2 + $0x2c] sm:$0xf] %vm1022, %v985
      %1035 = vst.msk [vmem:[#allocation2 + $0x30] sm:$0xf] %vm1022, %v987
      %1036 = vst.msk [vmem:[#allocation2 + $0x34] sm:$0xf] %vm1022, %v989
      %1037 = vst.msk [vmem:[#allocation2 + $0x38] sm:$0xf] %vm1022, %v991
      %1038 = vst.msk [vmem:[#allocation2 + $0x3c] sm:$0xf] %vm1022, %v993
      %1039 = vst.msk [vmem:[#allocation2 + $0x40] sm:$0xf] %vm1022, %v995
      %1040 = vst.msk [vmem:[#allocation2 + $0x44] sm:$0xf] %vm1022, %v997
      %1041 = vst.msk [vmem:[#allocation2 + $0x48] sm:$0xf] %vm1022, %v999
      %1042 = vst.msk [vmem:[#allocation2 + $0x4c] sm:$0xf] %vm1022, %v1001
      %v1043 = vld [vmem:[%s921] sm:$0xf]
      %v1044 = vld [vmem:[%s921 + $0x4] sm:$0xf]
      %v1045 = vld [vmem:[%s921 + $0x8] sm:$0x1]
      %v1046 = vld [vmem:[%s921 + $0xc] sm:$0xf]
      %v1047 = vld [vmem:[%s921 + $0x10] sm:$0xf]
      %v1048 = vld [vmem:[%s921 + $0x14] sm:$0x1]
      %v1049 = vld [vmem:[%s921 + $0x18] sm:$0xf]
      %v1050 = vld [vmem:[%s921 + $0x1c] sm:$0xf]
      %v1051 = vld [vmem:[%s921 + $0x20] sm:$0x1]
      %v1052 = vld [vmem:[%s921 + $0x24] sm:$0xf]
      %v1053 = vld [vmem:[%s921 + $0x28] sm:$0xf]
      %v1054 = vld [vmem:[%s921 + $0x2c] sm:$0x1]
      %v1055 = vld [vmem:[%s921 + $0x30] sm:$0xf]
      %v1056 = vld [vmem:[%s921 + $0x34] sm:$0xf]
      %v1057 = vld [vmem:[%s921 + $0x38] sm:$0x1]
      %v1058 = vld [vmem:[%s921 + $0x3c] sm:$0xf]
      %v1059 = vld [vmem:[%s921 + $0x40] sm:$0xf]
      %v1060 = vld [vmem:[%s921 + $0x44] sm:$0x1]
      %v1061 = vld [vmem:[%s921 + $0x48] sm:$0xf]
      %v1062 = vld [vmem:[%s921 + $0x4c] sm:$0xf]
      %v1063 = vld [vmem:[%s921 + $0x50] sm:$0x1]
      %v1064 = vld [vmem:[%s921 + $0x54] sm:$0xf]
      %v1065 = vld [vmem:[%s921 + $0x58] sm:$0xf]
      %v1066 = vld [vmem:[%s921 + $0x5c] sm:$0x1]
      %v1067 = vld [vmem:[%s921 + $0x60] sm:$0xf]
      %v1068 = vld [vmem:[%s921 + $0x64] sm:$0xf]
      %v1069 = vld [vmem:[%s921 + $0x68] sm:$0x1]
      %v1070 = vld [vmem:[%s921 + $0x6c] sm:$0xf]
      %v1071 = vld [vmem:[%s921 + $0x70] sm:$0xf]
      %v1072 = vld [vmem:[%s921 + $0x74] sm:$0x1]
      %v1074 = vshrl.u32 %v1043, 16
      %v1076 = vrot.slane %v1074, 4
      %v1077 = vshll.u32 %v1043, 16
      %v1079 = vrot.slane %v1077, 5
      %v1080 = vor.u32 %v1076, %v1079
      %v1081 = vrot.slane %v1080, 4
      %v1083 = vshll.u32 %v1044, 16
      %v1085 = vrot.slane %v1083, 5
      %v1086 = vsel %vm382, %v1081, %v1085
      %v1087 = vshrl.u32 %v1044, 16
      %v1089 = vrot.slane %v1087, 4
      %v1090 = vor.u32 %v1089, %v1085
      %v1091 = vrot.slane %v1090, 4
      %v1093 = vshll.u32 %v1045, 16
      %v1095 = vrot.slane %v1093, 5
      %v1096 = vsel %vm382, %v1091, %v1095
      %v1098 = vshrl.u32 %v1046, 16
      %v1100 = vrot.slane %v1098, 4
      %v1101 = vshll.u32 %v1046, 16
      %v1103 = vrot.slane %v1101, 5
      %v1104 = vor.u32 %v1100, %v1103
      %v1105 = vrot.slane %v1104, 4
      %v1107 = vshll.u32 %v1047, 16
      %v1109 = vrot.slane %v1107, 5
      %v1110 = vsel %vm382, %v1105, %v1109
      %v1111 = vshrl.u32 %v1047, 16
      %v1113 = vrot.slane %v1111, 4
      %v1114 = vor.u32 %v1113, %v1109
      %v1115 = vrot.slane %v1114, 4
      %v1117 = vshll.u32 %v1048, 16
      %v1119 = vrot.slane %v1117, 5
      %v1120 = vsel %vm382, %v1115, %v1119
      %v1122 = vshrl.u32 %v1049, 16
      %v1124 = vrot.slane %v1122, 4
      %v1125 = vshll.u32 %v1049, 16
      %v1127 = vrot.slane %v1125, 5
      %v1128 = vor.u32 %v1124, %v1127
      %v1129 = vrot.slane %v1128, 4
      %v1131 = vshll.u32 %v1050, 16
      %v1133 = vrot.slane %v1131, 5
      %v1134 = vsel %vm382, %v1129, %v1133
      %v1135 = vshrl.u32 %v1050, 16
      %v1137 = vrot.slane %v1135, 4
      %v1138 = vor.u32 %v1137, %v1133
      %v1139 = vrot.slane %v1138, 4
      %v1141 = vshll.u32 %v1051, 16
      %v1143 = vrot.slane %v1141, 5
      %v1144 = vsel %vm382, %v1139, %v1143
      %v1146 = vshrl.u32 %v1052, 16
      %v1148 = vrot.slane %v1146, 4
      %v1149 = vshll.u32 %v1052, 16
      %v1151 = vrot.slane %v1149, 5
      %v1152 = vor.u32 %v1148, %v1151
      %v1153 = vrot.slane %v1152, 4
      %v1155 = vshll.u32 %v1053, 16
      %v1157 = vrot.slane %v1155, 5
      %v1158 = vsel %vm382, %v1153, %v1157
      %v1159 = vshrl.u32 %v1053, 16
      %v1161 = vrot.slane %v1159, 4
      %v1162 = vor.u32 %v1161, %v1157
      %v1163 = vrot.slane %v1162, 4
      %v1165 = vshll.u32 %v1054, 16
      %v1167 = vrot.slane %v1165, 5
      %v1168 = vsel %vm382, %v1163, %v1167
      %v1170 = vshrl.u32 %v1055, 16
      %v1172 = vrot.slane %v1170, 4
      %v1173 = vshll.u32 %v1055, 16
      %v1175 = vrot.slane %v1173, 5
      %v1176 = vor.u32 %v1172, %v1175
      %v1177 = vrot.slane %v1176, 4
      %v1179 = vshll.u32 %v1056, 16
      %v1181 = vrot.slane %v1179, 5
      %v1182 = vsel %vm382, %v1177, %v1181
      %v1183 = vshrl.u32 %v1056, 16
      %v1185 = vrot.slane %v1183, 4
      %v1186 = vor.u32 %v1185, %v1181
      %v1187 = vrot.slane %v1186, 4
      %v1189 = vshll.u32 %v1057, 16
      %v1191 = vrot.slane %v1189, 5
      %v1192 = vsel %vm382, %v1187, %v1191
      %v1194 = vshrl.u32 %v1058, 16
      %v1196 = vrot.slane %v1194, 4
      %v1197 = vshll.u32 %v1058, 16
      %v1199 = vrot.slane %v1197, 5
      %v1200 = vor.u32 %v1196, %v1199
      %v1201 = vrot.slane %v1200, 4
      %v1203 = vshll.u32 %v1059, 16
      %v1205 = vrot.slane %v1203, 5
      %v1206 = vsel %vm382, %v1201, %v1205
      %v1207 = vshrl.u32 %v1059, 16
      %v1209 = vrot.slane %v1207, 4
      %v1210 = vor.u32 %v1209, %v1205
      %v1211 = vrot.slane %v1210, 4
      %v1213 = vshll.u32 %v1060, 16
      %v1215 = vrot.slane %v1213, 5
      %v1216 = vsel %vm382, %v1211, %v1215
      %v1218 = vshrl.u32 %v1061, 16
      %v1220 = vrot.slane %v1218, 4
      %v1221 = vshll.u32 %v1061, 16
      %v1223 = vrot.slane %v1221, 5
      %v1224 = vor.u32 %v1220, %v1223
      %v1225 = vrot.slane %v1224, 4
      %v1227 = vshll.u32 %v1062, 16
      %v1229 = vrot.slane %v1227, 5
      %v1230 = vsel %vm382, %v1225, %v1229
      %v1231 = vshrl.u32 %v1062, 16
      %v1233 = vrot.slane %v1231, 4
      %v1234 = vor.u32 %v1233, %v1229
      %v1235 = vrot.slane %v1234, 4
      %v1237 = vshll.u32 %v1063, 16
      %v1239 = vrot.slane %v1237, 5
      %v1240 = vsel %vm382, %v1235, %v1239
      %v1242 = vshrl.u32 %v1064, 16
      %v1244 = vrot.slane %v1242, 4
      %v1245 = vshll.u32 %v1064, 16
      %v1247 = vrot.slane %v1245, 5
      %v1248 = vor.u32 %v1244, %v1247
      %v1249 = vrot.slane %v1248, 4
      %v1251 = vshll.u32 %v1065, 16
      %v1253 = vrot.slane %v1251, 5
      %v1254 = vsel %vm382, %v1249, %v1253
      %v1255 = vshrl.u32 %v1065, 16
      %v1257 = vrot.slane %v1255, 4
      %v1258 = vor.u32 %v1257, %v1253
      %v1259 = vrot.slane %v1258, 4
      %v1261 = vshll.u32 %v1066, 16
      %v1263 = vrot.slane %v1261, 5
      %v1264 = vsel %vm382, %v1259, %v1263
      %v1266 = vshrl.u32 %v1067, 16
      %v1268 = vrot.slane %v1266, 4
      %v1269 = vshll.u32 %v1067, 16
      %v1271 = vrot.slane %v1269, 5
      %v1272 = vor.u32 %v1268, %v1271
      %v1273 = vrot.slane %v1272, 4
      %v1275 = vshll.u32 %v1068, 16
      %v1277 = vrot.slane %v1275, 5
      %v1278 = vsel %vm382, %v1273, %v1277
      %v1279 = vshrl.u32 %v1068, 16
      %v1281 = vrot.slane %v1279, 4
      %v1282 = vor.u32 %v1281, %v1277
      %v1283 = vrot.slane %v1282, 4
      %v1285 = vshll.u32 %v1069, 16
      %v1287 = vrot.slane %v1285, 5
      %v1288 = vsel %vm382, %v1283, %v1287
      %v1290 = vshrl.u32 %v1070, 16
      %v1292 = vrot.slane %v1290, 4
      %v1293 = vshll.u32 %v1070, 16
      %v1295 = vrot.slane %v1293, 5
      %v1296 = vor.u32 %v1292, %v1295
      %v1297 = vrot.slane %v1296, 4
      %v1299 = vshll.u32 %v1071, 16
      %v1301 = vrot.slane %v1299, 5
      %v1302 = vsel %vm382, %v1297, %v1301
      %v1303 = vshrl.u32 %v1071, 16
      %v1305 = vrot.slane %v1303, 4
      %v1306 = vor.u32 %v1305, %v1301
      %v1307 = vrot.slane %v1306, 4
      %v1309 = vshll.u32 %v1072, 16
      %v1311 = vrot.slane %v1309, 5
      %v1312 = vsel %vm382, %v1307, %v1311
      %1313 = vrot.lane.b32.xlu0 %v1086, 32
      %v1314 = vpop.permute.xlu0 %1313
      %1315 = vrot.lane.b32.xlu0 %v1096, 32
      %v1316 = vpop.permute.xlu0 %1315
      %1317 = vrot.lane.b32.xlu0 %v1110, 32
      %v1318 = vpop.permute.xlu0 %1317
      %1319 = vrot.lane.b32.xlu0 %v1120, 32
      %v1320 = vpop.permute.xlu0 %1319
      %1321 = vrot.lane.b32.xlu0 %v1134, 32
      %v1322 = vpop.permute.xlu0 %1321
      %1323 = vrot.lane.b32.xlu0 %v1144, 32
      %v1324 = vpop.permute.xlu0 %1323
      %1325 = vrot.lane.b32.xlu0 %v1158, 32
      %v1326 = vpop.permute.xlu0 %1325
      %1327 = vrot.lane.b32.xlu0 %v1168, 32
      %v1328 = vpop.permute.xlu0 %1327
      %1329 = vrot.lane.b32.xlu0 %v1182, 32
      %v1330 = vpop.permute.xlu0 %1329
      %1331 = vrot.lane.b32.xlu0 %v1192, 32
      %v1332 = vpop.permute.xlu0 %1331
      %1333 = vrot.lane.b32.xlu0 %v1206, 32
      %v1334 = vpop.permute.xlu0 %1333
      %1335 = vrot.lane.b32.xlu0 %v1216, 32
      %v1336 = vpop.permute.xlu0 %1335
      %1337 = vrot.lane.b32.xlu0 %v1230, 32
      %v1338 = vpop.permute.xlu0 %1337
      %1339 = vrot.lane.b32.xlu0 %v1240, 32
      %v1340 = vpop.permute.xlu0 %1339
      %1341 = vrot.lane.b32.xlu0 %v1254, 32
      %v1342 = vpop.permute.xlu0 %1341
      %1343 = vrot.lane.b32.xlu0 %v1264, 32
      %v1344 = vpop.permute.xlu0 %1343
      %1345 = vrot.lane.b32.xlu0 %v1278, 32
      %v1346 = vpop.permute.xlu0 %1345
      %1347 = vrot.lane.b32.xlu0 %v1288, 32
      %v1348 = vpop.permute.xlu0 %1347
      %1349 = vrot.lane.b32.xlu0 %v1302, 32
      %v1350 = vpop.permute.xlu0 %1349
      %1351 = vrot.lane.b32.xlu0 %v1312, 32
      %v1352 = vpop.permute.xlu0 %1351
      %vm1373 = vcmask 322816
      %1374 = vst.msk [vmem:[#allocation2] sm:$0xf] %vm1373, %v1314
      %1375 = vst.msk [vmem:[#allocation2 + $0x4] sm:$0xf] %vm1373, %v1316
      %1376 = vst.msk [vmem:[#allocation2 + $0x8] sm:$0xf] %vm1373, %v1318
      %1377 = vst.msk [vmem:[#allocation2 + $0xc] sm:$0xf] %vm1373, %v1320
      %1378 = vst.msk [vmem:[#allocation2 + $0x10] sm:$0xf] %vm1373, %v1322
      %1379 = vst.msk [vmem:[#allocation2 + $0x14] sm:$0xf] %vm1373, %v1324
      %1380 = vst.msk [vmem:[#allocation2 + $0x18] sm:$0xf] %vm1373, %v1326
      %1381 = vst.msk [vmem:[#allocation2 + $0x1c] sm:$0xf] %vm1373, %v1328
      %1382 = vst.msk [vmem:[#allocation2 + $0x20] sm:$0xf] %vm1373, %v1330
      %1383 = vst.msk [vmem:[#allocation2 + $0x24] sm:$0xf] %vm1373, %v1332
      %1384 = vst.msk [vmem:[#allocation2 + $0x28] sm:$0xf] %vm1373, %v1334
      %1385 = vst.msk [vmem:[#allocation2 + $0x2c] sm:$0xf] %vm1373, %v1336
      %1386 = vst.msk [vmem:[#allocation2 + $0x30] sm:$0xf] %vm1373, %v1338
      %1387 = vst.msk [vmem:[#allocation2 + $0x34] sm:$0xf] %vm1373, %v1340
      %1388 = vst.msk [vmem:[#allocation2 + $0x38] sm:$0xf] %vm1373, %v1342
      %1389 = vst.msk [vmem:[#allocation2 + $0x3c] sm:$0xf] %vm1373, %v1344
      %1390 = vst.msk [vmem:[#allocation2 + $0x40] sm:$0xf] %vm1373, %v1346
      %1391 = vst.msk [vmem:[#allocation2 + $0x44] sm:$0xf] %vm1373, %v1348
      %1392 = vst.msk [vmem:[#allocation2 + $0x48] sm:$0xf] %vm1373, %v1350
      %1393 = vst.msk [vmem:[#allocation2 + $0x4c] sm:$0xf] %vm1373, %v1352
      %v1394 = vld [vmem:[%s921] sm:$0xe]
      %v1395 = vld [vmem:[%s921 + $0x4] sm:$0xf]
      %v1396 = vld [vmem:[%s921 + $0x8] sm:$0x1]
      %v1397 = vld [vmem:[%s921 + $0xc] sm:$0xe]
      %v1398 = vld [vmem:[%s921 + $0x10] sm:$0xf]
      %v1399 = vld [vmem:[%s921 + $0x14] sm:$0x1]
      %v1400 = vld [vmem:[%s921 + $0x18] sm:$0xe]
      %v1401 = vld [vmem:[%s921 + $0x1c] sm:$0xf]
      %v1402 = vld [vmem:[%s921 + $0x20] sm:$0x1]
      %v1403 = vld [vmem:[%s921 + $0x24] sm:$0xe]
      %v1404 = vld [vmem:[%s921 + $0x28] sm:$0xf]
      %v1405 = vld [vmem:[%s921 + $0x2c] sm:$0x1]
      %v1406 = vld [vmem:[%s921 + $0x30] sm:$0xe]
      %v1407 = vld [vmem:[%s921 + $0x34] sm:$0xf]
      %v1408 = vld [vmem:[%s921 + $0x38] sm:$0x1]
      %v1409 = vld [vmem:[%s921 + $0x3c] sm:$0xe]
      %v1410 = vld [vmem:[%s921 + $0x40] sm:$0xf]
      %v1411 = vld [vmem:[%s921 + $0x44] sm:$0x1]
      %v1412 = vld [vmem:[%s921 + $0x48] sm:$0xe]
      %v1413 = vld [vmem:[%s921 + $0x4c] sm:$0xf]
      %v1414 = vld [vmem:[%s921 + $0x50] sm:$0x1]
      %v1415 = vld [vmem:[%s921 + $0x54] sm:$0xe]
      %v1416 = vld [vmem:[%s921 + $0x58] sm:$0xf]
      %v1417 = vld [vmem:[%s921 + $0x5c] sm:$0x1]
      %v1418 = vld [vmem:[%s921 + $0x60] sm:$0xe]
      %v1419 = vld [vmem:[%s921 + $0x64] sm:$0xf]
      %v1420 = vld [vmem:[%s921 + $0x68] sm:$0x1]
      %v1421 = vld [vmem:[%s921 + $0x6c] sm:$0xe]
      %v1422 = vld [vmem:[%s921 + $0x70] sm:$0xf]
      %v1423 = vld [vmem:[%s921 + $0x74] sm:$0x1]
      %v1454 = vrot.slane %v1394, 5
      %v1455 = vrot.slane %v1454, 4
      %v1456 = vrot.slane %v1395, 5
      %v1457 = vsel %vm766, %v1455, %v1456
      %v1458 = vrot.slane %v1456, 4
      %v1459 = vrot.slane %v1396, 5
      %v1460 = vsel %vm766, %v1458, %v1459
      %v1461 = vrot.slane %v1397, 5
      %v1462 = vrot.slane %v1461, 4
      %v1463 = vrot.slane %v1398, 5
      %v1464 = vsel %vm766, %v1462, %v1463
      %v1465 = vrot.slane %v1463, 4
      %v1466 = vrot.slane %v1399, 5
      %v1467 = vsel %vm766, %v1465, %v1466
      %v1468 = vrot.slane %v1400, 5
      %v1469 = vrot.slane %v1468, 4
      %v1470 = vrot.slane %v1401, 5
      %v1471 = vsel %vm766, %v1469, %v1470
      %v1472 = vrot.slane %v1470, 4
      %v1473 = vrot.slane %v1402, 5
      %v1474 = vsel %vm766, %v1472, %v1473
      %v1475 = vrot.slane %v1403, 5
      %v1476 = vrot.slane %v1475, 4
      %v1477 = vrot.slane %v1404, 5
      %v1478 = vsel %vm766, %v1476, %v1477
      %v1479 = vrot.slane %v1477, 4
      %v1480 = vrot.slane %v1405, 5
      %v1481 = vsel %vm766, %v1479, %v1480
      %v1482 = vrot.slane %v1406, 5
      %v1483 = vrot.slane %v1482, 4
      %v1484 = vrot.slane %v1407, 5
      %v1485 = vsel %vm766, %v1483, %v1484
      %v1486 = vrot.slane %v1484, 4
      %v1487 = vrot.slane %v1408, 5
      %v1488 = vsel %vm766, %v1486, %v1487
      %v1489 = vrot.slane %v1409, 5
      %v1490 = vrot.slane %v1489, 4
      %v1491 = vrot.slane %v1410, 5
      %v1492 = vsel %vm766, %v1490, %v1491
      %v1493 = vrot.slane %v1491, 4
      %v1494 = vrot.slane %v1411, 5
      %v1495 = vsel %vm766, %v1493, %v1494
      %v1496 = vrot.slane %v1412, 5
      %v1497 = vrot.slane %v1496, 4
      %v1498 = vrot.slane %v1413, 5
      %v1499 = vsel %vm766, %v1497, %v1498
      %v1500 = vrot.slane %v1498, 4
      %v1501 = vrot.slane %v1414, 5
      %v1502 = vsel %vm766, %v1500, %v1501
      %v1503 = vrot.slane %v1415, 5
      %v1504 = vrot.slane %v1503, 4
      %v1505 = vrot.slane %v1416, 5
      %v1506 = vsel %vm766, %v1504, %v1505
      %v1507 = vrot.slane %v1505, 4
      %v1508 = vrot.slane %v1417, 5
      %v1509 = vsel %vm766, %v1507, %v1508
      %v1510 = vrot.slane %v1418, 5
      %v1511 = vrot.slane %v1510, 4
      %v1512 = vrot.slane %v1419, 5
      %v1513 = vsel %vm766, %v1511, %v1512
      %v1514 = vrot.slane %v1512, 4
      %v1515 = vrot.slane %v1420, 5
      %v1516 = vsel %vm766, %v1514, %v1515
      %v1517 = vrot.slane %v1421, 5
      %v1518 = vrot.slane %v1517, 4
      %v1519 = vrot.slane %v1422, 5
      %v1520 = vsel %vm766, %v1518, %v1519
      %v1521 = vrot.slane %v1519, 4
      %v1522 = vrot.slane %v1423, 5
      %v1523 = vsel %vm766, %v1521, %v1522
      %1524 = vrot.lane.b32.xlu0 %v1457, 40
      %v1525 = vpop.permute.xlu0 %1524
      %1526 = vrot.lane.b32.xlu0 %v1460, 40
      %v1527 = vpop.permute.xlu0 %1526
      %1528 = vrot.lane.b32.xlu0 %v1464, 40
      %v1529 = vpop.permute.xlu0 %1528
      %1530 = vrot.lane.b32.xlu0 %v1467, 40
      %v1531 = vpop.permute.xlu0 %1530
      %1532 = vrot.lane.b32.xlu0 %v1471, 40
      %v1533 = vpop.permute.xlu0 %1532
      %1534 = vrot.lane.b32.xlu0 %v1474, 40
      %v1535 = vpop.permute.xlu0 %1534
      %1536 = vrot.lane.b32.xlu0 %v1478, 40
      %v1537 = vpop.permute.xlu0 %1536
      %1538 = vrot.lane.b32.xlu0 %v1481, 40
      %v1539 = vpop.permute.xlu0 %1538
      %1540 = vrot.lane.b32.xlu0 %v1485, 40
      %v1541 = vpop.permute.xlu0 %1540
      %1542 = vrot.lane.b32.xlu0 %v1488, 40
      %v1543 = vpop.permute.xlu0 %1542
      %1544 = vrot.lane.b32.xlu0 %v1492, 40
      %v1545 = vpop.permute.xlu0 %1544
      %1546 = vrot.lane.b32.xlu0 %v1495, 40
      %v1547 = vpop.permute.xlu0 %1546
      %1548 = vrot.lane.b32.xlu0 %v1499, 40
      %v1549 = vpop.permute.xlu0 %1548
      %1550 = vrot.lane.b32.xlu0 %v1502, 40
      %v1551 = vpop.permute.xlu0 %1550
      %1552 = vrot.lane.b32.xlu0 %v1506, 40
      %v1553 = vpop.permute.xlu0 %1552
      %1554 = vrot.lane.b32.xlu0 %v1509, 40
      %v1555 = vpop.permute.xlu0 %1554
      %1556 = vrot.lane.b32.xlu0 %v1513, 40
      %v1557 = vpop.permute.xlu0 %1556
      %1558 = vrot.lane.b32.xlu0 %v1516, 40
      %v1559 = vpop.permute.xlu0 %1558
      %1560 = vrot.lane.b32.xlu0 %v1520, 40
      %v1561 = vpop.permute.xlu0 %1560
      %1562 = vrot.lane.b32.xlu0 %v1523, 40
      %v1563 = vpop.permute.xlu0 %1562
      %vm1584 = vcmask 388416
      %1585 = vst.msk [vmem:[#allocation2] sm:$0xf] %vm1584, %v1525
      %1586 = vst.msk [vmem:[#allocation2 + $0x4] sm:$0xf] %vm1584, %v1527
      %1587 = vst.msk [vmem:[#allocation2 + $0x8] sm:$0xf] %vm1584, %v1529
      %1588 = vst.msk [vmem:[#allocation2 + $0xc] sm:$0xf] %vm1584, %v1531
      %1589 = vst.msk [vmem:[#allocation2 + $0x10] sm:$0xf] %vm1584, %v1533
      %1590 = vst.msk [vmem:[#allocation2 + $0x14] sm:$0xf] %vm1584, %v1535
      %1591 = vst.msk [vmem:[#allocation2 + $0x18] sm:$0xf] %vm1584, %v1537
      %1592 = vst.msk [vmem:[#allocation2 + $0x1c] sm:$0xf] %vm1584, %v1539
      %1593 = vst.msk [vmem:[#allocation2 + $0x20] sm:$0xf] %vm1584, %v1541
      %1594 = vst.msk [vmem:[#allocation2 + $0x24] sm:$0xf] %vm1584, %v1543
      %1595 = vst.msk [vmem:[#allocation2 + $0x28] sm:$0xf] %vm1584, %v1545
      %1596 = vst.msk [vmem:[#allocation2 + $0x2c] sm:$0xf] %vm1584, %v1547
      %1597 = vst.msk [vmem:[#allocation2 + $0x30] sm:$0xf] %vm1584, %v1549
      %1598 = vst.msk [vmem:[#allocation2 + $0x34] sm:$0xf] %vm1584, %v1551
      %1599 = vst.msk [vmem:[#allocation2 + $0x38] sm:$0xf] %vm1584, %v1553
      %1600 = vst.msk [vmem:[#allocation2 + $0x3c] sm:$0xf] %vm1584, %v1555
      %1601 = vst.msk [vmem:[#allocation2 + $0x40] sm:$0xf] %vm1584, %v1557
      %1602 = vst.msk [vmem:[#allocation2 + $0x44] sm:$0xf] %vm1584, %v1559
      %1603 = vst.msk [vmem:[#allocation2 + $0x48] sm:$0xf] %vm1584, %v1561
      %1604 = vst.msk [vmem:[#allocation2 + $0x4c] sm:$0xf] %vm1584, %v1563
      %s1605 = sadd.s32 %s305, 2
      %s1606 = smul.u32 %s1605, 3
      %s1607 = smul.addr %s1606, 4
      %s1608 = scalar_lea.vmem %s292, %s1607
      %v1609 = vld [vmem:[%s1608] sm:$0xf]
      %v1610 = vld [vmem:[%s1608 + $0x4] sm:$0xf]
      %v1611 = vld [vmem:[%s1608 + $0xc] sm:$0xf]
      %v1612 = vld [vmem:[%s1608 + $0x10] sm:$0xf]
      %v1613 = vld [vmem:[%s1608 + $0x18] sm:$0xf]
      %v1614 = vld [vmem:[%s1608 + $0x1c] sm:$0xf]
      %v1615 = vld [vmem:[%s1608 + $0x24] sm:$0xf]
      %v1616 = vld [vmem:[%s1608 + $0x28] sm:$0xf]
      %v1617 = vld [vmem:[%s1608 + $0x30] sm:$0xf]
      %v1618 = vld [vmem:[%s1608 + $0x34] sm:$0xf]
      %v1619 = vld [vmem:[%s1608 + $0x3c] sm:$0xf]
      %v1620 = vld [vmem:[%s1608 + $0x40] sm:$0xf]
      %v1621 = vld [vmem:[%s1608 + $0x48] sm:$0xf]
      %v1622 = vld [vmem:[%s1608 + $0x4c] sm:$0xf]
      %v1623 = vld [vmem:[%s1608 + $0x54] sm:$0xf]
      %v1624 = vld [vmem:[%s1608 + $0x58] sm:$0xf]
      %v1625 = vld [vmem:[%s1608 + $0x60] sm:$0xf]
      %v1626 = vld [vmem:[%s1608 + $0x64] sm:$0xf]
      %v1627 = vld [vmem:[%s1608 + $0x6c] sm:$0xf]
      %v1628 = vld [vmem:[%s1608 + $0x70] sm:$0xf]
      %1649 = vrot.lane.b32.xlu0 %v1609, 48
      %v1650 = vpop.permute.xlu0 %1649
      %1651 = vrot.lane.b32.xlu0 %v1610, 48
      %v1652 = vpop.permute.xlu0 %1651
      %1653 = vrot.lane.b32.xlu0 %v1611, 48
      %v1654 = vpop.permute.xlu0 %1653
      %1655 = vrot.lane.b32.xlu0 %v1612, 48
      %v1656 = vpop.permute.xlu0 %1655
      %1657 = vrot.lane.b32.xlu0 %v1613, 48
      %v1658 = vpop.permute.xlu0 %1657
      %1659 = vrot.lane.b32.xlu0 %v1614, 48
      %v1660 = vpop.permute.xlu0 %1659
      %1661 = vrot.lane.b32.xlu0 %v1615, 48
      %v1662 = vpop.permute.xlu0 %1661
      %1663 = vrot.lane.b32.xlu0 %v1616, 48
      %v1664 = vpop.permute.xlu0 %1663
      %1665 = vrot.lane.b32.xlu0 %v1617, 48
      %v1666 = vpop.permute.xlu0 %1665
      %1667 = vrot.lane.b32.xlu0 %v1618, 48
      %v1668 = vpop.permute.xlu0 %1667
      %1669 = vrot.lane.b32.xlu0 %v1619, 48
      %v1670 = vpop.permute.xlu0 %1669
      %1671 = vrot.lane.b32.xlu0 %v1620, 48
      %v1672 = vpop.permute.xlu0 %1671
      %1673 = vrot.lane.b32.xlu0 %v1621, 48
      %v1674 = vpop.permute.xlu0 %1673
      %1675 = vrot.lane.b32.xlu0 %v1622, 48
      %v1676 = vpop.permute.xlu0 %1675
      %1677 = vrot.lane.b32.xlu0 %v1623, 48
      %v1678 = vpop.permute.xlu0 %1677
      %1679 = vrot.lane.b32.xlu0 %v1624, 48
      %v1680 = vpop.permute.xlu0 %1679
      %1681 = vrot.lane.b32.xlu0 %v1625, 48
      %v1682 = vpop.permute.xlu0 %1681
      %1683 = vrot.lane.b32.xlu0 %v1626, 48
      %v1684 = vpop.permute.xlu0 %1683
      %1685 = vrot.lane.b32.xlu0 %v1627, 48
      %v1686 = vpop.permute.xlu0 %1685
      %1687 = vrot.lane.b32.xlu0 %v1628, 48
      %v1688 = vpop.permute.xlu0 %1687
      %vm1709 = vcmask 454016
      %1710 = vst.msk [vmem:[#allocation2] sm:$0xf] %vm1709, %v1650
      %1711 = vst.msk [vmem:[#allocation2 + $0x4] sm:$0xf] %vm1709, %v1652
      %1712 = vst.msk [vmem:[#allocation2 + $0x8] sm:$0xf] %vm1709, %v1654
      %1713 = vst.msk [vmem:[#allocation2 + $0xc] sm:$0xf] %vm1709, %v1656
      %1714 = vst.msk [vmem:[#allocation2 + $0x10] sm:$0xf] %vm1709, %v1658
      %1715 = vst.msk [vmem:[#allocation2 + $0x14] sm:$0xf] %vm1709, %v1660
      %1716 = vst.msk [vmem:[#allocation2 + $0x18] sm:$0xf] %vm1709, %v1662
      %1717 = vst.msk [vmem:[#allocation2 + $0x1c] sm:$0xf] %vm1709, %v1664
      %1718 = vst.msk [vmem:[#allocation2 + $0x20] sm:$0xf] %vm1709, %v1666
      %1719 = vst.msk [vmem:[#allocation2 + $0x24] sm:$0xf] %vm1709, %v1668
      %1720 = vst.msk [vmem:[#allocation2 + $0x28] sm:$0xf] %vm1709, %v1670
      %1721 = vst.msk [vmem:[#allocation2 + $0x2c] sm:$0xf] %vm1709, %v1672
      %1722 = vst.msk [vmem:[#allocation2 + $0x30] sm:$0xf] %vm1709, %v1674
      %1723 = vst.msk [vmem:[#allocation2 + $0x34] sm:$0xf] %vm1709, %v1676
      %1724 = vst.msk [vmem:[#allocation2 + $0x38] sm:$0xf] %vm1709, %v1678
      %1725 = vst.msk [vmem:[#allocation2 + $0x3c] sm:$0xf] %vm1709, %v1680
      %1726 = vst.msk [vmem:[#allocation2 + $0x40] sm:$0xf] %vm1709, %v1682
      %1727 = vst.msk [vmem:[#allocation2 + $0x44] sm:$0xf] %vm1709, %v1684
      %1728 = vst.msk [vmem:[#allocation2 + $0x48] sm:$0xf] %vm1709, %v1686
      %1729 = vst.msk [vmem:[#allocation2 + $0x4c] sm:$0xf] %vm1709, %v1688
      %v1730 = vld [vmem:[%s1608] sm:$0xf]
      %v1731 = vld [vmem:[%s1608 + $0x4] sm:$0xf]
      %v1732 = vld [vmem:[%s1608 + $0x8] sm:$0x1]
      %v1733 = vld [vmem:[%s1608 + $0xc] sm:$0xf]
      %v1734 = vld [vmem:[%s1608 + $0x10] sm:$0xf]
      %v1735 = vld [vmem:[%s1608 + $0x14] sm:$0x1]
      %v1736 = vld [vmem:[%s1608 + $0x18] sm:$0xf]
      %v1737 = vld [vmem:[%s1608 + $0x1c] sm:$0xf]
      %v1738 = vld [vmem:[%s1608 + $0x20] sm:$0x1]
      %v1739 = vld [vmem:[%s1608 + $0x24] sm:$0xf]
      %v1740 = vld [vmem:[%s1608 + $0x28] sm:$0xf]
      %v1741 = vld [vmem:[%s1608 + $0x2c] sm:$0x1]
      %v1742 = vld [vmem:[%s1608 + $0x30] sm:$0xf]
      %v1743 = vld [vmem:[%s1608 + $0x34] sm:$0xf]
      %v1744 = vld [vmem:[%s1608 + $0x38] sm:$0x1]
      %v1745 = vld [vmem:[%s1608 + $0x3c] sm:$0xf]
      %v1746 = vld [vmem:[%s1608 + $0x40] sm:$0xf]
      %v1747 = vld [vmem:[%s1608 + $0x44] sm:$0x1]
      %v1748 = vld [vmem:[%s1608 + $0x48] sm:$0xf]
      %v1749 = vld [vmem:[%s1608 + $0x4c] sm:$0xf]
      %v1750 = vld [vmem:[%s1608 + $0x50] sm:$0x1]
      %v1751 = vld [vmem:[%s1608 + $0x54] sm:$0xf]
      %v1752 = vld [vmem:[%s1608 + $0x58] sm:$0xf]
      %v1753 = vld [vmem:[%s1608 + $0x5c] sm:$0x1]
      %v1754 = vld [vmem:[%s1608 + $0x60] sm:$0xf]
      %v1755 = vld [vmem:[%s1608 + $0x64] sm:$0xf]
      %v1756 = vld [vmem:[%s1608 + $0x68] sm:$0x1]
      %v1757 = vld [vmem:[%s1608 + $0x6c] sm:$0xf]
      %v1758 = vld [vmem:[%s1608 + $0x70] sm:$0xf]
      %v1759 = vld [vmem:[%s1608 + $0x74] sm:$0x1]
      %v1761 = vshrl.u32 %v1730, 16
      %v1763 = vrot.slane %v1761, 4
      %v1764 = vshll.u32 %v1730, 16
      %v1766 = vrot.slane %v1764, 5
      %v1767 = vor.u32 %v1763, %v1766
      %v1768 = vrot.slane %v1767, 4
      %v1770 = vshll.u32 %v1731, 16
      %v1772 = vrot.slane %v1770, 5
      %v1773 = vsel %vm382, %v1768, %v1772
      %v1774 = vshrl.u32 %v1731, 16
      %v1776 = vrot.slane %v1774, 4
      %v1777 = vor.u32 %v1776, %v1772
      %v1778 = vrot.slane %v1777, 4
      %v1780 = vshll.u32 %v1732, 16
      %v1782 = vrot.slane %v1780, 5
      %v1783 = vsel %vm382, %v1778, %v1782
      %v1785 = vshrl.u32 %v1733, 16
      %v1787 = vrot.slane %v1785, 4
      %v1788 = vshll.u32 %v1733, 16
      %v1790 = vrot.slane %v1788, 5
      %v1791 = vor.u32 %v1787, %v1790
      %v1792 = vrot.slane %v1791, 4
      %v1794 = vshll.u32 %v1734, 16
      %v1796 = vrot.slane %v1794, 5
      %v1797 = vsel %vm382, %v1792, %v1796
      %v1798 = vshrl.u32 %v1734, 16
      %v1800 = vrot.slane %v1798, 4
      %v1801 = vor.u32 %v1800, %v1796
      %v1802 = vrot.slane %v1801, 4
      %v1804 = vshll.u32 %v1735, 16
      %v1806 = vrot.slane %v1804, 5
      %v1807 = vsel %vm382, %v1802, %v1806
      %v1809 = vshrl.u32 %v1736, 16
      %v1811 = vrot.slane %v1809, 4
      %v1812 = vshll.u32 %v1736, 16
      %v1814 = vrot.slane %v1812, 5
      %v1815 = vor.u32 %v1811, %v1814
      %v1816 = vrot.slane %v1815, 4
      %v1818 = vshll.u32 %v1737, 16
      %v1820 = vrot.slane %v1818, 5
      %v1821 = vsel %vm382, %v1816, %v1820
      %v1822 = vshrl.u32 %v1737, 16
      %v1824 = vrot.slane %v1822, 4
      %v1825 = vor.u32 %v1824, %v1820
      %v1826 = vrot.slane %v1825, 4
      %v1828 = vshll.u32 %v1738, 16
      %v1830 = vrot.slane %v1828, 5
      %v1831 = vsel %vm382, %v1826, %v1830
      %v1833 = vshrl.u32 %v1739, 16
      %v1835 = vrot.slane %v1833, 4
      %v1836 = vshll.u32 %v1739, 16
      %v1838 = vrot.slane %v1836, 5
      %v1839 = vor.u32 %v1835, %v1838
      %v1840 = vrot.slane %v1839, 4
      %v1842 = vshll.u32 %v1740, 16
      %v1844 = vrot.slane %v1842, 5
      %v1845 = vsel %vm382, %v1840, %v1844
      %v1846 = vshrl.u32 %v1740, 16
      %v1848 = vrot.slane %v1846, 4
      %v1849 = vor.u32 %v1848, %v1844
      %v1850 = vrot.slane %v1849, 4
      %v1852 = vshll.u32 %v1741, 16
      %v1854 = vrot.slane %v1852, 5
      %v1855 = vsel %vm382, %v1850, %v1854
      %v1857 = vshrl.u32 %v1742, 16
      %v1859 = vrot.slane %v1857, 4
      %v1860 = vshll.u32 %v1742, 16
      %v1862 = vrot.slane %v1860, 5
      %v1863 = vor.u32 %v1859, %v1862
      %v1864 = vrot.slane %v1863, 4
      %v1866 = vshll.u32 %v1743, 16
      %v1868 = vrot.slane %v1866, 5
      %v1869 = vsel %vm382, %v1864, %v1868
      %v1870 = vshrl.u32 %v1743, 16
      %v1872 = vrot.slane %v1870, 4
      %v1873 = vor.u32 %v1872, %v1868
      %v1874 = vrot.slane %v1873, 4
      %v1876 = vshll.u32 %v1744, 16
      %v1878 = vrot.slane %v1876, 5
      %v1879 = vsel %vm382, %v1874, %v1878
      %v1881 = vshrl.u32 %v1745, 16
      %v1883 = vrot.slane %v1881, 4
      %v1884 = vshll.u32 %v1745, 16
      %v1886 = vrot.slane %v1884, 5
      %v1887 = vor.u32 %v1883, %v1886
      %v1888 = vrot.slane %v1887, 4
      %v1890 = vshll.u32 %v1746, 16
      %v1892 = vrot.slane %v1890, 5
      %v1893 = vsel %vm382, %v1888, %v1892
      %v1894 = vshrl.u32 %v1746, 16
      %v1896 = vrot.slane %v1894, 4
      %v1897 = vor.u32 %v1896, %v1892
      %v1898 = vrot.slane %v1897, 4
      %v1900 = vshll.u32 %v1747, 16
      %v1902 = vrot.slane %v1900, 5
      %v1903 = vsel %vm382, %v1898, %v1902
      %v1905 = vshrl.u32 %v1748, 16
      %v1907 = vrot.slane %v1905, 4
      %v1908 = vshll.u32 %v1748, 16
      %v1910 = vrot.slane %v1908, 5
      %v1911 = vor.u32 %v1907, %v1910
      %v1912 = vrot.slane %v1911, 4
      %v1914 = vshll.u32 %v1749, 16
      %v1916 = vrot.slane %v1914, 5
      %v1917 = vsel %vm382, %v1912, %v1916
      %v1918 = vshrl.u32 %v1749, 16
      %v1920 = vrot.slane %v1918, 4
      %v1921 = vor.u32 %v1920, %v1916
      %v1922 = vrot.slane %v1921, 4
      %v1924 = vshll.u32 %v1750, 16
      %v1926 = vrot.slane %v1924, 5
      %v1927 = vsel %vm382, %v1922, %v1926
      %v1929 = vshrl.u32 %v1751, 16
      %v1931 = vrot.slane %v1929, 4
      %v1932 = vshll.u32 %v1751, 16
      %v1934 = vrot.slane %v1932, 5
      %v1935 = vor.u32 %v1931, %v1934
      %v1936 = vrot.slane %v1935, 4
      %v1938 = vshll.u32 %v1752, 16
      %v1940 = vrot.slane %v1938, 5
      %v1941 = vsel %vm382, %v1936, %v1940
      %v1942 = vshrl.u32 %v1752, 16
      %v1944 = vrot.slane %v1942, 4
      %v1945 = vor.u32 %v1944, %v1940
      %v1946 = vrot.slane %v1945, 4
      %v1948 = vshll.u32 %v1753, 16
      %v1950 = vrot.slane %v1948, 5
      %v1951 = vsel %vm382, %v1946, %v1950
      %v1953 = vshrl.u32 %v1754, 16
      %v1955 = vrot.slane %v1953, 4
      %v1956 = vshll.u32 %v1754, 16
      %v1958 = vrot.slane %v1956, 5
      %v1959 = vor.u32 %v1955, %v1958
      %v1960 = vrot.slane %v1959, 4
      %v1962 = vshll.u32 %v1755, 16
      %v1964 = vrot.slane %v1962, 5
      %v1965 = vsel %vm382, %v1960, %v1964
      %v1966 = vshrl.u32 %v1755, 16
      %v1968 = vrot.slane %v1966, 4
      %v1969 = vor.u32 %v1968, %v1964
      %v1970 = vrot.slane %v1969, 4
      %v1972 = vshll.u32 %v1756, 16
      %v1974 = vrot.slane %v1972, 5
      %v1975 = vsel %vm382, %v1970, %v1974
      %v1977 = vshrl.u32 %v1757, 16
      %v1979 = vrot.slane %v1977, 4
      %v1980 = vshll.u32 %v1757, 16
      %v1982 = vrot.slane %v1980, 5
      %v1983 = vor.u32 %v1979, %v1982
      %v1984 = vrot.slane %v1983, 4
      %v1986 = vshll.u32 %v1758, 16
      %v1988 = vrot.slane %v1986, 5
      %v1989 = vsel %vm382, %v1984, %v1988
      %v1990 = vshrl.u32 %v1758, 16
      %v1992 = vrot.slane %v1990, 4
      %v1993 = vor.u32 %v1992, %v1988
      %v1994 = vrot.slane %v1993, 4
      %v1996 = vshll.u32 %v1759, 16
      %v1998 = vrot.slane %v1996, 5
      %v1999 = vsel %vm382, %v1994, %v1998
      %2000 = vrot.lane.b32.xlu0 %v1773, 56
      %v2001 = vpop.permute.xlu0 %2000
      %2002 = vrot.lane.b32.xlu0 %v1783, 56
      %v2003 = vpop.permute.xlu0 %2002
      %2004 = vrot.lane.b32.xlu0 %v1797, 56
      %v2005 = vpop.permute.xlu0 %2004
      %2006 = vrot.lane.b32.xlu0 %v1807, 56
      %v2007 = vpop.permute.xlu0 %2006
      %2008 = vrot.lane.b32.xlu0 %v1821, 56
      %v2009 = vpop.permute.xlu0 %2008
      %2010 = vrot.lane.b32.xlu0 %v1831, 56
      %v2011 = vpop.permute.xlu0 %2010
      %2012 = vrot.lane.b32.xlu0 %v1845, 56
      %v2013 = vpop.permute.xlu0 %2012
      %2014 = vrot.lane.b32.xlu0 %v1855, 56
      %v2015 = vpop.permute.xlu0 %2014
      %2016 = vrot.lane.b32.xlu0 %v1869, 56
      %v2017 = vpop.permute.xlu0 %2016
      %2018 = vrot.lane.b32.xlu0 %v1879, 56
      %v2019 = vpop.permute.xlu0 %2018
      %2020 = vrot.lane.b32.xlu0 %v1893, 56
      %v2021 = vpop.permute.xlu0 %2020
      %2022 = vrot.lane.b32.xlu0 %v1903, 56
      %v2023 = vpop.permute.xlu0 %2022
      %2024 = vrot.lane.b32.xlu0 %v1917, 56
      %v2025 = vpop.permute.xlu0 %2024
      %2026 = vrot.lane.b32.xlu0 %v1927, 56
      %v2027 = vpop.permute.xlu0 %2026
      %2028 = vrot.lane.b32.xlu0 %v1941, 56
      %v2029 = vpop.permute.xlu0 %2028
      %2030 = vrot.lane.b32.xlu0 %v1951, 56
      %v2031 = vpop.permute.xlu0 %2030
      %2032 = vrot.lane.b32.xlu0 %v1965, 56
      %v2033 = vpop.permute.xlu0 %2032
      %2034 = vrot.lane.b32.xlu0 %v1975, 56
      %v2035 = vpop.permute.xlu0 %2034
      %2036 = vrot.lane.b32.xlu0 %v1989, 56
      %v2037 = vpop.permute.xlu0 %2036
      %2038 = vrot.lane.b32.xlu0 %v1999, 56
      %v2039 = vpop.permute.xlu0 %2038
      %vm2060 = vcmask 519616
      %2061 = vst.msk [vmem:[#allocation2] sm:$0xf] %vm2060, %v2001
      %2062 = vst.msk [vmem:[#allocation2 + $0x4] sm:$0xf] %vm2060, %v2003
      %2063 = vst.msk [vmem:[#allocation2 + $0x8] sm:$0xf] %vm2060, %v2005
      %2064 = vst.msk [vmem:[#allocation2 + $0xc] sm:$0xf] %vm2060, %v2007
      %2065 = vst.msk [vmem:[#allocation2 + $0x10] sm:$0xf] %vm2060, %v2009
      %2066 = vst.msk [vmem:[#allocation2 + $0x14] sm:$0xf] %vm2060, %v2011
      %2067 = vst.msk [vmem:[#allocation2 + $0x18] sm:$0xf] %vm2060, %v2013
      %2068 = vst.msk [vmem:[#allocation2 + $0x1c] sm:$0xf] %vm2060, %v2015
      %2069 = vst.msk [vmem:[#allocation2 + $0x20] sm:$0xf] %vm2060, %v2017
      %2070 = vst.msk [vmem:[#allocation2 + $0x24] sm:$0xf] %vm2060, %v2019
      %2071 = vst.msk [vmem:[#allocation2 + $0x28] sm:$0xf] %vm2060, %v2021
      %2072 = vst.msk [vmem:[#allocation2 + $0x2c] sm:$0xf] %vm2060, %v2023
      %2073 = vst.msk [vmem:[#allocation2 + $0x30] sm:$0xf] %vm2060, %v2025
      %2074 = vst.msk [vmem:[#allocation2 + $0x34] sm:$0xf] %vm2060, %v2027
      %2075 = vst.msk [vmem:[#allocation2 + $0x38] sm:$0xf] %vm2060, %v2029
      %2076 = vst.msk [vmem:[#allocation2 + $0x3c] sm:$0xf] %vm2060, %v2031
      %2077 = vst.msk [vmem:[#allocation2 + $0x40] sm:$0xf] %vm2060, %v2033
      %2078 = vst.msk [vmem:[#allocation2 + $0x44] sm:$0xf] %vm2060, %v2035
      %2079 = vst.msk [vmem:[#allocation2 + $0x48] sm:$0xf] %vm2060, %v2037
      %2080 = vst.msk [vmem:[#allocation2 + $0x4c] sm:$0xf] %vm2060, %v2039
      %v2081 = vld [vmem:[%s1608] sm:$0xe]
      %v2082 = vld [vmem:[%s1608 + $0x4] sm:$0xf]
      %v2083 = vld [vmem:[%s1608 + $0x8] sm:$0x1]
      %v2084 = vld [vmem:[%s1608 + $0xc] sm:$0xe]
      %v2085 = vld [vmem:[%s1608 + $0x10] sm:$0xf]
      %v2086 = vld [vmem:[%s1608 + $0x14] sm:$0x1]
      %v2087 = vld [vmem:[%s1608 + $0x18] sm:$0xe]
      %v2088 = vld [vmem:[%s1608 + $0x1c] sm:$0xf]
      %v2089 = vld [vmem:[%s1608 + $0x20] sm:$0x1]
      %v2090 = vld [vmem:[%s1608 + $0x24] sm:$0xe]
      %v2091 = vld [vmem:[%s1608 + $0x28] sm:$0xf]
      %v2092 = vld [vmem:[%s1608 + $0x2c] sm:$0x1]
      %v2093 = vld [vmem:[%s1608 + $0x30] sm:$0xe]
      %v2094 = vld [vmem:[%s1608 + $0x34] sm:$0xf]
      %v2095 = vld [vmem:[%s1608 + $0x38] sm:$0x1]
      %v2096 = vld [vmem:[%s1608 + $0x3c] sm:$0xe]
      %v2097 = vld [vmem:[%s1608 + $0x40] sm:$0xf]
      %v2098 = vld [vmem:[%s1608 + $0x44] sm:$0x1]
      %v2099 = vld [vmem:[%s1608 + $0x48] sm:$0xe]
      %v2100 = vld [vmem:[%s1608 + $0x4c] sm:$0xf]
      %v2101 = vld [vmem:[%s1608 + $0x50] sm:$0x1]
      %v2102 = vld [vmem:[%s1608 + $0x54] sm:$0xe]
      %v2103 = vld [vmem:[%s1608 + $0x58] sm:$0xf]
      %v2104 = vld [vmem:[%s1608 + $0x5c] sm:$0x1]
      %v2105 = vld [vmem:[%s1608 + $0x60] sm:$0xe]
      %v2106 = vld [vmem:[%s1608 + $0x64] sm:$0xf]
      %v2107 = vld [vmem:[%s1608 + $0x68] sm:$0x1]
      %v2108 = vld [vmem:[%s1608 + $0x6c] sm:$0xe]
      %v2109 = vld [vmem:[%s1608 + $0x70] sm:$0xf]
      %v2110 = vld [vmem:[%s1608 + $0x74] sm:$0x1]
      %v2141 = vrot.slane %v2081, 5
      %v2142 = vrot.slane %v2141, 4
      %v2143 = vrot.slane %v2082, 5
      %v2144 = vsel %vm766, %v2142, %v2143
      %v2145 = vrot.slane %v2143, 4
      %v2146 = vrot.slane %v2083, 5
      %v2147 = vsel %vm766, %v2145, %v2146
      %v2148 = vrot.slane %v2084, 5
      %v2149 = vrot.slane %v2148, 4
      %v2150 = vrot.slane %v2085, 5
      %v2151 = vsel %vm766, %v2149, %v2150
      %v2152 = vrot.slane %v2150, 4
      %v2153 = vrot.slane %v2086, 5
      %v2154 = vsel %vm766, %v2152, %v2153
      %v2155 = vrot.slane %v2087, 5
      %v2156 = vrot.slane %v2155, 4
      %v2157 = vrot.slane %v2088, 5
      %v2158 = vsel %vm766, %v2156, %v2157
      %v2159 = vrot.slane %v2157, 4
      %v2160 = vrot.slane %v2089, 5
      %v2161 = vsel %vm766, %v2159, %v2160
      %v2162 = vrot.slane %v2090, 5
      %v2163 = vrot.slane %v2162, 4
      %v2164 = vrot.slane %v2091, 5
      %v2165 = vsel %vm766, %v2163, %v2164
      %v2166 = vrot.slane %v2164, 4
      %v2167 = vrot.slane %v2092, 5
      %v2168 = vsel %vm766, %v2166, %v2167
      %v2169 = vrot.slane %v2093, 5
      %v2170 = vrot.slane %v2169, 4
      %v2171 = vrot.slane %v2094, 5
      %v2172 = vsel %vm766, %v2170, %v2171
      %v2173 = vrot.slane %v2171, 4
      %v2174 = vrot.slane %v2095, 5
      %v2175 = vsel %vm766, %v2173, %v2174
      %v2176 = vrot.slane %v2096, 5
      %v2177 = vrot.slane %v2176, 4
      %v2178 = vrot.slane %v2097, 5
      %v2179 = vsel %vm766, %v2177, %v2178
      %v2180 = vrot.slane %v2178, 4
      %v2181 = vrot.slane %v2098, 5
      %v2182 = vsel %vm766, %v2180, %v2181
      %v2183 = vrot.slane %v2099, 5
      %v2184 = vrot.slane %v2183, 4
      %v2185 = vrot.slane %v2100, 5
      %v2186 = vsel %vm766, %v2184, %v2185
      %v2187 = vrot.slane %v2185, 4
      %v2188 = vrot.slane %v2101, 5
      %v2189 = vsel %vm766, %v2187, %v2188
      %v2190 = vrot.slane %v2102, 5
      %v2191 = vrot.slane %v2190, 4
      %v2192 = vrot.slane %v2103, 5
      %v2193 = vsel %vm766, %v2191, %v2192
      %v2194 = vrot.slane %v2192, 4
      %v2195 = vrot.slane %v2104, 5
      %v2196 = vsel %vm766, %v2194, %v2195
      %v2197 = vrot.slane %v2105, 5
      %v2198 = vrot.slane %v2197, 4
      %v2199 = vrot.slane %v2106, 5
      %v2200 = vsel %vm766, %v2198, %v2199
      %v2201 = vrot.slane %v2199, 4
      %v2202 = vrot.slane %v2107, 5
      %v2203 = vsel %vm766, %v2201, %v2202
      %v2204 = vrot.slane %v2108, 5
      %v2205 = vrot.slane %v2204, 4
      %v2206 = vrot.slane %v2109, 5
      %v2207 = vsel %vm766, %v2205, %v2206
      %v2208 = vrot.slane %v2206, 4
      %v2209 = vrot.slane %v2110, 5
      %v2210 = vsel %vm766, %v2208, %v2209
      %2211 = vrot.lane.b32.xlu0 %v2144, 64
      %v2212 = vpop.permute.xlu0 %2211
      %2213 = vrot.lane.b32.xlu0 %v2147, 64
      %v2214 = vpop.permute.xlu0 %2213
      %2215 = vrot.lane.b32.xlu0 %v2151, 64
      %v2216 = vpop.permute.xlu0 %2215
      %2217 = vrot.lane.b32.xlu0 %v2154, 64
      %v2218 = vpop.permute.xlu0 %2217
      %2219 = vrot.lane.b32.xlu0 %v2158, 64
      %v2220 = vpop.permute.xlu0 %2219
      %2221 = vrot.lane.b32.xlu0 %v2161, 64
      %v2222 = vpop.permute.xlu0 %2221
      %2223 = vrot.lane.b32.xlu0 %v2165, 64
      %v2224 = vpop.permute.xlu0 %2223
      %2225 = vrot.lane.b32.xlu0 %v2168, 64
      %v2226 = vpop.permute.xlu0 %2225
      %2227 = vrot.lane.b32.xlu0 %v2172, 64
      %v2228 = vpop.permute.xlu0 %2227
      %2229 = vrot.lane.b32.xlu0 %v2175, 64
      %v2230 = vpop.permute.xlu0 %2229
      %2231 = vrot.lane.b32.xlu0 %v2179, 64
      %v2232 = vpop.permute.xlu0 %2231
      %2233 = vrot.lane.b32.xlu0 %v2182, 64
      %v2234 = vpop.permute.xlu0 %2233
      %2235 = vrot.lane.b32.xlu0 %v2186, 64
      %v2236 = vpop.permute.xlu0 %2235
      %2237 = vrot.lane.b32.xlu0 %v2189, 64
      %v2238 = vpop.permute.xlu0 %2237
      %2239 = vrot.lane.b32.xlu0 %v2193, 64
      %v2240 = vpop.permute.xlu0 %2239
      %2241 = vrot.lane.b32.xlu0 %v2196, 64
      %v2242 = vpop.permute.xlu0 %2241
      %2243 = vrot.lane.b32.xlu0 %v2200, 64
      %v2244 = vpop.permute.xlu0 %2243
      %2245 = vrot.lane.b32.xlu0 %v2203, 64
      %v2246 = vpop.permute.xlu0 %2245
      %2247 = vrot.lane.b32.xlu0 %v2207, 64
      %v2248 = vpop.permute.xlu0 %2247
      %2249 = vrot.lane.b32.xlu0 %v2210, 64
      %v2250 = vpop.permute.xlu0 %2249
      %vm2271 = vcmask 585216
      %2272 = vst.msk [vmem:[#allocation2] sm:$0xf] %vm2271, %v2212
      %2273 = vst.msk [vmem:[#allocation2 + $0x4] sm:$0xf] %vm2271, %v2214
      %2274 = vst.msk [vmem:[#allocation2 + $0x8] sm:$0xf] %vm2271, %v2216
      %2275 = vst.msk [vmem:[#allocation2 + $0xc] sm:$0xf] %vm2271, %v2218
      %2276 = vst.msk [vmem:[#allocation2 + $0x10] sm:$0xf] %vm2271, %v2220
      %2277 = vst.msk [vmem:[#allocation2 + $0x14] sm:$0xf] %vm2271, %v2222
      %2278 = vst.msk [vmem:[#allocation2 + $0x18] sm:$0xf] %vm2271, %v2224
      %2279 = vst.msk [vmem:[#allocation2 + $0x1c] sm:$0xf] %vm2271, %v2226
      %2280 = vst.msk [vmem:[#allocation2 + $0x20] sm:$0xf] %vm2271, %v2228
      %2281 = vst.msk [vmem:[#allocation2 + $0x24] sm:$0xf] %vm2271, %v2230
      %2282 = vst.msk [vmem:[#allocation2 + $0x28] sm:$0xf] %vm2271, %v2232
      %2283 = vst.msk [vmem:[#allocation2 + $0x2c] sm:$0xf] %vm2271, %v2234
      %2284 = vst.msk [vmem:[#allocation2 + $0x30] sm:$0xf] %vm2271, %v2236
      %2285 = vst.msk [vmem:[#allocation2 + $0x34] sm:$0xf] %vm2271, %v2238
      %2286 = vst.msk [vmem:[#allocation2 + $0x38] sm:$0xf] %vm2271, %v2240
      %2287 = vst.msk [vmem:[#allocation2 + $0x3c] sm:$0xf] %vm2271, %v2242
      %2288 = vst.msk [vmem:[#allocation2 + $0x40] sm:$0xf] %vm2271, %v2244
      %2289 = vst.msk [vmem:[#allocation2 + $0x44] sm:$0xf] %vm2271, %v2246
      %2290 = vst.msk [vmem:[#allocation2 + $0x48] sm:$0xf] %vm2271, %v2248
      %2291 = vst.msk [vmem:[#allocation2 + $0x4c] sm:$0xf] %vm2271, %v2250
      %v2292 = vld [vmem:[#allocation2] sm:$0xf]
      %v2293 = vld [vmem:[#allocation2 + $0x4] sm:$0xf]
      %v2294 = vld [vmem:[#allocation2 + $0x8] sm:$0xf]
      %v2295 = vld [vmem:[#allocation2 + $0xc] sm:$0xf]
      %v2296 = vld [vmem:[#allocation2 + $0x10] sm:$0xf]
      %v2297 = vld [vmem:[#allocation2 + $0x14] sm:$0xf]
      %v2298 = vld [vmem:[#allocation2 + $0x18] sm:$0xf]
      %v2299 = vld [vmem:[#allocation2 + $0x1c] sm:$0xf]
      %v2300 = vld [vmem:[#allocation2 + $0x20] sm:$0xf]
      %v2301 = vld [vmem:[#allocation2 + $0x24] sm:$0xf]
      %v2302 = vld [vmem:[#allocation2 + $0x28] sm:$0xf]
      %v2303 = vld [vmem:[#allocation2 + $0x2c] sm:$0xf]
      %v2304 = vld [vmem:[#allocation2 + $0x30] sm:$0xf]
      %v2305 = vld [vmem:[#allocation2 + $0x34] sm:$0xf]
      %v2306 = vld [vmem:[#allocation2 + $0x38] sm:$0xf]
      %v2307 = vld [vmem:[#allocation2 + $0x3c] sm:$0xf]
      %v2308 = vld [vmem:[#allocation2 + $0x40] sm:$0xf]
      %v2309 = vld [vmem:[#allocation2 + $0x44] sm:$0xf]
      %v2310 = vld [vmem:[#allocation2 + $0x48] sm:$0xf]
      %v2311 = vld [vmem:[#allocation2 + $0x4c] sm:$0xf]
      %v2312 = vld [vmem:[%s1] sm:$0xf]
      %v2313 = vld [vmem:[%s1 + $0x4] sm:$0xf]
      %v2314 = vld [vmem:[%s1 + $0x8] sm:$0xf]
      %v2315 = vld [vmem:[%s1 + $0xc] sm:$0xf]
      %v2316 = vld [vmem:[%s1 + $0x10] sm:$0xf]
      %v2317 = vld [vmem:[%s1 + $0x14] sm:$0xf]
      %v2318 = vld [vmem:[%s1 + $0x18] sm:$0xf]
      %v2319 = vld [vmem:[%s1 + $0x1c] sm:$0xf]
      %v2320 = vld [vmem:[%s1 + $0x20] sm:$0xf]
      %v2341 = vunpack.c.l.b16 %v2292
      %v2342 = vunpack.c.l.b16 %v2293
      %v2343 = vunpack.c.l.b16 %v2294
      %v2344 = vunpack.c.l.b16 %v2295
      %v2345 = vunpack.c.l.b16 %v2296
      %v2346 = vunpack.c.l.b16 %v2297
      %v2347 = vunpack.c.l.b16 %v2298
      %v2348 = vunpack.c.l.b16 %v2299
      %v2349 = vunpack.c.l.b16 %v2300
      %v2350 = vunpack.c.l.b16 %v2301
      %v2351 = vunpack.c.l.b16 %v2302
      %v2352 = vunpack.c.l.b16 %v2303
      %v2353 = vunpack.c.l.b16 %v2304
      %v2354 = vunpack.c.l.b16 %v2305
      %v2355 = vunpack.c.l.b16 %v2306
      %v2356 = vunpack.c.l.b16 %v2307
      %v2357 = vunpack.c.l.b16 %v2308
      %v2358 = vunpack.c.l.b16 %v2309
      %v2359 = vunpack.c.l.b16 %v2310
      %v2360 = vunpack.c.l.b16 %v2311
      %v2361 = vpack.c.b16 %v2342, %v2341
      %v2362 = vpack.c.b16 %v2344, %v2343
      %v2363 = vpack.c.b16 %v2346, %v2345
      %v2364 = vpack.c.b16 %v2348, %v2347
      %v2365 = vpack.c.b16 %v2350, %v2349
      %v2366 = vpack.c.b16 %v2352, %v2351
      %v2367 = vpack.c.b16 %v2354, %v2353
      %v2368 = vpack.c.b16 %v2356, %v2355
      %v2369 = vpack.c.b16 %v2358, %v2357
      %v2370 = vpack.c.b16 %v2360, %v2359
      %v2380 = vunpack.c.l.b16 %v2312
      %v2381 = vunpack.c.l.b16 %v2313
      %v2382 = vunpack.c.l.b16 %v2314
      %v2383 = vunpack.c.l.b16 %v2315
      %v2384 = vunpack.c.l.b16 %v2316
      %v2385 = vunpack.c.l.b16 %v2317
      %v2386 = vunpack.c.l.b16 %v2318
      %v2387 = vunpack.c.l.b16 %v2319
      %v2388 = vunpack.c.l.b16 %v2320
      %v2389 = vpack.c.b16 %v2381, %v2380
      %v2390 = vpack.c.b16 %v2383, %v2382
      %v2391 = vpack.c.b16 %v2385, %v2384
      %v2392 = vpack.c.b16 %v2387, %v2386
      %v2393 = vpack.c.b16 %v2388, %v2388
      %vm2398 = vcmask 588800
      %v2400 = vsel %vm2398, %v2361, 0
      %v2403 = vsel %vm2398, %v2362, 0
      %v2406 = vsel %vm2398, %v2363, 0
      %v2409 = vsel %vm2398, %v2364, 0
      %v2412 = vsel %vm2398, %v2365, 0
      %v2415 = vsel %vm2398, %v2366, 0
      %v2418 = vsel %vm2398, %v2367, 0
      %v2421 = vsel %vm2398, %v2368, 0
      %v2424 = vsel %vm2398, %v2369, 0
      %v2427 = vsel %vm2398, %v2370, 0
      %vm2429 = vcmask 1043456
      %v2431 = vsel %vm2429, %v2393, 0
      %2433 = vmatprep.subr.bf16.mxu0 0
      %2434 = vmatpush1.bf16.msra.mxu0 0
      %2435 = vmatprep.subr.bf16.mxu0 0
      %2436 = vmatpush1.bf16.msra.mxu0 0
      %2437 = vmatprep.subr.bf16.mxu0 0
      %2438 = vmatpush1.bf16.msra.mxu0 0
      %2439 = vmatprep.subr.bf16.mxu0 0
      %2440 = vmatpush1.bf16.msra.mxu0 %v2431
      %2441 = vmatprep.subr.bf16.mxu0 0
      %2442 = vmatpush1.bf16.msra.mxu0 %v2392
      %2443 = vmatprep.subr.bf16.mxu0 0
      %2444 = vmatpush1.bf16.msra.mxu0 %v2391
      %2445 = vmatprep.subr.bf16.mxu0 0
      %2446 = vmatpush1.bf16.msra.mxu0 %v2390
      %2447 = vmatprep.subr.bf16.mxu0 0
      %2448 = vmatpush1.bf16.msra.mxu0 %v2389
      %2449 = vmatprep.subr.bf16.mxu0 0
      %2450 = vmatpush2.bf16.msra.mxu0 0
      %2451 = vmatprep.subr.bf16.mxu0 0
      %2452 = vmatpush2.bf16.msra.mxu0 0
      %2453 = vmatprep.subr.bf16.mxu0 0
      %2454 = vmatpush2.bf16.msra.mxu0 0
      %2455 = vmatprep.subr.bf16.mxu0 0
      %2456 = vmatpush2.bf16.msra.mxu0 0
      %2457 = vmatprep.subr.bf16.mxu0 0
      %2458 = vmatpush2.bf16.msra.mxu0 0
      %2459 = vmatprep.subr.bf16.mxu0 0
      %2460 = vmatpush2.bf16.msra.mxu0 0
      %2461 = vmatprep.subr.bf16.mxu0 0
      %2462 = vmatpush2.bf16.msra.mxu0 0
      %2463 = vmatprep.subr.bf16.mxu0 0
      %2464 = vmatpush2.bf16.msra.mxu0 0
      %2465 = vmatprep.mubr.bf16.mxu0 0
      %2466 = vmatmul.mubr.bf16.gmra.mxu0 %v2400
      %v2467 = vpop.f32.mrf.mxu0
      %v2468 = vadd.f32 0.0, %v2467
      %v2469 = vpop.f32.mrf.mxu0
      %v2470 = vpop.f32.mrf.mxu0
      %v2471 = vadd.f32 0.0, %v2470
      %v2472 = vpop.f32.mrf.mxu0
      %2473 = vmatprep.mubr.bf16.mxu0 0
      %2474 = vmatmul.mubr.bf16.gmra.mxu0 %v2403
      %v2475 = vpop.f32.mrf.mxu0
      %v2476 = vadd.f32 0.0, %v2475
      %v2477 = vpop.f32.mrf.mxu0
      %v2478 = vpop.f32.mrf.mxu0
      %v2479 = vadd.f32 0.0, %v2478
      %v2480 = vpop.f32.mrf.mxu0
      %2481 = vmatprep.mubr.bf16.mxu0 0
      %2482 = vmatmul.mubr.bf16.gmra.mxu0 %v2406
      %v2483 = vpop.f32.mrf.mxu0
      %v2484 = vadd.f32 0.0, %v2483
      %v2485 = vpop.f32.mrf.mxu0
      %v2486 = vpop.f32.mrf.mxu0
      %v2487 = vadd.f32 0.0, %v2486
      %v2488 = vpop.f32.mrf.mxu0
      %2489 = vmatprep.mubr.bf16.mxu0 0
      %2490 = vmatmul.mubr.bf16.gmra.mxu0 %v2409
      %v2491 = vpop.f32.mrf.mxu0
      %v2492 = vadd.f32 0.0, %v2491
      %v2493 = vpop.f32.mrf.mxu0
      %v2494 = vpop.f32.mrf.mxu0
      %v2495 = vadd.f32 0.0, %v2494
      %v2496 = vpop.f32.mrf.mxu0
      %2497 = vmatprep.mubr.bf16.mxu0 0
      %2498 = vmatmul.mubr.bf16.gmra.mxu0 %v2412
      %v2499 = vpop.f32.mrf.mxu0
      %v2500 = vadd.f32 0.0, %v2499
      %v2501 = vpop.f32.mrf.mxu0
      %v2502 = vpop.f32.mrf.mxu0
      %v2503 = vadd.f32 0.0, %v2502
      %v2504 = vpop.f32.mrf.mxu0
      %2505 = vmatprep.mubr.bf16.mxu0 0
      %2506 = vmatmul.mubr.bf16.gmra.mxu0 %v2415
      %v2507 = vpop.f32.mrf.mxu0
      %v2508 = vadd.f32 0.0, %v2507
      %v2509 = vpop.f32.mrf.mxu0
      %v2510 = vpop.f32.mrf.mxu0
      %v2511 = vadd.f32 0.0, %v2510
      %v2512 = vpop.f32.mrf.mxu0
      %2513 = vmatprep.mubr.bf16.mxu0 0
      %2514 = vmatmul.mubr.bf16.gmra.mxu0 %v2418
      %v2515 = vpop.f32.mrf.mxu0
      %v2516 = vadd.f32 0.0, %v2515
      %v2517 = vpop.f32.mrf.mxu0
      %v2518 = vpop.f32.mrf.mxu0
      %v2519 = vadd.f32 0.0, %v2518
      %v2520 = vpop.f32.mrf.mxu0
      %2521 = vmatprep.mubr.bf16.mxu0 0
      %2522 = vmatmul.mubr.bf16.gmra.mxu0 %v2421
      %v2523 = vpop.f32.mrf.mxu0
      %v2524 = vadd.f32 0.0, %v2523
      %v2525 = vpop.f32.mrf.mxu0
      %v2526 = vpop.f32.mrf.mxu0
      %v2527 = vadd.f32 0.0, %v2526
      %v2528 = vpop.f32.mrf.mxu0
      %2529 = vmatprep.mubr.bf16.mxu0 0
      %2530 = vmatmul.mubr.bf16.gmra.mxu0 %v2424
      %v2531 = vpop.f32.mrf.mxu0
      %v2532 = vadd.f32 0.0, %v2531
      %v2533 = vpop.f32.mrf.mxu0
      %v2534 = vpop.f32.mrf.mxu0
      %v2535 = vadd.f32 0.0, %v2534
      %v2536 = vpop.f32.mrf.mxu0
      %2537 = vmatprep.mubr.bf16.mxu0 0
      %2538 = vmatmul.mubr.bf16.gmra.mxu0 %v2427
      %v2539 = vpop.f32.mrf.mxu0
      %v2540 = vadd.f32 0.0, %v2539
      %v2541 = vpop.f32.mrf.mxu0
      %v2542 = vpop.f32.mrf.mxu0
      %v2543 = vadd.f32 0.0, %v2542
      %v2544 = vpop.f32.mrf.mxu0
      %2545 = vdwg.mxu0
      %v2546 = vld [vmem:[%s2] sm:$0x1]
      %v2548 = vlaneseq
      %v2549 = vshrl.u32 %v2548, 7
      %v2550 = vsub.s32 0, %v2549
      %v2551 = vrot.slane %v2546, %v2550
      %v2553 = vmul.f32 %v2468, %v2551
      %v2554 = vmul.f32 %v2471, %v2551
      %v2555 = vmul.f32 %v2476, %v2551
      %v2556 = vmul.f32 %v2479, %v2551
      %v2557 = vmul.f32 %v2484, %v2551
      %v2558 = vmul.f32 %v2487, %v2551
      %v2559 = vmul.f32 %v2492, %v2551
      %v2560 = vmul.f32 %v2495, %v2551
      %v2561 = vmul.f32 %v2500, %v2551
      %v2562 = vmul.f32 %v2503, %v2551
      %v2563 = vmul.f32 %v2508, %v2551
      %v2564 = vmul.f32 %v2511, %v2551
      %v2565 = vmul.f32 %v2516, %v2551
      %v2566 = vmul.f32 %v2519, %v2551
      %v2567 = vmul.f32 %v2524, %v2551
      %v2568 = vmul.f32 %v2527, %v2551
      %v2569 = vmul.f32 %v2532, %v2551
      %v2570 = vmul.f32 %v2535, %v2551
      %v2571 = vmul.f32 %v2540, %v2551
      %v2572 = vmul.f32 %v2543, %v2551
      %v2573 = vld [vmem:[%s3] sm:$0x1]
      %v2575 = vlaneseq
      %v2576 = vshrl.u32 %v2575, 7
      %v2577 = vsub.s32 0, %v2576
      %v2578 = vrot.slane %v2573, %v2577
      %v2580 = vadd.f32 %v2553, %v2578
      %v2581 = vadd.f32 %v2554, %v2578
      %v2582 = vadd.f32 %v2555, %v2578
      %v2583 = vadd.f32 %v2556, %v2578
      %v2584 = vadd.f32 %v2557, %v2578
      %v2585 = vadd.f32 %v2558, %v2578
      %v2586 = vadd.f32 %v2559, %v2578
      %v2587 = vadd.f32 %v2560, %v2578
      %v2588 = vadd.f32 %v2561, %v2578
      %v2589 = vadd.f32 %v2562, %v2578
      %v2590 = vadd.f32 %v2563, %v2578
      %v2591 = vadd.f32 %v2564, %v2578
      %v2592 = vadd.f32 %v2565, %v2578
      %v2593 = vadd.f32 %v2566, %v2578
      %v2594 = vadd.f32 %v2567, %v2578
      %v2595 = vadd.f32 %v2568, %v2578
      %v2596 = vadd.f32 %v2569, %v2578
      %v2597 = vadd.f32 %v2570, %v2578
      %v2598 = vadd.f32 %v2571, %v2578
      %v2599 = vadd.f32 %v2572, %v2578
      %v2600 = vmax.f32 %v2580, 0.0
      %v2601 = vmax.f32 %v2581, 0.0
      %v2602 = vmax.f32 %v2582, 0.0
      %v2603 = vmax.f32 %v2583, 0.0
      %v2604 = vmax.f32 %v2584, 0.0
      %v2605 = vmax.f32 %v2585, 0.0
      %v2606 = vmax.f32 %v2586, 0.0
      %v2607 = vmax.f32 %v2587, 0.0
      %v2608 = vmax.f32 %v2588, 0.0
      %v2609 = vmax.f32 %v2589, 0.0
      %v2610 = vmax.f32 %v2590, 0.0
      %v2611 = vmax.f32 %v2591, 0.0
      %v2612 = vmax.f32 %v2592, 0.0
      %v2613 = vmax.f32 %v2593, 0.0
      %v2614 = vmax.f32 %v2594, 0.0
      %v2615 = vmax.f32 %v2595, 0.0
      %v2616 = vmax.f32 %v2596, 0.0
      %v2617 = vmax.f32 %v2597, 0.0
      %v2618 = vmax.f32 %v2598, 0.0
      %v2619 = vmax.f32 %v2599, 0.0
      %vm2620 = vcmask 57344
      %vm2621 = vsmask.f32 256
      %vm2622 = vmand %vm2620, %vm2621
      %v2623 = vld [vmem:[#allocation3] sm:$0x1]
      %v2624 = vsel %vm2622, 0, %v2623
      %2625 = vst [vmem:[#allocation3] sm:$0x1] %v2624
      %v2626 = vld [vmem:[#allocation3 + $0xc] sm:$0x1]
      %v2627 = vsel %vm2622, 0, %v2626
      %2628 = vst [vmem:[#allocation3 + $0xc] sm:$0x1] %v2627
      %v2629 = vld [vmem:[#allocation3 + $0x18] sm:$0x1]
      %v2630 = vsel %vm2622, 0, %v2629
      %2631 = vst [vmem:[#allocation3 + $0x18] sm:$0x1] %v2630
      %v2632 = vld [vmem:[#allocation3 + $0x24] sm:$0x1]
      %v2633 = vsel %vm2622, 0, %v2632
      %2634 = vst [vmem:[#allocation3 + $0x24] sm:$0x1] %v2633
      %v2635 = vld [vmem:[#allocation3 + $0x30] sm:$0x1]
      %v2636 = vsel %vm2622, 0, %v2635
      %2637 = vst [vmem:[#allocation3 + $0x30] sm:$0x1] %v2636
      %v2638 = vld [vmem:[#allocation3 + $0x3c] sm:$0x1]
      %v2639 = vsel %vm2622, 0, %v2638
      %2640 = vst [vmem:[#allocation3 + $0x3c] sm:$0x1] %v2639
      %v2641 = vld [vmem:[#allocation3 + $0x48] sm:$0x1]
      %v2642 = vsel %vm2622, 0, %v2641
      %2643 = vst [vmem:[#allocation3 + $0x48] sm:$0x1] %v2642
      %v2644 = vld [vmem:[#allocation3 + $0x54] sm:$0x1]
      %v2645 = vsel %vm2622, 0, %v2644
      %2646 = vst [vmem:[#allocation3 + $0x54] sm:$0x1] %v2645
      %v2647 = vld [vmem:[#allocation3 + $0x60] sm:$0x1]
      %v2648 = vsel %vm2622, 0, %v2647
      %2649 = vst [vmem:[#allocation3 + $0x60] sm:$0x1] %v2648
      %v2650 = vld [vmem:[#allocation3 + $0x6c] sm:$0x1]
      %v2651 = vsel %vm2622, 0, %v2650
      %2652 = vst [vmem:[#allocation3 + $0x6c] sm:$0x1] %v2651
      %vm2653 = vsmask.f32 7938
      %vm2654 = vmand %vm2620, %vm2653
      %v2655 = vld [vmem:[#allocation3 + $0x8] sm:$0x1]
      %v2656 = vsel %vm2654, 0, %v2655
      %2657 = vst [vmem:[#allocation3 + $0x8] sm:$0x1] %v2656
      %v2658 = vld [vmem:[#allocation3 + $0x14] sm:$0x1]
      %v2659 = vsel %vm2654, 0, %v2658
      %2660 = vst [vmem:[#allocation3 + $0x14] sm:$0x1] %v2659
      %v2661 = vld [vmem:[#allocation3 + $0x20] sm:$0x1]
      %v2662 = vsel %vm2654, 0, %v2661
      %2663 = vst [vmem:[#allocation3 + $0x20] sm:$0x1] %v2662
      %v2664 = vld [vmem:[#allocation3 + $0x2c] sm:$0x1]
      %v2665 = vsel %vm2654, 0, %v2664
      %2666 = vst [vmem:[#allocation3 + $0x2c] sm:$0x1] %v2665
      %v2667 = vld [vmem:[#allocation3 + $0x38] sm:$0x1]
      %v2668 = vsel %vm2654, 0, %v2667
      %2669 = vst [vmem:[#allocation3 + $0x38] sm:$0x1] %v2668
      %v2670 = vld [vmem:[#allocation3 + $0x44] sm:$0x1]
      %v2671 = vsel %vm2654, 0, %v2670
      %2672 = vst [vmem:[#allocation3 + $0x44] sm:$0x1] %v2671
      %v2673 = vld [vmem:[#allocation3 + $0x50] sm:$0x1]
      %v2674 = vsel %vm2654, 0, %v2673
      %2675 = vst [vmem:[#allocation3 + $0x50] sm:$0x1] %v2674
      %v2676 = vld [vmem:[#allocation3 + $0x5c] sm:$0x1]
      %v2677 = vsel %vm2654, 0, %v2676
      %2678 = vst [vmem:[#allocation3 + $0x5c] sm:$0x1] %v2677
      %v2679 = vld [vmem:[#allocation3 + $0x68] sm:$0x1]
      %v2680 = vsel %vm2654, 0, %v2679
      %2681 = vst [vmem:[#allocation3 + $0x68] sm:$0x1] %v2680
      %v2682 = vld [vmem:[#allocation3 + $0x74] sm:$0x1]
      %v2683 = vsel %vm2654, 0, %v2682
      %2684 = vst [vmem:[#allocation3 + $0x74] sm:$0x1] %v2683
      %v2685 = vpack.c.bf16 %v2601, %v2600
      %v2686 = vpack.c.bf16 %v2603, %v2602
      %v2687 = vpack.c.bf16 %v2605, %v2604
      %v2688 = vpack.c.bf16 %v2607, %v2606
      %v2689 = vpack.c.bf16 %v2609, %v2608
      %v2690 = vpack.c.bf16 %v2611, %v2610
      %v2691 = vpack.c.bf16 %v2613, %v2612
      %v2692 = vpack.c.bf16 %v2615, %v2614
      %v2693 = vpack.c.bf16 %v2617, %v2616
      %v2694 = vpack.c.bf16 %v2619, %v2618
      %v2705 = vunpack.c.l.b16 %v2685
      %v2706 = vunpack.c.h.b16 %v2685
      %v2707 = vunpack.c.l.b16 %v2686
      %v2708 = vunpack.c.h.b16 %v2686
      %v2709 = vunpack.c.l.b16 %v2687
      %v2710 = vunpack.c.h.b16 %v2687
      %v2711 = vunpack.c.l.b16 %v2688
      %v2712 = vunpack.c.h.b16 %v2688
      %v2713 = vunpack.c.l.b16 %v2689
      %v2714 = vunpack.c.h.b16 %v2689
      %v2715 = vunpack.c.l.b16 %v2690
      %v2716 = vunpack.c.h.b16 %v2690
      %v2717 = vunpack.c.l.b16 %v2691
      %v2718 = vunpack.c.h.b16 %v2691
      %v2719 = vunpack.c.l.b16 %v2692
      %v2720 = vunpack.c.h.b16 %v2692
      %v2721 = vunpack.c.l.b16 %v2693
      %v2722 = vunpack.c.h.b16 %v2693
      %v2723 = vunpack.c.l.b16 %v2694
      %v2724 = vunpack.c.h.b16 %v2694
      %v2725 = vpack.c.b16 %v2705, %v2705
      %v2726 = vpack.c.b16 %v2706, %v2706
      %v2727 = vpack.c.b16 %v2707, %v2707
      %v2728 = vpack.c.b16 %v2708, %v2708
      %v2729 = vpack.c.b16 %v2709, %v2709
      %v2730 = vpack.c.b16 %v2710, %v2710
      %v2731 = vpack.c.b16 %v2711, %v2711
      %v2732 = vpack.c.b16 %v2712, %v2712
      %v2733 = vpack.c.b16 %v2713, %v2713
      %v2734 = vpack.c.b16 %v2714, %v2714
      %v2735 = vpack.c.b16 %v2715, %v2715
      %v2736 = vpack.c.b16 %v2716, %v2716
      %v2737 = vpack.c.b16 %v2717, %v2717
      %v2738 = vpack.c.b16 %v2718, %v2718
      %v2739 = vpack.c.b16 %v2719, %v2719
      %v2740 = vpack.c.b16 %v2720, %v2720
      %v2741 = vpack.c.b16 %v2721, %v2721
      %v2742 = vpack.c.b16 %v2722, %v2722
      %v2743 = vpack.c.b16 %v2723, %v2723
      %v2744 = vpack.c.b16 %v2724, %v2724
      %vm2745 = vsmask.f32 4368
      %vm2746 = vmor %vm2621, %vm2745
      %v2748 = vshrl.u32 %v2725, 16
      %v2750 = vrot.slane %v2748, 7
      %v2751 = vshll.u32 %v2725, 16
      %v2753 = vor.u32 %v2750, %v2751
      %v2754 = vrot.slane %v2750, 4
      %v2756 = vshrl.u32 %v2726, 16
      %v2758 = vrot.slane %v2756, 7
      %v2759 = vshll.u32 %v2726, 16
      %v2761 = vor.u32 %v2758, %v2759
      %v2762 = vsel %vm2746, %v2754, %v2761
      %v2763 = vrot.slane %v2758, 4
      %v2765 = vshrl.u32 %v2727, 16
      %v2767 = vrot.slane %v2765, 7
      %v2768 = vshll.u32 %v2727, 16
      %v2770 = vor.u32 %v2767, %v2768
      %v2771 = vrot.slane %v2767, 4
      %v2773 = vshrl.u32 %v2728, 16
      %v2775 = vrot.slane %v2773, 7
      %v2776 = vshll.u32 %v2728, 16
      %v2778 = vor.u32 %v2775, %v2776
      %v2779 = vsel %vm2746, %v2771, %v2778
      %v2780 = vrot.slane %v2775, 4
      %v2782 = vshrl.u32 %v2729, 16
      %v2784 = vrot.slane %v2782, 7
      %v2785 = vshll.u32 %v2729, 16
      %v2787 = vor.u32 %v2784, %v2785
      %v2788 = vrot.slane %v2784, 4
      %v2790 = vshrl.u32 %v2730, 16
      %v2792 = vrot.slane %v2790, 7
      %v2793 = vshll.u32 %v2730, 16
      %v2795 = vor.u32 %v2792, %v2793
      %v2796 = vsel %vm2746, %v2788, %v2795
      %v2797 = vrot.slane %v2792, 4
      %v2799 = vshrl.u32 %v2731, 16
      %v2801 = vrot.slane %v2799, 7
      %v2802 = vshll.u32 %v2731, 16
      %v2804 = vor.u32 %v2801, %v2802
      %v2805 = vrot.slane %v2801, 4
      %v2807 = vshrl.u32 %v2732, 16
      %v2809 = vrot.slane %v2807, 7
      %v2810 = vshll.u32 %v2732, 16
      %v2812 = vor.u32 %v2809, %v2810
      %v2813 = vsel %vm2746, %v2805, %v2812
      %v2814 = vrot.slane %v2809, 4
      %v2816 = vshrl.u32 %v2733, 16
      %v2818 = vrot.slane %v2816, 7
      %v2819 = vshll.u32 %v2733, 16
      %v2821 = vor.u32 %v2818, %v2819
      %v2822 = vrot.slane %v2818, 4
      %v2824 = vshrl.u32 %v2734, 16
      %v2826 = vrot.slane %v2824, 7
      %v2827 = vshll.u32 %v2734, 16
      %v2829 = vor.u32 %v2826, %v2827
      %v2830 = vsel %vm2746, %v2822, %v2829
      %v2831 = vrot.slane %v2826, 4
      %v2833 = vshrl.u32 %v2735, 16
      %v2835 = vrot.slane %v2833, 7
      %v2836 = vshll.u32 %v2735, 16
      %v2838 = vor.u32 %v2835, %v2836
      %v2839 = vrot.slane %v2835, 4
      %v2841 = vshrl.u32 %v2736, 16
      %v2843 = vrot.slane %v2841, 7
      %v2844 = vshll.u32 %v2736, 16
      %v2846 = vor.u32 %v2843, %v2844
      %v2847 = vsel %vm2746, %v2839, %v2846
      %v2848 = vrot.slane %v2843, 4
      %v2850 = vshrl.u32 %v2737, 16
      %v2852 = vrot.slane %v2850, 7
      %v2853 = vshll.u32 %v2737, 16
      %v2855 = vor.u32 %v2852, %v2853
      %v2856 = vrot.slane %v2852, 4
      %v2858 = vshrl.u32 %v2738, 16
      %v2860 = vrot.slane %v2858, 7
      %v2861 = vshll.u32 %v2738, 16
      %v2863 = vor.u32 %v2860, %v2861
      %v2864 = vsel %vm2746, %v2856, %v2863
      %v2865 = vrot.slane %v2860, 4
      %v2867 = vshrl.u32 %v2739, 16
      %v2869 = vrot.slane %v2867, 7
      %v2870 = vshll.u32 %v2739, 16
      %v2872 = vor.u32 %v2869, %v2870
      %v2873 = vrot.slane %v2869, 4
      %v2875 = vshrl.u32 %v2740, 16
      %v2877 = vrot.slane %v2875, 7
      %v2878 = vshll.u32 %v2740, 16
      %v2880 = vor.u32 %v2877, %v2878
      %v2881 = vsel %vm2746, %v2873, %v2880
      %v2882 = vrot.slane %v2877, 4
      %v2884 = vshrl.u32 %v2741, 16
      %v2886 = vrot.slane %v2884, 7
      %v2887 = vshll.u32 %v2741, 16
      %v2889 = vor.u32 %v2886, %v2887
      %v2890 = vrot.slane %v2886, 4
      %v2892 = vshrl.u32 %v2742, 16
      %v2894 = vrot.slane %v2892, 7
      %v2895 = vshll.u32 %v2742, 16
      %v2897 = vor.u32 %v2894, %v2895
      %v2898 = vsel %vm2746, %v2890, %v2897
      %v2899 = vrot.slane %v2894, 4
      %v2901 = vshrl.u32 %v2743, 16
      %v2903 = vrot.slane %v2901, 7
      %v2904 = vshll.u32 %v2743, 16
      %v2906 = vor.u32 %v2903, %v2904
      %v2907 = vrot.slane %v2903, 4
      %v2909 = vshrl.u32 %v2744, 16
      %v2911 = vrot.slane %v2909, 7
      %v2912 = vshll.u32 %v2744, 16
      %v2914 = vor.u32 %v2911, %v2912
      %v2915 = vsel %vm2746, %v2907, %v2914
      %v2916 = vrot.slane %v2911, 4
      %vm2947 = vcmask 60416
      %vm2948 = vmand %vm2947, %vm2653
      %v2949 = vld [vmem:[#allocation3] sm:$0xf]
      %v2950 = vsel %vm2948, %v2753, %v2949
      %2951 = vst [vmem:[#allocation3] sm:$0xf] %v2950
      %2952 = vst.msk [vmem:[#allocation3 + $0x4] sm:$0xf] %vm329, %v2762
      %v2953 = vld [vmem:[#allocation3 + $0x8] sm:$0x1]
      %v2954 = vsel %vm2622, %v2763, %v2953
      %2955 = vst [vmem:[#allocation3 + $0x8] sm:$0x1] %v2954
      %v2956 = vld [vmem:[#allocation3 + $0xc] sm:$0xf]
      %v2957 = vsel %vm2948, %v2770, %v2956
      %2958 = vst [vmem:[#allocation3 + $0xc] sm:$0xf] %v2957
      %2959 = vst.msk [vmem:[#allocation3 + $0x10] sm:$0xf] %vm329, %v2779
      %v2960 = vld [vmem:[#allocation3 + $0x14] sm:$0x1]
      %v2961 = vsel %vm2622, %v2780, %v2960
      %2962 = vst [vmem:[#allocation3 + $0x14] sm:$0x1] %v2961
      %v2963 = vld [vmem:[#allocation3 + $0x18] sm:$0xf]
      %v2964 = vsel %vm2948, %v2787, %v2963
      %2965 = vst [vmem:[#allocation3 + $0x18] sm:$0xf] %v2964
      %2966 = vst.msk [vmem:[#allocation3 + $0x1c] sm:$0xf] %vm329, %v2796
      %v2967 = vld [vmem:[#allocation3 + $0x20] sm:$0x1]
      %v2968 = vsel %vm2622, %v2797, %v2967
      %2969 = vst [vmem:[#allocation3 + $0x20] sm:$0x1] %v2968
      %v2970 = vld [vmem:[#allocation3 + $0x24] sm:$0xf]
      %v2971 = vsel %vm2948, %v2804, %v2970
      %2972 = vst [vmem:[#allocation3 + $0x24] sm:$0xf] %v2971
      %2973 = vst.msk [vmem:[#allocation3 + $0x28] sm:$0xf] %vm329, %v2813
      %v2974 = vld [vmem:[#allocation3 + $0x2c] sm:$0x1]
      %v2975 = vsel %vm2622, %v2814, %v2974
      %2976 = vst [vmem:[#allocation3 + $0x2c] sm:$0x1] %v2975
      %v2977 = vld [vmem:[#allocation3 + $0x30] sm:$0xf]
      %v2978 = vsel %vm2948, %v2821, %v2977
      %2979 = vst [vmem:[#allocation3 + $0x30] sm:$0xf] %v2978
      %2980 = vst.msk [vmem:[#allocation3 + $0x34] sm:$0xf] %vm329, %v2830
      %v2981 = vld [vmem:[#allocation3 + $0x38] sm:$0x1]
      %v2982 = vsel %vm2622, %v2831, %v2981
      %2983 = vst [vmem:[#allocation3 + $0x38] sm:$0x1] %v2982
      %v2984 = vld [vmem:[#allocation3 + $0x3c] sm:$0xf]
      %v2985 = vsel %vm2948, %v2838, %v2984
      %2986 = vst [vmem:[#allocation3 + $0x3c] sm:$0xf] %v2985
      %2987 = vst.msk [vmem:[#allocation3 + $0x40] sm:$0xf] %vm329, %v2847
      %v2988 = vld [vmem:[#allocation3 + $0x44] sm:$0x1]
      %v2989 = vsel %vm2622, %v2848, %v2988
      %2990 = vst [vmem:[#allocation3 + $0x44] sm:$0x1] %v2989
      %v2991 = vld [vmem:[#allocation3 + $0x48] sm:$0xf]
      %v2992 = vsel %vm2948, %v2855, %v2991
      %2993 = vst [vmem:[#allocation3 + $0x48] sm:$0xf] %v2992
      %2994 = vst.msk [vmem:[#allocation3 + $0x4c] sm:$0xf] %vm329, %v2864
      %v2995 = vld [vmem:[#allocation3 + $0x50] sm:$0x1]
      %v2996 = vsel %vm2622, %v2865, %v2995
      %2997 = vst [vmem:[#allocation3 + $0x50] sm:$0x1] %v2996
      %v2998 = vld [vmem:[#allocation3 + $0x54] sm:$0xf]
      %v2999 = vsel %vm2948, %v2872, %v2998
      %3000 = vst [vmem:[#allocation3 + $0x54] sm:$0xf] %v2999
      %3001 = vst.msk [vmem:[#allocation3 + $0x58] sm:$0xf] %vm329, %v2881
      %v3002 = vld [vmem:[#allocation3 + $0x5c] sm:$0x1]
      %v3003 = vsel %vm2622, %v2882, %v3002
      %3004 = vst [vmem:[#allocation3 + $0x5c] sm:$0x1] %v3003
      %v3005 = vld [vmem:[#allocation3 + $0x60] sm:$0xf]
      %v3006 = vsel %vm2948, %v2889, %v3005
      %3007 = vst [vmem:[#allocation3 + $0x60] sm:$0xf] %v3006
      %3008 = vst.msk [vmem:[#allocation3 + $0x64] sm:$0xf] %vm329, %v2898
      %v3009 = vld [vmem:[#allocation3 + $0x68] sm:$0x1]
      %v3010 = vsel %vm2622, %v2899, %v3009
      %3011 = vst [vmem:[#allocation3 + $0x68] sm:$0x1] %v3010
      %v3012 = vld [vmem:[#allocation3 + $0x6c] sm:$0xf]
      %v3013 = vsel %vm2948, %v2906, %v3012
      %3014 = vst [vmem:[#allocation3 + $0x6c] sm:$0xf] %v3013
      %3015 = vst.msk [vmem:[#allocation3 + $0x70] sm:$0xf] %vm329, %v2915
      %v3016 = vld [vmem:[#allocation3 + $0x74] sm:$0x1]
      %v3017 = vsel %vm2622, %v2916, %v3016
      %3018 = vst [vmem:[#allocation3 + $0x74] sm:$0x1] %v3017
      %p3019 = scmp.eq.s32.totalorder %s23, 0
      // Predicated region
      $region49: #{basic_block.1} parent=47 // pred_check
        %p3020 = pneg %p3019
      $region50: #{basic_block.1} parent=47 // pred_check_branch
        %3022 = sbr.rel (%p3020) target = $region52
      $region51: #{basic_block.1} parent=47 // pred_region
        %3023 = vst.msk [vmem:[#allocation3] sm:$0xf] %vm329, 0
        %3024 = vst.msk [vmem:[#allocation3 + $0x4] sm:$0xf] %vm329, 0
        %vm3025 = vcmask 57344
        %3026 = vst.msk [vmem:[#allocation3 + $0x8] sm:$0x1] %vm3025, 0
      $region52: #{basic_block.1} parent=47 // pred_fallthru
        _
      %p3027 = scmp.eq.s32.totalorder %s23, 1
      // Predicated region
      $region53: #{basic_block.1} parent=47 // pred_check
        %p3028 = pneg %p3027
      $region54: #{basic_block.1} parent=47 // pred_check_branch
        %3030 = sbr.rel (%p3028) target = $region56
      $region55: #{basic_block.1} parent=47 // pred_region
        %s3031 = scalar_lea.vmem [#allocation3], 108
        %3032 = vst.msk [vmem:[%s3031] sm:$0xf] %vm329, 0
        %3033 = vst.msk [vmem:[%s3031 + $0x4] sm:$0xf] %vm329, 0
        %vm3034 = vcmask 57344
        %3035 = vst.msk [vmem:[%s3031 + $0x8] sm:$0x1] %vm3034, 0
      $region56: #{basic_block.1} parent=47 // pred_fallthru
        _
      %v3036 = vld [vmem:[#allocation3] sm:$0xf]
      %v3037 = vld [vmem:[#allocation3 + $0x4] sm:$0xf]
      %v3038 = vld [vmem:[#allocation3 + $0xc] sm:$0xf]
      %v3039 = vld [vmem:[#allocation3 + $0x10] sm:$0xf]
      %v3040 = vld [vmem:[#allocation3 + $0x18] sm:$0xf]
      %v3041 = vld [vmem:[#allocation3 + $0x1c] sm:$0xf]
      %v3042 = vld [vmem:[#allocation3 + $0x24] sm:$0xf]
      %v3043 = vld [vmem:[#allocation3 + $0x28] sm:$0xf]
      %v3044 = vld [vmem:[#allocation3 + $0x30] sm:$0xf]
      %v3045 = vld [vmem:[#allocation3 + $0x34] sm:$0xf]
      %v3046 = vld [vmem:[#allocation3 + $0x3c] sm:$0xf]
      %v3047 = vld [vmem:[#allocation3 + $0x40] sm:$0xf]
      %v3048 = vld [vmem:[#allocation3 + $0x48] sm:$0xf]
      %v3049 = vld [vmem:[#allocation3 + $0x4c] sm:$0xf]
      %v3050 = vld [vmem:[#allocation3 + $0x54] sm:$0xf]
      %v3051 = vld [vmem:[#allocation3 + $0x58] sm:$0xf]
      %3052 = vst.msk [vmem:[#allocation2] sm:$0xf] %vm329, %v3036
      %3053 = vst.msk [vmem:[#allocation2 + $0x4] sm:$0xf] %vm329, %v3037
      %3054 = vst.msk [vmem:[#allocation2 + $0x8] sm:$0xf] %vm329, %v3038
      %3055 = vst.msk [vmem:[#allocation2 + $0xc] sm:$0xf] %vm329, %v3039
      %3056 = vst.msk [vmem:[#allocation2 + $0x10] sm:$0xf] %vm329, %v3040
      %3057 = vst.msk [vmem:[#allocation2 + $0x14] sm:$0xf] %vm329, %v3041
      %3058 = vst.msk [vmem:[#allocation2 + $0x18] sm:$0xf] %vm329, %v3042
      %3059 = vst.msk [vmem:[#allocation2 + $0x1c] sm:$0xf] %vm329, %v3043
      %3060 = vst.msk [vmem:[#allocation2 + $0x20] sm:$0xf] %vm329, %v3044
      %3061 = vst.msk [vmem:[#allocation2 + $0x24] sm:$0xf] %vm329, %v3045
      %3062 = vst.msk [vmem:[#allocation2 + $0x28] sm:$0xf] %vm329, %v3046
      %3063 = vst.msk [vmem:[#allocation2 + $0x2c] sm:$0xf] %vm329, %v3047
      %3064 = vst.msk [vmem:[#allocation2 + $0x30] sm:$0xf] %vm329, %v3048
      %3065 = vst.msk [vmem:[#allocation2 + $0x34] sm:$0xf] %vm329, %v3049
      %3066 = vst.msk [vmem:[#allocation2 + $0x38] sm:$0xf] %vm329, %v3050
      %3067 = vst.msk [vmem:[#allocation2 + $0x3c] sm:$0xf] %vm329, %v3051
      %v3068 = vld [vmem:[#allocation3] sm:$0xf]
      %v3069 = vld [vmem:[#allocation3 + $0x4] sm:$0xf]
      %v3070 = vld [vmem:[#allocation3 + $0x8] sm:$0x1]
      %v3071 = vld [vmem:[#allocation3 + $0xc] sm:$0xf]
      %v3072 = vld [vmem:[#allocation3 + $0x10] sm:$0xf]
      %v3073 = vld [vmem:[#allocation3 + $0x14] sm:$0x1]
      %v3074 = vld [vmem:[#allocation3 + $0x18] sm:$0xf]
      %v3075 = vld [vmem:[#allocation3 + $0x1c] sm:$0xf]
      %v3076 = vld [vmem:[#allocation3 + $0x20] sm:$0x1]
      %v3077 = vld [vmem:[#allocation3 + $0x24] sm:$0xf]
      %v3078 = vld [vmem:[#allocation3 + $0x28] sm:$0xf]
      %v3079 = vld [vmem:[#allocation3 + $0x2c] sm:$0x1]
      %v3080 = vld [vmem:[#allocation3 + $0x30] sm:$0xf]
      %v3081 = vld [vmem:[#allocation3 + $0x34] sm:$0xf]
      %v3082 = vld [vmem:[#allocation3 + $0x38] sm:$0x1]
      %v3083 = vld [vmem:[#allocation3 + $0x3c] sm:$0xf]
      %v3084 = vld [vmem:[#allocation3 + $0x40] sm:$0xf]
      %v3085 = vld [vmem:[#allocation3 + $0x44] sm:$0x1]
      %v3086 = vld [vmem:[#allocation3 + $0x48] sm:$0xf]
      %v3087 = vld [vmem:[#allocation3 + $0x4c] sm:$0xf]
      %v3088 = vld [vmem:[#allocation3 + $0x50] sm:$0x1]
      %v3089 = vld [vmem:[#allocation3 + $0x54] sm:$0xf]
      %v3090 = vld [vmem:[#allocation3 + $0x58] sm:$0xf]
      %v3091 = vld [vmem:[#allocation3 + $0x5c] sm:$0x1]
      %v3093 = vshrl.u32 %v3068, 16
      %v3095 = vrot.slane %v3093, 4
      %v3096 = vshll.u32 %v3068, 16
      %v3098 = vrot.slane %v3096, 5
      %v3099 = vor.u32 %v3095, %v3098
      %v3100 = vrot.slane %v3099, 4
      %v3102 = vshll.u32 %v3069, 16
      %v3104 = vrot.slane %v3102, 5
      %v3105 = vsel %vm382, %v3100, %v3104
      %v3106 = vshrl.u32 %v3069, 16
      %v3108 = vrot.slane %v3106, 4
      %v3109 = vor.u32 %v3108, %v3104
      %v3110 = vrot.slane %v3109, 4
      %v3112 = vshll.u32 %v3070, 16
      %v3114 = vrot.slane %v3112, 5
      %v3115 = vsel %vm382, %v3110, %v3114
      %v3117 = vshrl.u32 %v3071, 16
      %v3119 = vrot.slane %v3117, 4
      %v3120 = vshll.u32 %v3071, 16
      %v3122 = vrot.slane %v3120, 5
      %v3123 = vor.u32 %v3119, %v3122
      %v3124 = vrot.slane %v3123, 4
      %v3126 = vshll.u32 %v3072, 16
      %v3128 = vrot.slane %v3126, 5
      %v3129 = vsel %vm382, %v3124, %v3128
      %v3130 = vshrl.u32 %v3072, 16
      %v3132 = vrot.slane %v3130, 4
      %v3133 = vor.u32 %v3132, %v3128
      %v3134 = vrot.slane %v3133, 4
      %v3136 = vshll.u32 %v3073, 16
      %v3138 = vrot.slane %v3136, 5
      %v3139 = vsel %vm382, %v3134, %v3138
      %v3141 = vshrl.u32 %v3074, 16
      %v3143 = vrot.slane %v3141, 4
      %v3144 = vshll.u32 %v3074, 16
      %v3146 = vrot.slane %v3144, 5
      %v3147 = vor.u32 %v3143, %v3146
      %v3148 = vrot.slane %v3147, 4
      %v3150 = vshll.u32 %v3075, 16
      %v3152 = vrot.slane %v3150, 5
      %v3153 = vsel %vm382, %v3148, %v3152
      %v3154 = vshrl.u32 %v3075, 16
      %v3156 = vrot.slane %v3154, 4
      %v3157 = vor.u32 %v3156, %v3152
      %v3158 = vrot.slane %v3157, 4
      %v3160 = vshll.u32 %v3076, 16
      %v3162 = vrot.slane %v3160, 5
      %v3163 = vsel %vm382, %v3158, %v3162
      %v3165 = vshrl.u32 %v3077, 16
      %v3167 = vrot.slane %v3165, 4
      %v3168 = vshll.u32 %v3077, 16
      %v3170 = vrot.slane %v3168, 5
      %v3171 = vor.u32 %v3167, %v3170
      %v3172 = vrot.slane %v3171, 4
      %v3174 = vshll.u32 %v3078, 16
      %v3176 = vrot.slane %v3174, 5
      %v3177 = vsel %vm382, %v3172, %v3176
      %v3178 = vshrl.u32 %v3078, 16
      %v3180 = vrot.slane %v3178, 4
      %v3181 = vor.u32 %v3180, %v3176
      %v3182 = vrot.slane %v3181, 4
      %v3184 = vshll.u32 %v3079, 16
      %v3186 = vrot.slane %v3184, 5
      %v3187 = vsel %vm382, %v3182, %v3186
      %v3189 = vshrl.u32 %v3080, 16
      %v3191 = vrot.slane %v3189, 4
      %v3192 = vshll.u32 %v3080, 16
      %v3194 = vrot.slane %v3192, 5
      %v3195 = vor.u32 %v3191, %v3194
      %v3196 = vrot.slane %v3195, 4
      %v3198 = vshll.u32 %v3081, 16
      %v3200 = vrot.slane %v3198, 5
      %v3201 = vsel %vm382, %v3196, %v3200
      %v3202 = vshrl.u32 %v3081, 16
      %v3204 = vrot.slane %v3202, 4
      %v3205 = vor.u32 %v3204, %v3200
      %v3206 = vrot.slane %v3205, 4
      %v3208 = vshll.u32 %v3082, 16
      %v3210 = vrot.slane %v3208, 5
      %v3211 = vsel %vm382, %v3206, %v3210
      %v3213 = vshrl.u32 %v3083, 16
      %v3215 = vrot.slane %v3213, 4
      %v3216 = vshll.u32 %v3083, 16
      %v3218 = vrot.slane %v3216, 5
      %v3219 = vor.u32 %v3215, %v3218
      %v3220 = vrot.slane %v3219, 4
      %v3222 = vshll.u32 %v3084, 16
      %v3224 = vrot.slane %v3222, 5
      %v3225 = vsel %vm382, %v3220, %v3224
      %v3226 = vshrl.u32 %v3084, 16
      %v3228 = vrot.slane %v3226, 4
      %v3229 = vor.u32 %v3228, %v3224
      %v3230 = vrot.slane %v3229, 4
      %v3232 = vshll.u32 %v3085, 16
      %v3234 = vrot.slane %v3232, 5
      %v3235 = vsel %vm382, %v3230, %v3234
      %v3237 = vshrl.u32 %v3086, 16
      %v3239 = vrot.slane %v3237, 4
      %v3240 = vshll.u32 %v3086, 16
      %v3242 = vrot.slane %v3240, 5
      %v3243 = vor.u32 %v3239, %v3242
      %v3244 = vrot.slane %v3243, 4
      %v3246 = vshll.u32 %v3087, 16
      %v3248 = vrot.slane %v3246, 5
      %v3249 = vsel %vm382, %v3244, %v3248
      %v3250 = vshrl.u32 %v3087, 16
      %v3252 = vrot.slane %v3250, 4
      %v3253 = vor.u32 %v3252, %v3248
      %v3254 = vrot.slane %v3253, 4
      %v3256 = vshll.u32 %v3088, 16
      %v3258 = vrot.slane %v3256, 5
      %v3259 = vsel %vm382, %v3254, %v3258
      %v3261 = vshrl.u32 %v3089, 16
      %v3263 = vrot.slane %v3261, 4
      %v3264 = vshll.u32 %v3089, 16
      %v3266 = vrot.slane %v3264, 5
      %v3267 = vor.u32 %v3263, %v3266
      %v3268 = vrot.slane %v3267, 4
      %v3270 = vshll.u32 %v3090, 16
      %v3272 = vrot.slane %v3270, 5
      %v3273 = vsel %vm382, %v3268, %v3272
      %v3274 = vshrl.u32 %v3090, 16
      %v3276 = vrot.slane %v3274, 4
      %v3277 = vor.u32 %v3276, %v3272
      %v3278 = vrot.slane %v3277, 4
      %v3280 = vshll.u32 %v3091, 16
      %v3282 = vrot.slane %v3280, 5
      %v3283 = vsel %vm382, %v3278, %v3282
      %3284 = vrot.lane.b32.xlu0 %v3105, 8
      %v3285 = vpop.permute.xlu0 %3284
      %3286 = vrot.lane.b32.xlu0 %v3115, 8
      %v3287 = vpop.permute.xlu0 %3286
      %3288 = vrot.lane.b32.xlu0 %v3129, 8
      %v3289 = vpop.permute.xlu0 %3288
      %3290 = vrot.lane.b32.xlu0 %v3139, 8
      %v3291 = vpop.permute.xlu0 %3290
      %3292 = vrot.lane.b32.xlu0 %v3153, 8
      %v3293 = vpop.permute.xlu0 %3292
      %3294 = vrot.lane.b32.xlu0 %v3163, 8
      %v3295 = vpop.permute.xlu0 %3294
      %3296 = vrot.lane.b32.xlu0 %v3177, 8
      %v3297 = vpop.permute.xlu0 %3296
      %3298 = vrot.lane.b32.xlu0 %v3187, 8
      %v3299 = vpop.permute.xlu0 %3298
      %3300 = vrot.lane.b32.xlu0 %v3201, 8
      %v3301 = vpop.permute.xlu0 %3300
      %3302 = vrot.lane.b32.xlu0 %v3211, 8
      %v3303 = vpop.permute.xlu0 %3302
      %3304 = vrot.lane.b32.xlu0 %v3225, 8
      %v3305 = vpop.permute.xlu0 %3304
      %3306 = vrot.lane.b32.xlu0 %v3235, 8
      %v3307 = vpop.permute.xlu0 %3306
      %3308 = vrot.lane.b32.xlu0 %v3249, 8
      %v3309 = vpop.permute.xlu0 %3308
      %3310 = vrot.lane.b32.xlu0 %v3259, 8
      %v3311 = vpop.permute.xlu0 %3310
      %3312 = vrot.lane.b32.xlu0 %v3273, 8
      %v3313 = vpop.permute.xlu0 %3312
      %3314 = vrot.lane.b32.xlu0 %v3283, 8
      %v3315 = vpop.permute.xlu0 %3314
      %3332 = vst.msk [vmem:[#allocation2] sm:$0xf] %vm683, %v3285
      %3333 = vst.msk [vmem:[#allocation2 + $0x4] sm:$0xf] %vm683, %v3287
      %3334 = vst.msk [vmem:[#allocation2 + $0x8] sm:$0xf] %vm683, %v3289
      %3335 = vst.msk [vmem:[#allocation2 + $0xc] sm:$0xf] %vm683, %v3291
      %3336 = vst.msk [vmem:[#allocation2 + $0x10] sm:$0xf] %vm683, %v3293
      %3337 = vst.msk [vmem:[#allocation2 + $0x14] sm:$0xf] %vm683, %v3295
      %3338 = vst.msk [vmem:[#allocation2 + $0x18] sm:$0xf] %vm683, %v3297
      %3339 = vst.msk [vmem:[#allocation2 + $0x1c] sm:$0xf] %vm683, %v3299
      %3340 = vst.msk [vmem:[#allocation2 + $0x20] sm:$0xf] %vm683, %v3301
      %3341 = vst.msk [vmem:[#allocation2 + $0x24] sm:$0xf] %vm683, %v3303
      %3342 = vst.msk [vmem:[#allocation2 + $0x28] sm:$0xf] %vm683, %v3305
      %3343 = vst.msk [vmem:[#allocation2 + $0x2c] sm:$0xf] %vm683, %v3307
      %3344 = vst.msk [vmem:[#allocation2 + $0x30] sm:$0xf] %vm683, %v3309
      %3345 = vst.msk [vmem:[#allocation2 + $0x34] sm:$0xf] %vm683, %v3311
      %3346 = vst.msk [vmem:[#allocation2 + $0x38] sm:$0xf] %vm683, %v3313
      %3347 = vst.msk [vmem:[#allocation2 + $0x3c] sm:$0xf] %vm683, %v3315
      %v3348 = vld [vmem:[#allocation3] sm:$0xe]
      %v3349 = vld [vmem:[#allocation3 + $0x4] sm:$0xf]
      %v3350 = vld [vmem:[#allocation3 + $0x8] sm:$0x1]
      %v3351 = vld [vmem:[#allocation3 + $0xc] sm:$0xe]
      %v3352 = vld [vmem:[#allocation3 + $0x10] sm:$0xf]
      %v3353 = vld [vmem:[#allocation3 + $0x14] sm:$0x1]
      %v3354 = vld [vmem:[#allocation3 + $0x18] sm:$0xe]
      %v3355 = vld [vmem:[#allocation3 + $0x1c] sm:$0xf]
      %v3356 = vld [vmem:[#allocation3 + $0x20] sm:$0x1]
      %v3357 = vld [vmem:[#allocation3 + $0x24] sm:$0xe]
      %v3358 = vld [vmem:[#allocation3 + $0x28] sm:$0xf]
      %v3359 = vld [vmem:[#allocation3 + $0x2c] sm:$0x1]
      %v3360 = vld [vmem:[#allocation3 + $0x30] sm:$0xe]
      %v3361 = vld [vmem:[#allocation3 + $0x34] sm:$0xf]
      %v3362 = vld [vmem:[#allocation3 + $0x38] sm:$0x1]
      %v3363 = vld [vmem:[#allocation3 + $0x3c] sm:$0xe]
      %v3364 = vld [vmem:[#allocation3 + $0x40] sm:$0xf]
      %v3365 = vld [vmem:[#allocation3 + $0x44] sm:$0x1]
      %v3366 = vld [vmem:[#allocation3 + $0x48] sm:$0xe]
      %v3367 = vld [vmem:[#allocation3 + $0x4c] sm:$0xf]
      %v3368 = vld [vmem:[#allocation3 + $0x50] sm:$0x1]
      %v3369 = vld [vmem:[#allocation3 + $0x54] sm:$0xe]
      %v3370 = vld [vmem:[#allocation3 + $0x58] sm:$0xf]
      %v3371 = vld [vmem:[#allocation3 + $0x5c] sm:$0x1]
      %v3396 = vrot.slane %v3348, 5
      %v3397 = vrot.slane %v3396, 4
      %v3398 = vrot.slane %v3349, 5
      %v3399 = vsel %vm766, %v3397, %v3398
      %v3400 = vrot.slane %v3398, 4
      %v3401 = vrot.slane %v3350, 5
      %v3402 = vsel %vm766, %v3400, %v3401
      %v3403 = vrot.slane %v3351, 5
      %v3404 = vrot.slane %v3403, 4
      %v3405 = vrot.slane %v3352, 5
      %v3406 = vsel %vm766, %v3404, %v3405
      %v3407 = vrot.slane %v3405, 4
      %v3408 = vrot.slane %v3353, 5
      %v3409 = vsel %vm766, %v3407, %v3408
      %v3410 = vrot.slane %v3354, 5
      %v3411 = vrot.slane %v3410, 4
      %v3412 = vrot.slane %v3355, 5
      %v3413 = vsel %vm766, %v3411, %v3412
      %v3414 = vrot.slane %v3412, 4
      %v3415 = vrot.slane %v3356, 5
      %v3416 = vsel %vm766, %v3414, %v3415
      %v3417 = vrot.slane %v3357, 5
      %v3418 = vrot.slane %v3417, 4
      %v3419 = vrot.slane %v3358, 5
      %v3420 = vsel %vm766, %v3418, %v3419
      %v3421 = vrot.slane %v3419, 4
      %v3422 = vrot.slane %v3359, 5
      %v3423 = vsel %vm766, %v3421, %v3422
      %v3424 = vrot.slane %v3360, 5
      %v3425 = vrot.slane %v3424, 4
      %v3426 = vrot.slane %v3361, 5
      %v3427 = vsel %vm766, %v3425, %v3426
      %v3428 = vrot.slane %v3426, 4
      %v3429 = vrot.slane %v3362, 5
      %v3430 = vsel %vm766, %v3428, %v3429
      %v3431 = vrot.slane %v3363, 5
      %v3432 = vrot.slane %v3431, 4
      %v3433 = vrot.slane %v3364, 5
      %v3434 = vsel %vm766, %v3432, %v3433
      %v3435 = vrot.slane %v3433, 4
      %v3436 = vrot.slane %v3365, 5
      %v3437 = vsel %vm766, %v3435, %v3436
      %v3438 = vrot.slane %v3366, 5
      %v3439 = vrot.slane %v3438, 4
      %v3440 = vrot.slane %v3367, 5
      %v3441 = vsel %vm766, %v3439, %v3440
      %v3442 = vrot.slane %v3440, 4
      %v3443 = vrot.slane %v3368, 5
      %v3444 = vsel %vm766, %v3442, %v3443
      %v3445 = vrot.slane %v3369, 5
      %v3446 = vrot.slane %v3445, 4
      %v3447 = vrot.slane %v3370, 5
      %v3448 = vsel %vm766, %v3446, %v3447
      %v3449 = vrot.slane %v3447, 4
      %v3450 = vrot.slane %v3371, 5
      %v3451 = vsel %vm766, %v3449, %v3450
      %3452 = vrot.lane.b32.xlu0 %v3399, 16
      %v3453 = vpop.permute.xlu0 %3452
      %3454 = vrot.lane.b32.xlu0 %v3402, 16
      %v3455 = vpop.permute.xlu0 %3454
      %3456 = vrot.lane.b32.xlu0 %v3406, 16
      %v3457 = vpop.permute.xlu0 %3456
      %3458 = vrot.lane.b32.xlu0 %v3409, 16
      %v3459 = vpop.permute.xlu0 %3458
      %3460 = vrot.lane.b32.xlu0 %v3413, 16
      %v3461 = vpop.permute.xlu0 %3460
      %3462 = vrot.lane.b32.xlu0 %v3416, 16
      %v3463 = vpop.permute.xlu0 %3462
      %3464 = vrot.lane.b32.xlu0 %v3420, 16
      %v3465 = vpop.permute.xlu0 %3464
      %3466 = vrot.lane.b32.xlu0 %v3423, 16
      %v3467 = vpop.permute.xlu0 %3466
      %3468 = vrot.lane.b32.xlu0 %v3427, 16
      %v3469 = vpop.permute.xlu0 %3468
      %3470 = vrot.lane.b32.xlu0 %v3430, 16
      %v3471 = vpop.permute.xlu0 %3470
      %3472 = vrot.lane.b32.xlu0 %v3434, 16
      %v3473 = vpop.permute.xlu0 %3472
      %3474 = vrot.lane.b32.xlu0 %v3437, 16
      %v3475 = vpop.permute.xlu0 %3474
      %3476 = vrot.lane.b32.xlu0 %v3441, 16
      %v3477 = vpop.permute.xlu0 %3476
      %3478 = vrot.lane.b32.xlu0 %v3444, 16
      %v3479 = vpop.permute.xlu0 %3478
      %3480 = vrot.lane.b32.xlu0 %v3448, 16
      %v3481 = vpop.permute.xlu0 %3480
      %3482 = vrot.lane.b32.xlu0 %v3451, 16
      %v3483 = vpop.permute.xlu0 %3482
      %3500 = vst.msk [vmem:[#allocation2] sm:$0xf] %vm897, %v3453
      %3501 = vst.msk [vmem:[#allocation2 + $0x4] sm:$0xf] %vm897, %v3455
      %3502 = vst.msk [vmem:[#allocation2 + $0x8] sm:$0xf] %vm897, %v3457
      %3503 = vst.msk [vmem:[#allocation2 + $0xc] sm:$0xf] %vm897, %v3459
      %3504 = vst.msk [vmem:[#allocation2 + $0x10] sm:$0xf] %vm897, %v3461
      %3505 = vst.msk [vmem:[#allocation2 + $0x14] sm:$0xf] %vm897, %v3463
      %3506 = vst.msk [vmem:[#allocation2 + $0x18] sm:$0xf] %vm897, %v3465
      %3507 = vst.msk [vmem:[#allocation2 + $0x1c] sm:$0xf] %vm897, %v3467
      %3508 = vst.msk [vmem:[#allocation2 + $0x20] sm:$0xf] %vm897, %v3469
      %3509 = vst.msk [vmem:[#allocation2 + $0x24] sm:$0xf] %vm897, %v3471
      %3510 = vst.msk [vmem:[#allocation2 + $0x28] sm:$0xf] %vm897, %v3473
      %3511 = vst.msk [vmem:[#allocation2 + $0x2c] sm:$0xf] %vm897, %v3475
      %3512 = vst.msk [vmem:[#allocation2 + $0x30] sm:$0xf] %vm897, %v3477
      %3513 = vst.msk [vmem:[#allocation2 + $0x34] sm:$0xf] %vm897, %v3479
      %3514 = vst.msk [vmem:[#allocation2 + $0x38] sm:$0xf] %vm897, %v3481
      %3515 = vst.msk [vmem:[#allocation2 + $0x3c] sm:$0xf] %vm897, %v3483
      %s3516 = scalar_lea.vmem [#allocation3], 12
      %v3517 = vld [vmem:[%s3516] sm:$0xf]
      %v3518 = vld [vmem:[%s3516 + $0x4] sm:$0xf]
      %v3519 = vld [vmem:[%s3516 + $0xc] sm:$0xf]
      %v3520 = vld [vmem:[%s3516 + $0x10] sm:$0xf]
      %v3521 = vld [vmem:[%s3516 + $0x18] sm:$0xf]
      %v3522 = vld [vmem:[%s3516 + $0x1c] sm:$0xf]
      %v3523 = vld [vmem:[%s3516 + $0x24] sm:$0xf]
      %v3524 = vld [vmem:[%s3516 + $0x28] sm:$0xf]
      %v3525 = vld [vmem:[%s3516 + $0x30] sm:$0xf]
      %v3526 = vld [vmem:[%s3516 + $0x34] sm:$0xf]
      %v3527 = vld [vmem:[%s3516 + $0x3c] sm:$0xf]
      %v3528 = vld [vmem:[%s3516 + $0x40] sm:$0xf]
      %v3529 = vld [vmem:[%s3516 + $0x48] sm:$0xf]
      %v3530 = vld [vmem:[%s3516 + $0x4c] sm:$0xf]
      %v3531 = vld [vmem:[%s3516 + $0x54] sm:$0xf]
      %v3532 = vld [vmem:[%s3516 + $0x58] sm:$0xf]
      %3549 = vrot.lane.b32.xlu0 %v3517, 24
      %v3550 = vpop.permute.xlu0 %3549
      %3551 = vrot.lane.b32.xlu0 %v3518, 24
      %v3552 = vpop.permute.xlu0 %3551
      %3553 = vrot.lane.b32.xlu0 %v3519, 24
      %v3554 = vpop.permute.xlu0 %3553
      %3555 = vrot.lane.b32.xlu0 %v3520, 24
      %v3556 = vpop.permute.xlu0 %3555
      %3557 = vrot.lane.b32.xlu0 %v3521, 24
      %v3558 = vpop.permute.xlu0 %3557
      %3559 = vrot.lane.b32.xlu0 %v3522, 24
      %v3560 = vpop.permute.xlu0 %3559
      %3561 = vrot.lane.b32.xlu0 %v3523, 24
      %v3562 = vpop.permute.xlu0 %3561
      %3563 = vrot.lane.b32.xlu0 %v3524, 24
      %v3564 = vpop.permute.xlu0 %3563
      %3565 = vrot.lane.b32.xlu0 %v3525, 24
      %v3566 = vpop.permute.xlu0 %3565
      %3567 = vrot.lane.b32.xlu0 %v3526, 24
      %v3568 = vpop.permute.xlu0 %3567
      %3569 = vrot.lane.b32.xlu0 %v3527, 24
      %v3570 = vpop.permute.xlu0 %3569
      %3571 = vrot.lane.b32.xlu0 %v3528, 24
      %v3572 = vpop.permute.xlu0 %3571
      %3573 = vrot.lane.b32.xlu0 %v3529, 24
      %v3574 = vpop.permute.xlu0 %3573
      %3575 = vrot.lane.b32.xlu0 %v3530, 24
      %v3576 = vpop.permute.xlu0 %3575
      %3577 = vrot.lane.b32.xlu0 %v3531, 24
      %v3578 = vpop.permute.xlu0 %3577
      %3579 = vrot.lane.b32.xlu0 %v3532, 24
      %v3580 = vpop.permute.xlu0 %3579
      %3597 = vst.msk [vmem:[#allocation2] sm:$0xf] %vm1022, %v3550
      %3598 = vst.msk [vmem:[#allocation2 + $0x4] sm:$0xf] %vm1022, %v3552
      %3599 = vst.msk [vmem:[#allocation2 + $0x8] sm:$0xf] %vm1022, %v3554
      %3600 = vst.msk [vmem:[#allocation2 + $0xc] sm:$0xf] %vm1022, %v3556
      %3601 = vst.msk [vmem:[#allocation2 + $0x10] sm:$0xf] %vm1022, %v3558
      %3602 = vst.msk [vmem:[#allocation2 + $0x14] sm:$0xf] %vm1022, %v3560
      %3603 = vst.msk [vmem:[#allocation2 + $0x18] sm:$0xf] %vm1022, %v3562
      %3604 = vst.msk [vmem:[#allocation2 + $0x1c] sm:$0xf] %vm1022, %v3564
      %3605 = vst.msk [vmem:[#allocation2 + $0x20] sm:$0xf] %vm1022, %v3566
      %3606 = vst.msk [vmem:[#allocation2 + $0x24] sm:$0xf] %vm1022, %v3568
      %3607 = vst.msk [vmem:[#allocation2 + $0x28] sm:$0xf] %vm1022, %v3570
      %3608 = vst.msk [vmem:[#allocation2 + $0x2c] sm:$0xf] %vm1022, %v3572
      %3609 = vst.msk [vmem:[#allocation2 + $0x30] sm:$0xf] %vm1022, %v3574
      %3610 = vst.msk [vmem:[#allocation2 + $0x34] sm:$0xf] %vm1022, %v3576
      %3611 = vst.msk [vmem:[#allocation2 + $0x38] sm:$0xf] %vm1022, %v3578
      %3612 = vst.msk [vmem:[#allocation2 + $0x3c] sm:$0xf] %vm1022, %v3580
      %v3613 = vld [vmem:[%s3516] sm:$0xf]
      %v3614 = vld [vmem:[%s3516 + $0x4] sm:$0xf]
      %v3615 = vld [vmem:[%s3516 + $0x8] sm:$0x1]
      %v3616 = vld [vmem:[%s3516 + $0xc] sm:$0xf]
      %v3617 = vld [vmem:[%s3516 + $0x10] sm:$0xf]
      %v3618 = vld [vmem:[%s3516 + $0x14] sm:$0x1]
      %v3619 = vld [vmem:[%s3516 + $0x18] sm:$0xf]
      %v3620 = vld [vmem:[%s3516 + $0x1c] sm:$0xf]
      %v3621 = vld [vmem:[%s3516 + $0x20] sm:$0x1]
      %v3622 = vld [vmem:[%s3516 + $0x24] sm:$0xf]
      %v3623 = vld [vmem:[%s3516 + $0x28] sm:$0xf]
      %v3624 = vld [vmem:[%s3516 + $0x2c] sm:$0x1]
      %v3625 = vld [vmem:[%s3516 + $0x30] sm:$0xf]
      %v3626 = vld [vmem:[%s3516 + $0x34] sm:$0xf]
      %v3627 = vld [vmem:[%s3516 + $0x38] sm:$0x1]
      %v3628 = vld [vmem:[%s3516 + $0x3c] sm:$0xf]
      %v3629 = vld [vmem:[%s3516 + $0x40] sm:$0xf]
      %v3630 = vld [vmem:[%s3516 + $0x44] sm:$0x1]
      %v3631 = vld [vmem:[%s3516 + $0x48] sm:$0xf]
      %v3632 = vld [vmem:[%s3516 + $0x4c] sm:$0xf]
      %v3633 = vld [vmem:[%s3516 + $0x50] sm:$0x1]
      %v3634 = vld [vmem:[%s3516 + $0x54] sm:$0xf]
      %v3635 = vld [vmem:[%s3516 + $0x58] sm:$0xf]
      %v3636 = vld [vmem:[%s3516 + $0x5c] sm:$0x1]
      %v3638 = vshrl.u32 %v3613, 16
      %v3640 = vrot.slane %v3638, 4
      %v3641 = vshll.u32 %v3613, 16
      %v3643 = vrot.slane %v3641, 5
      %v3644 = vor.u32 %v3640, %v3643
      %v3645 = vrot.slane %v3644, 4
      %v3647 = vshll.u32 %v3614, 16
      %v3649 = vrot.slane %v3647, 5
      %v3650 = vsel %vm382, %v3645, %v3649
      %v3651 = vshrl.u32 %v3614, 16
      %v3653 = vrot.slane %v3651, 4
      %v3654 = vor.u32 %v3653, %v3649
      %v3655 = vrot.slane %v3654, 4
      %v3657 = vshll.u32 %v3615, 16
      %v3659 = vrot.slane %v3657, 5
      %v3660 = vsel %vm382, %v3655, %v3659
      %v3662 = vshrl.u32 %v3616, 16
      %v3664 = vrot.slane %v3662, 4
      %v3665 = vshll.u32 %v3616, 16
      %v3667 = vrot.slane %v3665, 5
      %v3668 = vor.u32 %v3664, %v3667
      %v3669 = vrot.slane %v3668, 4
      %v3671 = vshll.u32 %v3617, 16
      %v3673 = vrot.slane %v3671, 5
      %v3674 = vsel %vm382, %v3669, %v3673
      %v3675 = vshrl.u32 %v3617, 16
      %v3677 = vrot.slane %v3675, 4
      %v3678 = vor.u32 %v3677, %v3673
      %v3679 = vrot.slane %v3678, 4
      %v3681 = vshll.u32 %v3618, 16
      %v3683 = vrot.slane %v3681, 5
      %v3684 = vsel %vm382, %v3679, %v3683
      %v3686 = vshrl.u32 %v3619, 16
      %v3688 = vrot.slane %v3686, 4
      %v3689 = vshll.u32 %v3619, 16
      %v3691 = vrot.slane %v3689, 5
      %v3692 = vor.u32 %v3688, %v3691
      %v3693 = vrot.slane %v3692, 4
      %v3695 = vshll.u32 %v3620, 16
      %v3697 = vrot.slane %v3695, 5
      %v3698 = vsel %vm382, %v3693, %v3697
      %v3699 = vshrl.u32 %v3620, 16
      %v3701 = vrot.slane %v3699, 4
      %v3702 = vor.u32 %v3701, %v3697
      %v3703 = vrot.slane %v3702, 4
      %v3705 = vshll.u32 %v3621, 16
      %v3707 = vrot.slane %v3705, 5
      %v3708 = vsel %vm382, %v3703, %v3707
      %v3710 = vshrl.u32 %v3622, 16
      %v3712 = vrot.slane %v3710, 4
      %v3713 = vshll.u32 %v3622, 16
      %v3715 = vrot.slane %v3713, 5
      %v3716 = vor.u32 %v3712, %v3715
      %v3717 = vrot.slane %v3716, 4
      %v3719 = vshll.u32 %v3623, 16
      %v3721 = vrot.slane %v3719, 5
      %v3722 = vsel %vm382, %v3717, %v3721
      %v3723 = vshrl.u32 %v3623, 16
      %v3725 = vrot.slane %v3723, 4
      %v3726 = vor.u32 %v3725, %v3721
      %v3727 = vrot.slane %v3726, 4
      %v3729 = vshll.u32 %v3624, 16
      %v3731 = vrot.slane %v3729, 5
      %v3732 = vsel %vm382, %v3727, %v3731
      %v3734 = vshrl.u32 %v3625, 16
      %v3736 = vrot.slane %v3734, 4
      %v3737 = vshll.u32 %v3625, 16
      %v3739 = vrot.slane %v3737, 5
      %v3740 = vor.u32 %v3736, %v3739
      %v3741 = vrot.slane %v3740, 4
      %v3743 = vshll.u32 %v3626, 16
      %v3745 = vrot.slane %v3743, 5
      %v3746 = vsel %vm382, %v3741, %v3745
      %v3747 = vshrl.u32 %v3626, 16
      %v3749 = vrot.slane %v3747, 4
      %v3750 = vor.u32 %v3749, %v3745
      %v3751 = vrot.slane %v3750, 4
      %v3753 = vshll.u32 %v3627, 16
      %v3755 = vrot.slane %v3753, 5
      %v3756 = vsel %vm382, %v3751, %v3755
      %v3758 = vshrl.u32 %v3628, 16
      %v3760 = vrot.slane %v3758, 4
      %v3761 = vshll.u32 %v3628, 16
      %v3763 = vrot.slane %v3761, 5
      %v3764 = vor.u32 %v3760, %v3763
      %v3765 = vrot.slane %v3764, 4
      %v3767 = vshll.u32 %v3629, 16
      %v3769 = vrot.slane %v3767, 5
      %v3770 = vsel %vm382, %v3765, %v3769
      %v3771 = vshrl.u32 %v3629, 16
      %v3773 = vrot.slane %v3771, 4
      %v3774 = vor.u32 %v3773, %v3769
      %v3775 = vrot.slane %v3774, 4
      %v3777 = vshll.u32 %v3630, 16
      %v3779 = vrot.slane %v3777, 5
      %v3780 = vsel %vm382, %v3775, %v3779
      %v3782 = vshrl.u32 %v3631, 16
      %v3784 = vrot.slane %v3782, 4
      %v3785 = vshll.u32 %v3631, 16
      %v3787 = vrot.slane %v3785, 5
      %v3788 = vor.u32 %v3784, %v3787
      %v3789 = vrot.slane %v3788, 4
      %v3791 = vshll.u32 %v3632, 16
      %v3793 = vrot.slane %v3791, 5
      %v3794 = vsel %vm382, %v3789, %v3793
      %v3795 = vshrl.u32 %v3632, 16
      %v3797 = vrot.slane %v3795, 4
      %v3798 = vor.u32 %v3797, %v3793
      %v3799 = vrot.slane %v3798, 4
      %v3801 = vshll.u32 %v3633, 16
      %v3803 = vrot.slane %v3801, 5
      %v3804 = vsel %vm382, %v3799, %v3803
      %v3806 = vshrl.u32 %v3634, 16
      %v3808 = vrot.slane %v3806, 4
      %v3809 = vshll.u32 %v3634, 16
      %v3811 = vrot.slane %v3809, 5
      %v3812 = vor.u32 %v3808, %v3811
      %v3813 = vrot.slane %v3812, 4
      %v3815 = vshll.u32 %v3635, 16
      %v3817 = vrot.slane %v3815, 5
      %v3818 = vsel %vm382, %v3813, %v3817
      %v3819 = vshrl.u32 %v3635, 16
      %v3821 = vrot.slane %v3819, 4
      %v3822 = vor.u32 %v3821, %v3817
      %v3823 = vrot.slane %v3822, 4
      %v3825 = vshll.u32 %v3636, 16
      %v3827 = vrot.slane %v3825, 5
      %v3828 = vsel %vm382, %v3823, %v3827
      %3829 = vrot.lane.b32.xlu0 %v3650, 32
      %v3830 = vpop.permute.xlu0 %3829
      %3831 = vrot.lane.b32.xlu0 %v3660, 32
      %v3832 = vpop.permute.xlu0 %3831
      %3833 = vrot.lane.b32.xlu0 %v3674, 32
      %v3834 = vpop.permute.xlu0 %3833
      %3835 = vrot.lane.b32.xlu0 %v3684, 32
      %v3836 = vpop.permute.xlu0 %3835
      %3837 = vrot.lane.b32.xlu0 %v3698, 32
      %v3838 = vpop.permute.xlu0 %3837
      %3839 = vrot.lane.b32.xlu0 %v3708, 32
      %v3840 = vpop.permute.xlu0 %3839
      %3841 = vrot.lane.b32.xlu0 %v3722, 32
      %v3842 = vpop.permute.xlu0 %3841
      %3843 = vrot.lane.b32.xlu0 %v3732, 32
      %v3844 = vpop.permute.xlu0 %3843
      %3845 = vrot.lane.b32.xlu0 %v3746, 32
      %v3846 = vpop.permute.xlu0 %3845
      %3847 = vrot.lane.b32.xlu0 %v3756, 32
      %v3848 = vpop.permute.xlu0 %3847
      %3849 = vrot.lane.b32.xlu0 %v3770, 32
      %v3850 = vpop.permute.xlu0 %3849
      %3851 = vrot.lane.b32.xlu0 %v3780, 32
      %v3852 = vpop.permute.xlu0 %3851
      %3853 = vrot.lane.b32.xlu0 %v3794, 32
      %v3854 = vpop.permute.xlu0 %3853
      %3855 = vrot.lane.b32.xlu0 %v3804, 32
      %v3856 = vpop.permute.xlu0 %3855
      %3857 = vrot.lane.b32.xlu0 %v3818, 32
      %v3858 = vpop.permute.xlu0 %3857
      %3859 = vrot.lane.b32.xlu0 %v3828, 32
      %v3860 = vpop.permute.xlu0 %3859
      %3877 = vst.msk [vmem:[#allocation2] sm:$0xf] %vm1373, %v3830
      %3878 = vst.msk [vmem:[#allocation2 + $0x4] sm:$0xf] %vm1373, %v3832
      %3879 = vst.msk [vmem:[#allocation2 + $0x8] sm:$0xf] %vm1373, %v3834
      %3880 = vst.msk [vmem:[#allocation2 + $0xc] sm:$0xf] %vm1373, %v3836
      %3881 = vst.msk [vmem:[#allocation2 + $0x10] sm:$0xf] %vm1373, %v3838
      %3882 = vst.msk [vmem:[#allocation2 + $0x14] sm:$0xf] %vm1373, %v3840
      %3883 = vst.msk [vmem:[#allocation2 + $0x18] sm:$0xf] %vm1373, %v3842
      %3884 = vst.msk [vmem:[#allocation2 + $0x1c] sm:$0xf] %vm1373, %v3844
      %3885 = vst.msk [vmem:[#allocation2 + $0x20] sm:$0xf] %vm1373, %v3846
      %3886 = vst.msk [vmem:[#allocation2 + $0x24] sm:$0xf] %vm1373, %v3848
      %3887 = vst.msk [vmem:[#allocation2 + $0x28] sm:$0xf] %vm1373, %v3850
      %3888 = vst.msk [vmem:[#allocation2 + $0x2c] sm:$0xf] %vm1373, %v3852
      %3889 = vst.msk [vmem:[#allocation2 + $0x30] sm:$0xf] %vm1373, %v3854
      %3890 = vst.msk [vmem:[#allocation2 + $0x34] sm:$0xf] %vm1373, %v3856
      %3891 = vst.msk [vmem:[#allocation2 + $0x38] sm:$0xf] %vm1373, %v3858
      %3892 = vst.msk [vmem:[#allocation2 + $0x3c] sm:$0xf] %vm1373, %v3860
      %v3893 = vld [vmem:[%s3516] sm:$0xe]
      %v3894 = vld [vmem:[%s3516 + $0x4] sm:$0xf]
      %v3895 = vld [vmem:[%s3516 + $0x8] sm:$0x1]
      %v3896 = vld [vmem:[%s3516 + $0xc] sm:$0xe]
      %v3897 = vld [vmem:[%s3516 + $0x10] sm:$0xf]
      %v3898 = vld [vmem:[%s3516 + $0x14] sm:$0x1]
      %v3899 = vld [vmem:[%s3516 + $0x18] sm:$0xe]
      %v3900 = vld [vmem:[%s3516 + $0x1c] sm:$0xf]
      %v3901 = vld [vmem:[%s3516 + $0x20] sm:$0x1]
      %v3902 = vld [vmem:[%s3516 + $0x24] sm:$0xe]
      %v3903 = vld [vmem:[%s3516 + $0x28] sm:$0xf]
      %v3904 = vld [vmem:[%s3516 + $0x2c] sm:$0x1]
      %v3905 = vld [vmem:[%s3516 + $0x30] sm:$0xe]
      %v3906 = vld [vmem:[%s3516 + $0x34] sm:$0xf]
      %v3907 = vld [vmem:[%s3516 + $0x38] sm:$0x1]
      %v3908 = vld [vmem:[%s3516 + $0x3c] sm:$0xe]
      %v3909 = vld [vmem:[%s3516 + $0x40] sm:$0xf]
      %v3910 = vld [vmem:[%s3516 + $0x44] sm:$0x1]
      %v3911 = vld [vmem:[%s3516 + $0x48] sm:$0xe]
      %v3912 = vld [vmem:[%s3516 + $0x4c] sm:$0xf]
      %v3913 = vld [vmem:[%s3516 + $0x50] sm:$0x1]
      %v3914 = vld [vmem:[%s3516 + $0x54] sm:$0xe]
      %v3915 = vld [vmem:[%s3516 + $0x58] sm:$0xf]
      %v3916 = vld [vmem:[%s3516 + $0x5c] sm:$0x1]
      %v3941 = vrot.slane %v3893, 5
      %v3942 = vrot.slane %v3941, 4
      %v3943 = vrot.slane %v3894, 5
      %v3944 = vsel %vm766, %v3942, %v3943
      %v3945 = vrot.slane %v3943, 4
      %v3946 = vrot.slane %v3895, 5
      %v3947 = vsel %vm766, %v3945, %v3946
      %v3948 = vrot.slane %v3896, 5
      %v3949 = vrot.slane %v3948, 4
      %v3950 = vrot.slane %v3897, 5
      %v3951 = vsel %vm766, %v3949, %v3950
      %v3952 = vrot.slane %v3950, 4
      %v3953 = vrot.slane %v3898, 5
      %v3954 = vsel %vm766, %v3952, %v3953
      %v3955 = vrot.slane %v3899, 5
      %v3956 = vrot.slane %v3955, 4
      %v3957 = vrot.slane %v3900, 5
      %v3958 = vsel %vm766, %v3956, %v3957
      %v3959 = vrot.slane %v3957, 4
      %v3960 = vrot.slane %v3901, 5
      %v3961 = vsel %vm766, %v3959, %v3960
      %v3962 = vrot.slane %v3902, 5
      %v3963 = vrot.slane %v3962, 4
      %v3964 = vrot.slane %v3903, 5
      %v3965 = vsel %vm766, %v3963, %v3964
      %v3966 = vrot.slane %v3964, 4
      %v3967 = vrot.slane %v3904, 5
      %v3968 = vsel %vm766, %v3966, %v3967
      %v3969 = vrot.slane %v3905, 5
      %v3970 = vrot.slane %v3969, 4
      %v3971 = vrot.slane %v3906, 5
      %v3972 = vsel %vm766, %v3970, %v3971
      %v3973 = vrot.slane %v3971, 4
      %v3974 = vrot.slane %v3907, 5
      %v3975 = vsel %vm766, %v3973, %v3974
      %v3976 = vrot.slane %v3908, 5
      %v3977 = vrot.slane %v3976, 4
      %v3978 = vrot.slane %v3909, 5
      %v3979 = vsel %vm766, %v3977, %v3978
      %v3980 = vrot.slane %v3978, 4
      %v3981 = vrot.slane %v3910, 5
      %v3982 = vsel %vm766, %v3980, %v3981
      %v3983 = vrot.slane %v3911, 5
      %v3984 = vrot.slane %v3983, 4
      %v3985 = vrot.slane %v3912, 5
      %v3986 = vsel %vm766, %v3984, %v3985
      %v3987 = vrot.slane %v3985, 4
      %v3988 = vrot.slane %v3913, 5
      %v3989 = vsel %vm766, %v3987, %v3988
      %v3990 = vrot.slane %v3914, 5
      %v3991 = vrot.slane %v3990, 4
      %v3992 = vrot.slane %v3915, 5
      %v3993 = vsel %vm766, %v3991, %v3992
      %v3994 = vrot.slane %v3992, 4
      %v3995 = vrot.slane %v3916, 5
      %v3996 = vsel %vm766, %v3994, %v3995
      %3997 = vrot.lane.b32.xlu0 %v3944, 40
      %v3998 = vpop.permute.xlu0 %3997
      %3999 = vrot.lane.b32.xlu0 %v3947, 40
      %v4000 = vpop.permute.xlu0 %3999
      %4001 = vrot.lane.b32.xlu0 %v3951, 40
      %v4002 = vpop.permute.xlu0 %4001
      %4003 = vrot.lane.b32.xlu0 %v3954, 40
      %v4004 = vpop.permute.xlu0 %4003
      %4005 = vrot.lane.b32.xlu0 %v3958, 40
      %v4006 = vpop.permute.xlu0 %4005
      %4007 = vrot.lane.b32.xlu0 %v3961, 40
      %v4008 = vpop.permute.xlu0 %4007
      %4009 = vrot.lane.b32.xlu0 %v3965, 40
      %v4010 = vpop.permute.xlu0 %4009
      %4011 = vrot.lane.b32.xlu0 %v3968, 40
      %v4012 = vpop.permute.xlu0 %4011
      %4013 = vrot.lane.b32.xlu0 %v3972, 40
      %v4014 = vpop.permute.xlu0 %4013
      %4015 = vrot.lane.b32.xlu0 %v3975, 40
      %v4016 = vpop.permute.xlu0 %4015
      %4017 = vrot.lane.b32.xlu0 %v3979, 40
      %v4018 = vpop.permute.xlu0 %4017
      %4019 = vrot.lane.b32.xlu0 %v3982, 40
      %v4020 = vpop.permute.xlu0 %4019
      %4021 = vrot.lane.b32.xlu0 %v3986, 40
      %v4022 = vpop.permute.xlu0 %4021
      %4023 = vrot.lane.b32.xlu0 %v3989, 40
      %v4024 = vpop.permute.xlu0 %4023
      %4025 = vrot.lane.b32.xlu0 %v3993, 40
      %v4026 = vpop.permute.xlu0 %4025
      %4027 = vrot.lane.b32.xlu0 %v3996, 40
      %v4028 = vpop.permute.xlu0 %4027
      %4045 = vst.msk [vmem:[#allocation2] sm:$0xf] %vm1584, %v3998
      %4046 = vst.msk [vmem:[#allocation2 + $0x4] sm:$0xf] %vm1584, %v4000
      %4047 = vst.msk [vmem:[#allocation2 + $0x8] sm:$0xf] %vm1584, %v4002
      %4048 = vst.msk [vmem:[#allocation2 + $0xc] sm:$0xf] %vm1584, %v4004
      %4049 = vst.msk [vmem:[#allocation2 + $0x10] sm:$0xf] %vm1584, %v4006
      %4050 = vst.msk [vmem:[#allocation2 + $0x14] sm:$0xf] %vm1584, %v4008
      %4051 = vst.msk [vmem:[#allocation2 + $0x18] sm:$0xf] %vm1584, %v4010
      %4052 = vst.msk [vmem:[#allocation2 + $0x1c] sm:$0xf] %vm1584, %v4012
      %4053 = vst.msk [vmem:[#allocation2 + $0x20] sm:$0xf] %vm1584, %v4014
      %4054 = vst.msk [vmem:[#allocation2 + $0x24] sm:$0xf] %vm1584, %v4016
      %4055 = vst.msk [vmem:[#allocation2 + $0x28] sm:$0xf] %vm1584, %v4018
      %4056 = vst.msk [vmem:[#allocation2 + $0x2c] sm:$0xf] %vm1584, %v4020
      %4057 = vst.msk [vmem:[#allocation2 + $0x30] sm:$0xf] %vm1584, %v4022
      %4058 = vst.msk [vmem:[#allocation2 + $0x34] sm:$0xf] %vm1584, %v4024
      %4059 = vst.msk [vmem:[#allocation2 + $0x38] sm:$0xf] %vm1584, %v4026
      %4060 = vst.msk [vmem:[#allocation2 + $0x3c] sm:$0xf] %vm1584, %v4028
      %s4061 = scalar_lea.vmem [#allocation3], 24
      %v4062 = vld [vmem:[%s4061] sm:$0xf]
      %v4063 = vld [vmem:[%s4061 + $0x4] sm:$0xf]
      %v4064 = vld [vmem:[%s4061 + $0xc] sm:$0xf]
      %v4065 = vld [vmem:[%s4061 + $0x10] sm:$0xf]
      %v4066 = vld [vmem:[%s4061 + $0x18] sm:$0xf]
      %v4067 = vld [vmem:[%s4061 + $0x1c] sm:$0xf]
      %v4068 = vld [vmem:[%s4061 + $0x24] sm:$0xf]
      %v4069 = vld [vmem:[%s4061 + $0x28] sm:$0xf]
      %v4070 = vld [vmem:[%s4061 + $0x30] sm:$0xf]
      %v4071 = vld [vmem:[%s4061 + $0x34] sm:$0xf]
      %v4072 = vld [vmem:[%s4061 + $0x3c] sm:$0xf]
      %v4073 = vld [vmem:[%s4061 + $0x40] sm:$0xf]
      %v4074 = vld [vmem:[%s4061 + $0x48] sm:$0xf]
      %v4075 = vld [vmem:[%s4061 + $0x4c] sm:$0xf]
      %v4076 = vld [vmem:[%s4061 + $0x54] sm:$0xf]
      %v4077 = vld [vmem:[%s4061 + $0x58] sm:$0xf]
      %4094 = vrot.lane.b32.xlu0 %v4062, 48
      %v4095 = vpop.permute.xlu0 %4094
      %4096 = vrot.lane.b32.xlu0 %v4063, 48
      %v4097 = vpop.permute.xlu0 %4096
      %4098 = vrot.lane.b32.xlu0 %v4064, 48
      %v4099 = vpop.permute.xlu0 %4098
      %4100 = vrot.lane.b32.xlu0 %v4065, 48
      %v4101 = vpop.permute.xlu0 %4100
      %4102 = vrot.lane.b32.xlu0 %v4066, 48
      %v4103 = vpop.permute.xlu0 %4102
      %4104 = vrot.lane.b32.xlu0 %v4067, 48
      %v4105 = vpop.permute.xlu0 %4104
      %4106 = vrot.lane.b32.xlu0 %v4068, 48
      %v4107 = vpop.permute.xlu0 %4106
      %4108 = vrot.lane.b32.xlu0 %v4069, 48
      %v4109 = vpop.permute.xlu0 %4108
      %4110 = vrot.lane.b32.xlu0 %v4070, 48
      %v4111 = vpop.permute.xlu0 %4110
      %4112 = vrot.lane.b32.xlu0 %v4071, 48
      %v4113 = vpop.permute.xlu0 %4112
      %4114 = vrot.lane.b32.xlu0 %v4072, 48
      %v4115 = vpop.permute.xlu0 %4114
      %4116 = vrot.lane.b32.xlu0 %v4073, 48
      %v4117 = vpop.permute.xlu0 %4116
      %4118 = vrot.lane.b32.xlu0 %v4074, 48
      %v4119 = vpop.permute.xlu0 %4118
      %4120 = vrot.lane.b32.xlu0 %v4075, 48
      %v4121 = vpop.permute.xlu0 %4120
      %4122 = vrot.lane.b32.xlu0 %v4076, 48
      %v4123 = vpop.permute.xlu0 %4122
      %4124 = vrot.lane.b32.xlu0 %v4077, 48
      %v4125 = vpop.permute.xlu0 %4124
      %4142 = vst.msk [vmem:[#allocation2] sm:$0xf] %vm1709, %v4095
      %4143 = vst.msk [vmem:[#allocation2 + $0x4] sm:$0xf] %vm1709, %v4097
      %4144 = vst.msk [vmem:[#allocation2 + $0x8] sm:$0xf] %vm1709, %v4099
      %4145 = vst.msk [vmem:[#allocation2 + $0xc] sm:$0xf] %vm1709, %v4101
      %4146 = vst.msk [vmem:[#allocation2 + $0x10] sm:$0xf] %vm1709, %v4103
      %4147 = vst.msk [vmem:[#allocation2 + $0x14] sm:$0xf] %vm1709, %v4105
      %4148 = vst.msk [vmem:[#allocation2 + $0x18] sm:$0xf] %vm1709, %v4107
      %4149 = vst.msk [vmem:[#allocation2 + $0x1c] sm:$0xf] %vm1709, %v4109
      %4150 = vst.msk [vmem:[#allocation2 + $0x20] sm:$0xf] %vm1709, %v4111
      %4151 = vst.msk [vmem:[#allocation2 + $0x24] sm:$0xf] %vm1709, %v4113
      %4152 = vst.msk [vmem:[#allocation2 + $0x28] sm:$0xf] %vm1709, %v4115
      %4153 = vst.msk [vmem:[#allocation2 + $0x2c] sm:$0xf] %vm1709, %v4117
      %4154 = vst.msk [vmem:[#allocation2 + $0x30] sm:$0xf] %vm1709, %v4119
      %4155 = vst.msk [vmem:[#allocation2 + $0x34] sm:$0xf] %vm1709, %v4121
      %4156 = vst.msk [vmem:[#allocation2 + $0x38] sm:$0xf] %vm1709, %v4123
      %4157 = vst.msk [vmem:[#allocation2 + $0x3c] sm:$0xf] %vm1709, %v4125
      %v4158 = vld [vmem:[%s4061] sm:$0xf]
      %v4159 = vld [vmem:[%s4061 + $0x4] sm:$0xf]
      %v4160 = vld [vmem:[%s4061 + $0x8] sm:$0x1]
      %v4161 = vld [vmem:[%s4061 + $0xc] sm:$0xf]
      %v4162 = vld [vmem:[%s4061 + $0x10] sm:$0xf]
      %v4163 = vld [vmem:[%s4061 + $0x14] sm:$0x1]
      %v4164 = vld [vmem:[%s4061 + $0x18] sm:$0xf]
      %v4165 = vld [vmem:[%s4061 + $0x1c] sm:$0xf]
      %v4166 = vld [vmem:[%s4061 + $0x20] sm:$0x1]
      %v4167 = vld [vmem:[%s4061 + $0x24] sm:$0xf]
      %v4168 = vld [vmem:[%s4061 + $0x28] sm:$0xf]
      %v4169 = vld [vmem:[%s4061 + $0x2c] sm:$0x1]
      %v4170 = vld [vmem:[%s4061 + $0x30] sm:$0xf]
      %v4171 = vld [vmem:[%s4061 + $0x34] sm:$0xf]
      %v4172 = vld [vmem:[%s4061 + $0x38] sm:$0x1]
      %v4173 = vld [vmem:[%s4061 + $0x3c] sm:$0xf]
      %v4174 = vld [vmem:[%s4061 + $0x40] sm:$0xf]
      %v4175 = vld [vmem:[%s4061 + $0x44] sm:$0x1]
      %v4176 = vld [vmem:[%s4061 + $0x48] sm:$0xf]
      %v4177 = vld [vmem:[%s4061 + $0x4c] sm:$0xf]
      %v4178 = vld [vmem:[%s4061 + $0x50] sm:$0x1]
      %v4179 = vld [vmem:[%s4061 + $0x54] sm:$0xf]
      %v4180 = vld [vmem:[%s4061 + $0x58] sm:$0xf]
      %v4181 = vld [vmem:[%s4061 + $0x5c] sm:$0x1]
      %v4183 = vshrl.u32 %v4158, 16
      %v4185 = vrot.slane %v4183, 4
      %v4186 = vshll.u32 %v4158, 16
      %v4188 = vrot.slane %v4186, 5
      %v4189 = vor.u32 %v4185, %v4188
      %v4190 = vrot.slane %v4189, 4
      %v4192 = vshll.u32 %v4159, 16
      %v4194 = vrot.slane %v4192, 5
      %v4195 = vsel %vm382, %v4190, %v4194
      %v4196 = vshrl.u32 %v4159, 16
      %v4198 = vrot.slane %v4196, 4
      %v4199 = vor.u32 %v4198, %v4194
      %v4200 = vrot.slane %v4199, 4
      %v4202 = vshll.u32 %v4160, 16
      %v4204 = vrot.slane %v4202, 5
      %v4205 = vsel %vm382, %v4200, %v4204
      %v4207 = vshrl.u32 %v4161, 16
      %v4209 = vrot.slane %v4207, 4
      %v4210 = vshll.u32 %v4161, 16
      %v4212 = vrot.slane %v4210, 5
      %v4213 = vor.u32 %v4209, %v4212
      %v4214 = vrot.slane %v4213, 4
      %v4216 = vshll.u32 %v4162, 16
      %v4218 = vrot.slane %v4216, 5
      %v4219 = vsel %vm382, %v4214, %v4218
      %v4220 = vshrl.u32 %v4162, 16
      %v4222 = vrot.slane %v4220, 4
      %v4223 = vor.u32 %v4222, %v4218
      %v4224 = vrot.slane %v4223, 4
      %v4226 = vshll.u32 %v4163, 16
      %v4228 = vrot.slane %v4226, 5
      %v4229 = vsel %vm382, %v4224, %v4228
      %v4231 = vshrl.u32 %v4164, 16
      %v4233 = vrot.slane %v4231, 4
      %v4234 = vshll.u32 %v4164, 16
      %v4236 = vrot.slane %v4234, 5
      %v4237 = vor.u32 %v4233, %v4236
      %v4238 = vrot.slane %v4237, 4
      %v4240 = vshll.u32 %v4165, 16
      %v4242 = vrot.slane %v4240, 5
      %v4243 = vsel %vm382, %v4238, %v4242
      %v4244 = vshrl.u32 %v4165, 16
      %v4246 = vrot.slane %v4244, 4
      %v4247 = vor.u32 %v4246, %v4242
      %v4248 = vrot.slane %v4247, 4
      %v4250 = vshll.u32 %v4166, 16
      %v4252 = vrot.slane %v4250, 5
      %v4253 = vsel %vm382, %v4248, %v4252
      %v4255 = vshrl.u32 %v4167, 16
      %v4257 = vrot.slane %v4255, 4
      %v4258 = vshll.u32 %v4167, 16
      %v4260 = vrot.slane %v4258, 5
      %v4261 = vor.u32 %v4257, %v4260
      %v4262 = vrot.slane %v4261, 4
      %v4264 = vshll.u32 %v4168, 16
      %v4266 = vrot.slane %v4264, 5
      %v4267 = vsel %vm382, %v4262, %v4266
      %v4268 = vshrl.u32 %v4168, 16
      %v4270 = vrot.slane %v4268, 4
      %v4271 = vor.u32 %v4270, %v4266
      %v4272 = vrot.slane %v4271, 4
      %v4274 = vshll.u32 %v4169, 16
      %v4276 = vrot.slane %v4274, 5
      %v4277 = vsel %vm382, %v4272, %v4276
      %v4279 = vshrl.u32 %v4170, 16
      %v4281 = vrot.slane %v4279, 4
      %v4282 = vshll.u32 %v4170, 16
      %v4284 = vrot.slane %v4282, 5
      %v4285 = vor.u32 %v4281, %v4284
      %v4286 = vrot.slane %v4285, 4
      %v4288 = vshll.u32 %v4171, 16
      %v4290 = vrot.slane %v4288, 5
      %v4291 = vsel %vm382, %v4286, %v4290
      %v4292 = vshrl.u32 %v4171, 16
      %v4294 = vrot.slane %v4292, 4
      %v4295 = vor.u32 %v4294, %v4290
      %v4296 = vrot.slane %v4295, 4
      %v4298 = vshll.u32 %v4172, 16
      %v4300 = vrot.slane %v4298, 5
      %v4301 = vsel %vm382, %v4296, %v4300
      %v4303 = vshrl.u32 %v4173, 16
      %v4305 = vrot.slane %v4303, 4
      %v4306 = vshll.u32 %v4173, 16
      %v4308 = vrot.slane %v4306, 5
      %v4309 = vor.u32 %v4305, %v4308
      %v4310 = vrot.slane %v4309, 4
      %v4312 = vshll.u32 %v4174, 16
      %v4314 = vrot.slane %v4312, 5
      %v4315 = vsel %vm382, %v4310, %v4314
      %v4316 = vshrl.u32 %v4174, 16
      %v4318 = vrot.slane %v4316, 4
      %v4319 = vor.u32 %v4318, %v4314
      %v4320 = vrot.slane %v4319, 4
      %v4322 = vshll.u32 %v4175, 16
      %v4324 = vrot.slane %v4322, 5
      %v4325 = vsel %vm382, %v4320, %v4324
      %v4327 = vshrl.u32 %v4176, 16
      %v4329 = vrot.slane %v4327, 4
      %v4330 = vshll.u32 %v4176, 16
      %v4332 = vrot.slane %v4330, 5
      %v4333 = vor.u32 %v4329, %v4332
      %v4334 = vrot.slane %v4333, 4
      %v4336 = vshll.u32 %v4177, 16
      %v4338 = vrot.slane %v4336, 5
      %v4339 = vsel %vm382, %v4334, %v4338
      %v4340 = vshrl.u32 %v4177, 16
      %v4342 = vrot.slane %v4340, 4
      %v4343 = vor.u32 %v4342, %v4338
      %v4344 = vrot.slane %v4343, 4
      %v4346 = vshll.u32 %v4178, 16
      %v4348 = vrot.slane %v4346, 5
      %v4349 = vsel %vm382, %v4344, %v4348
      %v4351 = vshrl.u32 %v4179, 16
      %v4353 = vrot.slane %v4351, 4
      %v4354 = vshll.u32 %v4179, 16
      %v4356 = vrot.slane %v4354, 5
      %v4357 = vor.u32 %v4353, %v4356
      %v4358 = vrot.slane %v4357, 4
      %v4360 = vshll.u32 %v4180, 16
      %v4362 = vrot.slane %v4360, 5
      %v4363 = vsel %vm382, %v4358, %v4362
      %v4364 = vshrl.u32 %v4180, 16
      %v4366 = vrot.slane %v4364, 4
      %v4367 = vor.u32 %v4366, %v4362
      %v4368 = vrot.slane %v4367, 4
      %v4370 = vshll.u32 %v4181, 16
      %v4372 = vrot.slane %v4370, 5
      %v4373 = vsel %vm382, %v4368, %v4372
      %4374 = vrot.lane.b32.xlu0 %v4195, 56
      %v4375 = vpop.permute.xlu0 %4374
      %4376 = vrot.lane.b32.xlu0 %v4205, 56
      %v4377 = vpop.permute.xlu0 %4376
      %4378 = vrot.lane.b32.xlu0 %v4219, 56
      %v4379 = vpop.permute.xlu0 %4378
      %4380 = vrot.lane.b32.xlu0 %v4229, 56
      %v4381 = vpop.permute.xlu0 %4380
      %4382 = vrot.lane.b32.xlu0 %v4243, 56
      %v4383 = vpop.permute.xlu0 %4382
      %4384 = vrot.lane.b32.xlu0 %v4253, 56
      %v4385 = vpop.permute.xlu0 %4384
      %4386 = vrot.lane.b32.xlu0 %v4267, 56
      %v4387 = vpop.permute.xlu0 %4386
      %4388 = vrot.lane.b32.xlu0 %v4277, 56
      %v4389 = vpop.permute.xlu0 %4388
      %4390 = vrot.lane.b32.xlu0 %v4291, 56
      %v4391 = vpop.permute.xlu0 %4390
      %4392 = vrot.lane.b32.xlu0 %v4301, 56
      %v4393 = vpop.permute.xlu0 %4392
      %4394 = vrot.lane.b32.xlu0 %v4315, 56
      %v4395 = vpop.permute.xlu0 %4394
      %4396 = vrot.lane.b32.xlu0 %v4325, 56
      %v4397 = vpop.permute.xlu0 %4396
      %4398 = vrot.lane.b32.xlu0 %v4339, 56
      %v4399 = vpop.permute.xlu0 %4398
      %4400 = vrot.lane.b32.xlu0 %v4349, 56
      %v4401 = vpop.permute.xlu0 %4400
      %4402 = vrot.lane.b32.xlu0 %v4363, 56
      %v4403 = vpop.permute.xlu0 %4402
      %4404 = vrot.lane.b32.xlu0 %v4373, 56
      %v4405 = vpop.permute.xlu0 %4404
      %4422 = vst.msk [vmem:[#allocation2] sm:$0xf] %vm2060, %v4375
      %4423 = vst.msk [vmem:[#allocation2 + $0x4] sm:$0xf] %vm2060, %v4377
      %4424 = vst.msk [vmem:[#allocation2 + $0x8] sm:$0xf] %vm2060, %v4379
      %4425 = vst.msk [vmem:[#allocation2 + $0xc] sm:$0xf] %vm2060, %v4381
      %4426 = vst.msk [vmem:[#allocation2 + $0x10] sm:$0xf] %vm2060, %v4383
      %4427 = vst.msk [vmem:[#allocation2 + $0x14] sm:$0xf] %vm2060, %v4385
      %4428 = vst.msk [vmem:[#allocation2 + $0x18] sm:$0xf] %vm2060, %v4387
      %4429 = vst.msk [vmem:[#allocation2 + $0x1c] sm:$0xf] %vm2060, %v4389
      %4430 = vst.msk [vmem:[#allocation2 + $0x20] sm:$0xf] %vm2060, %v4391
      %4431 = vst.msk [vmem:[#allocation2 + $0x24] sm:$0xf] %vm2060, %v4393
      %4432 = vst.msk [vmem:[#allocation2 + $0x28] sm:$0xf] %vm2060, %v4395
      %4433 = vst.msk [vmem:[#allocation2 + $0x2c] sm:$0xf] %vm2060, %v4397
      %4434 = vst.msk [vmem:[#allocation2 + $0x30] sm:$0xf] %vm2060, %v4399
      %4435 = vst.msk [vmem:[#allocation2 + $0x34] sm:$0xf] %vm2060, %v4401
      %4436 = vst.msk [vmem:[#allocation2 + $0x38] sm:$0xf] %vm2060, %v4403
      %4437 = vst.msk [vmem:[#allocation2 + $0x3c] sm:$0xf] %vm2060, %v4405
      %v4438 = vld [vmem:[%s4061] sm:$0xe]
      %v4439 = vld [vmem:[%s4061 + $0x4] sm:$0xf]
      %v4440 = vld [vmem:[%s4061 + $0x8] sm:$0x1]
      %v4441 = vld [vmem:[%s4061 + $0xc] sm:$0xe]
      %v4442 = vld [vmem:[%s4061 + $0x10] sm:$0xf]
      %v4443 = vld [vmem:[%s4061 + $0x14] sm:$0x1]
      %v4444 = vld [vmem:[%s4061 + $0x18] sm:$0xe]
      %v4445 = vld [vmem:[%s4061 + $0x1c] sm:$0xf]
      %v4446 = vld [vmem:[%s4061 + $0x20] sm:$0x1]
      %v4447 = vld [vmem:[%s4061 + $0x24] sm:$0xe]
      %v4448 = vld [vmem:[%s4061 + $0x28] sm:$0xf]
      %v4449 = vld [vmem:[%s4061 + $0x2c] sm:$0x1]
      %v4450 = vld [vmem:[%s4061 + $0x30] sm:$0xe]
      %v4451 = vld [vmem:[%s4061 + $0x34] sm:$0xf]
      %v4452 = vld [vmem:[%s4061 + $0x38] sm:$0x1]
      %v4453 = vld [vmem:[%s4061 + $0x3c] sm:$0xe]
      %v4454 = vld [vmem:[%s4061 + $0x40] sm:$0xf]
      %v4455 = vld [vmem:[%s4061 + $0x44] sm:$0x1]
      %v4456 = vld [vmem:[%s4061 + $0x48] sm:$0xe]
      %v4457 = vld [vmem:[%s4061 + $0x4c] sm:$0xf]
      %v4458 = vld [vmem:[%s4061 + $0x50] sm:$0x1]
      %v4459 = vld [vmem:[%s4061 + $0x54] sm:$0xe]
      %v4460 = vld [vmem:[%s4061 + $0x58] sm:$0xf]
      %v4461 = vld [vmem:[%s4061 + $0x5c] sm:$0x1]
      %v4486 = vrot.slane %v4438, 5
      %v4487 = vrot.slane %v4486, 4
      %v4488 = vrot.slane %v4439, 5
      %v4489 = vsel %vm766, %v4487, %v4488
      %v4490 = vrot.slane %v4488, 4
      %v4491 = vrot.slane %v4440, 5
      %v4492 = vsel %vm766, %v4490, %v4491
      %v4493 = vrot.slane %v4441, 5
      %v4494 = vrot.slane %v4493, 4
      %v4495 = vrot.slane %v4442, 5
      %v4496 = vsel %vm766, %v4494, %v4495
      %v4497 = vrot.slane %v4495, 4
      %v4498 = vrot.slane %v4443, 5
      %v4499 = vsel %vm766, %v4497, %v4498
      %v4500 = vrot.slane %v4444, 5
      %v4501 = vrot.slane %v4500, 4
      %v4502 = vrot.slane %v4445, 5
      %v4503 = vsel %vm766, %v4501, %v4502
      %v4504 = vrot.slane %v4502, 4
      %v4505 = vrot.slane %v4446, 5
      %v4506 = vsel %vm766, %v4504, %v4505
      %v4507 = vrot.slane %v4447, 5
      %v4508 = vrot.slane %v4507, 4
      %v4509 = vrot.slane %v4448, 5
      %v4510 = vsel %vm766, %v4508, %v4509
      %v4511 = vrot.slane %v4509, 4
      %v4512 = vrot.slane %v4449, 5
      %v4513 = vsel %vm766, %v4511, %v4512
      %v4514 = vrot.slane %v4450, 5
      %v4515 = vrot.slane %v4514, 4
      %v4516 = vrot.slane %v4451, 5
      %v4517 = vsel %vm766, %v4515, %v4516
      %v4518 = vrot.slane %v4516, 4
      %v4519 = vrot.slane %v4452, 5
      %v4520 = vsel %vm766, %v4518, %v4519
      %v4521 = vrot.slane %v4453, 5
      %v4522 = vrot.slane %v4521, 4
      %v4523 = vrot.slane %v4454, 5
      %v4524 = vsel %vm766, %v4522, %v4523
      %v4525 = vrot.slane %v4523, 4
      %v4526 = vrot.slane %v4455, 5
      %v4527 = vsel %vm766, %v4525, %v4526
      %v4528 = vrot.slane %v4456, 5
      %v4529 = vrot.slane %v4528, 4
      %v4530 = vrot.slane %v4457, 5
      %v4531 = vsel %vm766, %v4529, %v4530
      %v4532 = vrot.slane %v4530, 4
      %v4533 = vrot.slane %v4458, 5
      %v4534 = vsel %vm766, %v4532, %v4533
      %v4535 = vrot.slane %v4459, 5
      %v4536 = vrot.slane %v4535, 4
      %v4537 = vrot.slane %v4460, 5
      %v4538 = vsel %vm766, %v4536, %v4537
      %v4539 = vrot.slane %v4537, 4
      %v4540 = vrot.slane %v4461, 5
      %v4541 = vsel %vm766, %v4539, %v4540
      %4542 = vrot.lane.b32.xlu0 %v4489, 64
      %v4543 = vpop.permute.xlu0 %4542
      %4544 = vrot.lane.b32.xlu0 %v4492, 64
      %v4545 = vpop.permute.xlu0 %4544
      %4546 = vrot.lane.b32.xlu0 %v4496, 64
      %v4547 = vpop.permute.xlu0 %4546
      %4548 = vrot.lane.b32.xlu0 %v4499, 64
      %v4549 = vpop.permute.xlu0 %4548
      %4550 = vrot.lane.b32.xlu0 %v4503, 64
      %v4551 = vpop.permute.xlu0 %4550
      %4552 = vrot.lane.b32.xlu0 %v4506, 64
      %v4553 = vpop.permute.xlu0 %4552
      %4554 = vrot.lane.b32.xlu0 %v4510, 64
      %v4555 = vpop.permute.xlu0 %4554
      %4556 = vrot.lane.b32.xlu0 %v4513, 64
      %v4557 = vpop.permute.xlu0 %4556
      %4558 = vrot.lane.b32.xlu0 %v4517, 64
      %v4559 = vpop.permute.xlu0 %4558
      %4560 = vrot.lane.b32.xlu0 %v4520, 64
      %v4561 = vpop.permute.xlu0 %4560
      %4562 = vrot.lane.b32.xlu0 %v4524, 64
      %v4563 = vpop.permute.xlu0 %4562
      %4564 = vrot.lane.b32.xlu0 %v4527, 64
      %v4565 = vpop.permute.xlu0 %4564
      %4566 = vrot.lane.b32.xlu0 %v4531, 64
      %v4567 = vpop.permute.xlu0 %4566
      %4568 = vrot.lane.b32.xlu0 %v4534, 64
      %v4569 = vpop.permute.xlu0 %4568
      %4570 = vrot.lane.b32.xlu0 %v4538, 64
      %v4571 = vpop.permute.xlu0 %4570
      %4572 = vrot.lane.b32.xlu0 %v4541, 64
      %v4573 = vpop.permute.xlu0 %4572
      %4590 = vst.msk [vmem:[#allocation2] sm:$0xf] %vm2271, %v4543
      %4591 = vst.msk [vmem:[#allocation2 + $0x4] sm:$0xf] %vm2271, %v4545
      %4592 = vst.msk [vmem:[#allocation2 + $0x8] sm:$0xf] %vm2271, %v4547
      %4593 = vst.msk [vmem:[#allocation2 + $0xc] sm:$0xf] %vm2271, %v4549
      %4594 = vst.msk [vmem:[#allocation2 + $0x10] sm:$0xf] %vm2271, %v4551
      %4595 = vst.msk [vmem:[#allocation2 + $0x14] sm:$0xf] %vm2271, %v4553
      %4596 = vst.msk [vmem:[#allocation2 + $0x18] sm:$0xf] %vm2271, %v4555
      %4597 = vst.msk [vmem:[#allocation2 + $0x1c] sm:$0xf] %vm2271, %v4557
      %4598 = vst.msk [vmem:[#allocation2 + $0x20] sm:$0xf] %vm2271, %v4559
      %4599 = vst.msk [vmem:[#allocation2 + $0x24] sm:$0xf] %vm2271, %v4561
      %4600 = vst.msk [vmem:[#allocation2 + $0x28] sm:$0xf] %vm2271, %v4563
      %4601 = vst.msk [vmem:[#allocation2 + $0x2c] sm:$0xf] %vm2271, %v4565
      %4602 = vst.msk [vmem:[#allocation2 + $0x30] sm:$0xf] %vm2271, %v4567
      %4603 = vst.msk [vmem:[#allocation2 + $0x34] sm:$0xf] %vm2271, %v4569
      %4604 = vst.msk [vmem:[#allocation2 + $0x38] sm:$0xf] %vm2271, %v4571
      %4605 = vst.msk [vmem:[#allocation2 + $0x3c] sm:$0xf] %vm2271, %v4573
      %v4606 = vld [vmem:[#allocation2] sm:$0xf]
      %v4607 = vld [vmem:[#allocation2 + $0x4] sm:$0xf]
      %v4608 = vld [vmem:[#allocation2 + $0x8] sm:$0xf]
      %v4609 = vld [vmem:[#allocation2 + $0xc] sm:$0xf]
      %v4610 = vld [vmem:[#allocation2 + $0x10] sm:$0xf]
      %v4611 = vld [vmem:[#allocation2 + $0x14] sm:$0xf]
      %v4612 = vld [vmem:[#allocation2 + $0x18] sm:$0xf]
      %v4613 = vld [vmem:[#allocation2 + $0x1c] sm:$0xf]
      %v4614 = vld [vmem:[#allocation2 + $0x20] sm:$0xf]
      %v4615 = vld [vmem:[#allocation2 + $0x24] sm:$0xf]
      %v4616 = vld [vmem:[#allocation2 + $0x28] sm:$0xf]
      %v4617 = vld [vmem:[#allocation2 + $0x2c] sm:$0xf]
      %v4618 = vld [vmem:[#allocation2 + $0x30] sm:$0xf]
      %v4619 = vld [vmem:[#allocation2 + $0x34] sm:$0xf]
      %v4620 = vld [vmem:[#allocation2 + $0x38] sm:$0xf]
      %v4621 = vld [vmem:[#allocation2 + $0x3c] sm:$0xf]
      %v4622 = vld [vmem:[%s4] sm:$0xf]
      %v4623 = vld [vmem:[%s4 + $0x4] sm:$0xf]
      %v4624 = vld [vmem:[%s4 + $0x8] sm:$0xf]
      %v4625 = vld [vmem:[%s4 + $0xc] sm:$0xf]
      %v4626 = vld [vmem:[%s4 + $0x10] sm:$0xf]
      %v4627 = vld [vmem:[%s4 + $0x14] sm:$0xf]
      %v4628 = vld [vmem:[%s4 + $0x18] sm:$0xf]
      %v4629 = vld [vmem:[%s4 + $0x1c] sm:$0xf]
      %v4630 = vld [vmem:[%s4 + $0x20] sm:$0xf]
      %v4647 = vunpack.c.l.b16 %v4606
      %v4648 = vunpack.c.l.b16 %v4607
      %v4649 = vunpack.c.l.b16 %v4608
      %v4650 = vunpack.c.l.b16 %v4609
      %v4651 = vunpack.c.l.b16 %v4610
      %v4652 = vunpack.c.l.b16 %v4611
      %v4653 = vunpack.c.l.b16 %v4612
      %v4654 = vunpack.c.l.b16 %v4613
      %v4655 = vunpack.c.l.b16 %v4614
      %v4656 = vunpack.c.l.b16 %v4615
      %v4657 = vunpack.c.l.b16 %v4616
      %v4658 = vunpack.c.l.b16 %v4617
      %v4659 = vunpack.c.l.b16 %v4618
      %v4660 = vunpack.c.l.b16 %v4619
      %v4661 = vunpack.c.l.b16 %v4620
      %v4662 = vunpack.c.l.b16 %v4621
      %v4663 = vpack.c.b16 %v4648, %v4647
      %v4664 = vpack.c.b16 %v4650, %v4649
      %v4665 = vpack.c.b16 %v4652, %v4651
      %v4666 = vpack.c.b16 %v4654, %v4653
      %v4667 = vpack.c.b16 %v4656, %v4655
      %v4668 = vpack.c.b16 %v4658, %v4657
      %v4669 = vpack.c.b16 %v4660, %v4659
      %v4670 = vpack.c.b16 %v4662, %v4661
      %v4680 = vunpack.c.l.b16 %v4622
      %v4681 = vunpack.c.l.b16 %v4623
      %v4682 = vunpack.c.l.b16 %v4624
      %v4683 = vunpack.c.l.b16 %v4625
      %v4684 = vunpack.c.l.b16 %v4626
      %v4685 = vunpack.c.l.b16 %v4627
      %v4686 = vunpack.c.l.b16 %v4628
      %v4687 = vunpack.c.l.b16 %v4629
      %v4688 = vunpack.c.l.b16 %v4630
      %v4689 = vpack.c.b16 %v4681, %v4680
      %v4690 = vpack.c.b16 %v4683, %v4682
      %v4691 = vpack.c.b16 %v4685, %v4684
      %v4692 = vpack.c.b16 %v4687, %v4686
      %v4693 = vpack.c.b16 %v4688, %v4688
      %v4699 = vsel %vm2398, %v4663, 0
      %v4702 = vsel %vm2398, %v4664, 0
      %v4705 = vsel %vm2398, %v4665, 0
      %v4708 = vsel %vm2398, %v4666, 0
      %v4711 = vsel %vm2398, %v4667, 0
      %v4714 = vsel %vm2398, %v4668, 0
      %v4717 = vsel %vm2398, %v4669, 0
      %v4720 = vsel %vm2398, %v4670, 0
      %v4723 = vsel %vm2429, %v4693, 0
      %4725 = vmatprep.subr.bf16.mxu0 0
      %4726 = vmatpush1.bf16.msra.mxu0 0
      %4727 = vmatprep.subr.bf16.mxu0 0
      %4728 = vmatpush1.bf16.msra.mxu0 0
      %4729 = vmatprep.subr.bf16.mxu0 0
      %4730 = vmatpush1.bf16.msra.mxu0 0
      %4731 = vmatprep.subr.bf16.mxu0 0
      %4732 = vmatpush1.bf16.msra.mxu0 %v4723
      %4733 = vmatprep.subr.bf16.mxu0 0
      %4734 = vmatpush1.bf16.msra.mxu0 %v4692
      %4735 = vmatprep.subr.bf16.mxu0 0
      %4736 = vmatpush1.bf16.msra.mxu0 %v4691
      %4737 = vmatprep.subr.bf16.mxu0 0
      %4738 = vmatpush1.bf16.msra.mxu0 %v4690
      %4739 = vmatprep.subr.bf16.mxu0 0
      %4740 = vmatpush1.bf16.msra.mxu0 %v4689
      %4741 = vmatprep.subr.bf16.mxu0 0
      %4742 = vmatpush2.bf16.msra.mxu0 0
      %4743 = vmatprep.subr.bf16.mxu0 0
      %4744 = vmatpush2.bf16.msra.mxu0 0
      %4745 = vmatprep.subr.bf16.mxu0 0
      %4746 = vmatpush2.bf16.msra.mxu0 0
      %4747 = vmatprep.subr.bf16.mxu0 0
      %4748 = vmatpush2.bf16.msra.mxu0 0
      %4749 = vmatprep.subr.bf16.mxu0 0
      %4750 = vmatpush2.bf16.msra.mxu0 0
      %4751 = vmatprep.subr.bf16.mxu0 0
      %4752 = vmatpush2.bf16.msra.mxu0 0
      %4753 = vmatprep.subr.bf16.mxu0 0
      %4754 = vmatpush2.bf16.msra.mxu0 0
      %4755 = vmatprep.subr.bf16.mxu0 0
      %4756 = vmatpush2.bf16.msra.mxu0 0
      %4757 = vmatprep.mubr.bf16.mxu0 0
      %4758 = vmatmul.mubr.bf16.gmra.mxu0 %v4699
      %v4759 = vpop.f32.mrf.mxu0
      %v4760 = vadd.f32 0.0, %v4759
      %v4761 = vpop.f32.mrf.mxu0
      %v4762 = vpop.f32.mrf.mxu0
      %v4763 = vadd.f32 0.0, %v4762
      %v4764 = vpop.f32.mrf.mxu0
      %4765 = vmatprep.mubr.bf16.mxu0 0
      %4766 = vmatmul.mubr.bf16.gmra.mxu0 %v4702
      %v4767 = vpop.f32.mrf.mxu0
      %v4768 = vadd.f32 0.0, %v4767
      %v4769 = vpop.f32.mrf.mxu0
      %v4770 = vpop.f32.mrf.mxu0
      %v4771 = vadd.f32 0.0, %v4770
      %v4772 = vpop.f32.mrf.mxu0
      %4773 = vmatprep.mubr.bf16.mxu0 0
      %4774 = vmatmul.mubr.bf16.gmra.mxu0 %v4705
      %v4775 = vpop.f32.mrf.mxu0
      %v4776 = vadd.f32 0.0, %v4775
      %v4777 = vpop.f32.mrf.mxu0
      %v4778 = vpop.f32.mrf.mxu0
      %v4779 = vadd.f32 0.0, %v4778
      %v4780 = vpop.f32.mrf.mxu0
      %4781 = vmatprep.mubr.bf16.mxu0 0
      %4782 = vmatmul.mubr.bf16.gmra.mxu0 %v4708
      %v4783 = vpop.f32.mrf.mxu0
      %v4784 = vadd.f32 0.0, %v4783
      %v4785 = vpop.f32.mrf.mxu0
      %v4786 = vpop.f32.mrf.mxu0
      %v4787 = vadd.f32 0.0, %v4786
      %v4788 = vpop.f32.mrf.mxu0
      %4789 = vmatprep.mubr.bf16.mxu0 0
      %4790 = vmatmul.mubr.bf16.gmra.mxu0 %v4711
      %v4791 = vpop.f32.mrf.mxu0
      %v4792 = vadd.f32 0.0, %v4791
      %v4793 = vpop.f32.mrf.mxu0
      %v4794 = vpop.f32.mrf.mxu0
      %v4795 = vadd.f32 0.0, %v4794
      %v4796 = vpop.f32.mrf.mxu0
      %4797 = vmatprep.mubr.bf16.mxu0 0
      %4798 = vmatmul.mubr.bf16.gmra.mxu0 %v4714
      %v4799 = vpop.f32.mrf.mxu0
      %v4800 = vadd.f32 0.0, %v4799
      %v4801 = vpop.f32.mrf.mxu0
      %v4802 = vpop.f32.mrf.mxu0
      %v4803 = vadd.f32 0.0, %v4802
      %v4804 = vpop.f32.mrf.mxu0
      %4805 = vmatprep.mubr.bf16.mxu0 0
      %4806 = vmatmul.mubr.bf16.gmra.mxu0 %v4717
      %v4807 = vpop.f32.mrf.mxu0
      %v4808 = vadd.f32 0.0, %v4807
      %v4809 = vpop.f32.mrf.mxu0
      %v4810 = vpop.f32.mrf.mxu0
      %v4811 = vadd.f32 0.0, %v4810
      %v4812 = vpop.f32.mrf.mxu0
      %4813 = vmatprep.mubr.bf16.mxu0 0
      %4814 = vmatmul.mubr.bf16.gmra.mxu0 %v4720
      %v4815 = vpop.f32.mrf.mxu0
      %v4816 = vadd.f32 0.0, %v4815
      %v4817 = vpop.f32.mrf.mxu0
      %v4818 = vpop.f32.mrf.mxu0
      %v4819 = vadd.f32 0.0, %v4818
      %v4820 = vpop.f32.mrf.mxu0
      %4821 = vdwg.mxu0
      %v4822 = vld [vmem:[%s1608] sm:$0xf]
      %v4823 = vld [vmem:[%s1608 + $0x4] sm:$0xf]
      %v4824 = vld [vmem:[%s1608 + $0x8] sm:$0x1]
      %v4825 = vld [vmem:[%s1608 + $0xc] sm:$0xf]
      %v4826 = vld [vmem:[%s1608 + $0x10] sm:$0xf]
      %v4827 = vld [vmem:[%s1608 + $0x14] sm:$0x1]
      %v4828 = vld [vmem:[%s1608 + $0x18] sm:$0xf]
      %v4829 = vld [vmem:[%s1608 + $0x1c] sm:$0xf]
      %v4830 = vld [vmem:[%s1608 + $0x20] sm:$0x1]
      %v4831 = vld [vmem:[%s1608 + $0x24] sm:$0xf]
      %v4832 = vld [vmem:[%s1608 + $0x28] sm:$0xf]
      %v4833 = vld [vmem:[%s1608 + $0x2c] sm:$0x1]
      %v4834 = vld [vmem:[%s1608 + $0x30] sm:$0xf]
      %v4835 = vld [vmem:[%s1608 + $0x34] sm:$0xf]
      %v4836 = vld [vmem:[%s1608 + $0x38] sm:$0x1]
      %v4837 = vld [vmem:[%s1608 + $0x3c] sm:$0xf]
      %v4838 = vld [vmem:[%s1608 + $0x40] sm:$0xf]
      %v4839 = vld [vmem:[%s1608 + $0x44] sm:$0x1]
      %v4840 = vld [vmem:[%s1608 + $0x48] sm:$0xf]
      %v4841 = vld [vmem:[%s1608 + $0x4c] sm:$0xf]
      %v4842 = vld [vmem:[%s1608 + $0x50] sm:$0x1]
      %v4843 = vld [vmem:[%s1608 + $0x54] sm:$0xf]
      %v4844 = vld [vmem:[%s1608 + $0x58] sm:$0xf]
      %v4845 = vld [vmem:[%s1608 + $0x5c] sm:$0x1]
      %v4846 = vunpack.c.l.bf16 %v4822
      %v4847 = vunpack.c.l.bf16 %v4823
      %v4848 = vunpack.c.l.bf16 %v4824
      %v4849 = vunpack.c.l.bf16 %v4825
      %v4850 = vunpack.c.l.bf16 %v4826
      %v4851 = vunpack.c.l.bf16 %v4827
      %v4852 = vunpack.c.l.bf16 %v4828
      %v4853 = vunpack.c.l.bf16 %v4829
      %v4854 = vunpack.c.l.bf16 %v4830
      %v4855 = vunpack.c.l.bf16 %v4831
      %v4856 = vunpack.c.l.bf16 %v4832
      %v4857 = vunpack.c.l.bf16 %v4833
      %v4858 = vunpack.c.l.bf16 %v4834
      %v4859 = vunpack.c.l.bf16 %v4835
      %v4860 = vunpack.c.l.bf16 %v4836
      %v4861 = vunpack.c.l.bf16 %v4837
      %v4862 = vunpack.c.l.bf16 %v4838
      %v4863 = vunpack.c.l.bf16 %v4839
      %v4864 = vunpack.c.l.bf16 %v4840
      %v4865 = vunpack.c.l.bf16 %v4841
      %v4866 = vunpack.c.l.bf16 %v4842
      %v4867 = vunpack.c.l.bf16 %v4843
      %v4868 = vunpack.c.l.bf16 %v4844
      %v4869 = vunpack.c.l.bf16 %v4845
      %v4870 = vld [vmem:[%s5] sm:$0x1]
      %v4872 = vlaneseq
      %v4873 = vshrl.u32 %v4872, 7
      %v4874 = vsub.s32 0, %v4873
      %v4875 = vrot.slane %v4870, %v4874
      %v4877 = vmul.f32 %v4760, %v4875
      %v4878 = vmul.f32 %v4763, %v4875
      %v4879 = vmul.f32 %v4768, %v4875
      %v4880 = vmul.f32 %v4771, %v4875
      %v4881 = vmul.f32 %v4776, %v4875
      %v4882 = vmul.f32 %v4779, %v4875
      %v4883 = vmul.f32 %v4784, %v4875
      %v4884 = vmul.f32 %v4787, %v4875
      %v4885 = vmul.f32 %v4792, %v4875
      %v4886 = vmul.f32 %v4795, %v4875
      %v4887 = vmul.f32 %v4800, %v4875
      %v4888 = vmul.f32 %v4803, %v4875
      %v4889 = vmul.f32 %v4808, %v4875
      %v4890 = vmul.f32 %v4811, %v4875
      %v4891 = vmul.f32 %v4816, %v4875
      %v4892 = vmul.f32 %v4819, %v4875
      %v4893 = vld [vmem:[%s6] sm:$0x1]
      %v4895 = vlaneseq
      %v4896 = vshrl.u32 %v4895, 7
      %v4897 = vsub.s32 0, %v4896
      %v4898 = vrot.slane %v4893, %v4897
      %v4900 = vadd.f32 %v4877, %v4898
      %v4901 = vadd.f32 %v4878, %v4898
      %v4902 = vadd.f32 %v4879, %v4898
      %v4903 = vadd.f32 %v4880, %v4898
      %v4904 = vadd.f32 %v4881, %v4898
      %v4905 = vadd.f32 %v4882, %v4898
      %v4906 = vadd.f32 %v4883, %v4898
      %v4907 = vadd.f32 %v4884, %v4898
      %v4908 = vadd.f32 %v4885, %v4898
      %v4909 = vadd.f32 %v4886, %v4898
      %v4910 = vadd.f32 %v4887, %v4898
      %v4911 = vadd.f32 %v4888, %v4898
      %v4912 = vadd.f32 %v4889, %v4898
      %v4913 = vadd.f32 %v4890, %v4898
      %v4914 = vadd.f32 %v4891, %v4898
      %v4915 = vadd.f32 %v4892, %v4898
      %vm4940 = vcmask 1046528
      %v4941 = vrot.slane %v4846, 1
      %v4942 = vrot.slane %v4847, 1
      %v4943 = vsel %vm4940, %v4941, %v4942
      %v4944 = vrot.slane %v4848, 1
      %v4945 = vsel %vm4940, %v4942, %v4944
      %v4946 = vrot.slane %v4849, 1
      %v4947 = vrot.slane %v4850, 1
      %v4948 = vsel %vm4940, %v4946, %v4947
      %v4949 = vrot.slane %v4851, 1
      %v4950 = vsel %vm4940, %v4947, %v4949
      %v4951 = vrot.slane %v4852, 1
      %v4952 = vrot.slane %v4853, 1
      %v4953 = vsel %vm4940, %v4951, %v4952
      %v4954 = vrot.slane %v4854, 1
      %v4955 = vsel %vm4940, %v4952, %v4954
      %v4956 = vrot.slane %v4855, 1
      %v4957 = vrot.slane %v4856, 1
      %v4958 = vsel %vm4940, %v4956, %v4957
      %v4959 = vrot.slane %v4857, 1
      %v4960 = vsel %vm4940, %v4957, %v4959
      %v4961 = vrot.slane %v4858, 1
      %v4962 = vrot.slane %v4859, 1
      %v4963 = vsel %vm4940, %v4961, %v4962
      %v4964 = vrot.slane %v4860, 1
      %v4965 = vsel %vm4940, %v4962, %v4964
      %v4966 = vrot.slane %v4861, 1
      %v4967 = vrot.slane %v4862, 1
      %v4968 = vsel %vm4940, %v4966, %v4967
      %v4969 = vrot.slane %v4863, 1
      %v4970 = vsel %vm4940, %v4967, %v4969
      %v4971 = vrot.slane %v4864, 1
      %v4972 = vrot.slane %v4865, 1
      %v4973 = vsel %vm4940, %v4971, %v4972
      %v4974 = vrot.slane %v4866, 1
      %v4975 = vsel %vm4940, %v4972, %v4974
      %v4976 = vrot.slane %v4867, 1
      %v4977 = vrot.slane %v4868, 1
      %v4978 = vsel %vm4940, %v4976, %v4977
      %v4979 = vrot.slane %v4869, 1
      %v4980 = vsel %vm4940, %v4977, %v4979
      %v4997 = vadd.f32 %v4900, %v4943
      %v4998 = vadd.f32 %v4901, %v4945
      %v4999 = vadd.f32 %v4902, %v4948
      %v5000 = vadd.f32 %v4903, %v4950
      %v5001 = vadd.f32 %v4904, %v4953
      %v5002 = vadd.f32 %v4905, %v4955
      %v5003 = vadd.f32 %v4906, %v4958
      %v5004 = vadd.f32 %v4907, %v4960
      %v5005 = vadd.f32 %v4908, %v4963
      %v5006 = vadd.f32 %v4909, %v4965
      %v5007 = vadd.f32 %v4910, %v4968
      %v5008 = vadd.f32 %v4911, %v4970
      %v5009 = vadd.f32 %v4912, %v4973
      %v5010 = vadd.f32 %v4913, %v4975
      %v5011 = vadd.f32 %v4914, %v4978
      %v5012 = vadd.f32 %v4915, %v4980
      %v5013 = vmax.f32 %v4997, 0.0
      %v5014 = vmax.f32 %v4998, 0.0
      %v5015 = vmax.f32 %v4999, 0.0
      %v5016 = vmax.f32 %v5000, 0.0
      %v5017 = vmax.f32 %v5001, 0.0
      %v5018 = vmax.f32 %v5002, 0.0
      %v5019 = vmax.f32 %v5003, 0.0
      %v5020 = vmax.f32 %v5004, 0.0
      %v5021 = vmax.f32 %v5005, 0.0
      %v5022 = vmax.f32 %v5006, 0.0
      %v5023 = vmax.f32 %v5007, 0.0
      %v5024 = vmax.f32 %v5008, 0.0
      %v5025 = vmax.f32 %v5009, 0.0
      %v5026 = vmax.f32 %v5010, 0.0
      %v5027 = vmax.f32 %v5011, 0.0
      %v5028 = vmax.f32 %v5012, 0.0
      %vm5029 = vcmask 64512
      %5030 = vst.msk [vmem:[%s302] sm:$0xff] %vm5029, %v5013
      %5031 = vst.msk [vmem:[%s302 + $0x8] sm:$0xff] %vm5029, %v5014
      %5032 = vst.msk [vmem:[%s302 + $0x10] sm:$0xff] %vm5029, %v5015
      %5033 = vst.msk [vmem:[%s302 + $0x18] sm:$0xff] %vm5029, %v5016
      %5034 = vst.msk [vmem:[%s302 + $0x20] sm:$0xff] %vm5029, %v5017
      %5035 = vst.msk [vmem:[%s302 + $0x28] sm:$0xff] %vm5029, %v5018
      %5036 = vst.msk [vmem:[%s302 + $0x30] sm:$0xff] %vm5029, %v5019
      %5037 = vst.msk [vmem:[%s302 + $0x38] sm:$0xff] %vm5029, %v5020
      %5038 = vst.msk [vmem:[%s302 + $0x40] sm:$0xff] %vm5029, %v5021
      %5039 = vst.msk [vmem:[%s302 + $0x48] sm:$0xff] %vm5029, %v5022
      %5040 = vst.msk [vmem:[%s302 + $0x50] sm:$0xff] %vm5029, %v5023
      %5041 = vst.msk [vmem:[%s302 + $0x58] sm:$0xff] %vm5029, %v5024
      %5042 = vst.msk [vmem:[%s302 + $0x60] sm:$0xff] %vm5029, %v5025
      %5043 = vst.msk [vmem:[%s302 + $0x68] sm:$0xff] %vm5029, %v5026
      %5044 = vst.msk [vmem:[%s302 + $0x70] sm:$0xff] %vm5029, %v5027
      %5045 = vst.msk [vmem:[%s302 + $0x78] sm:$0xff] %vm5029, %v5028
      %s5046 = smul.u32 8, %s23
      %p5047 = scmp.lt.s32.totalorder %s22, 1
      %s5048 = scalar_select %p5047, %s22, 1
      %p5049 = scmp.lt.s32.totalorder %s5046, 15
      %s5050 = scalar_select %p5049, %s5046, 15
      %s5051 = smul.addr %s5050, 2
      %s5052 = smul.addr %s5048, 32
      %s5053 = sadd.s32 %s5051, %s5052
      %s5054 = smul.addr %s5053, 8
      %s5055 = scalar_lea.vmem %s7, %s5054
      // Predicated region
      $region57: #{basic_block.1} parent=47 // pred_check
        %p5056 = pneg %p202
      $region58: #{basic_block.1} parent=47 // pred_check_branch
        %5058 = sbr.rel (%p5056) target = $region60
      $region59: #{basic_block.1} parent=47 // pred_region
        %s5059 = smul.u32 8, %s23
      $region60: #{basic_block.1} parent=47 // pred_fallthru
        _
    $region48: #{basic_block.1} parent=5 // pred_fallthru
      _
    %p5060 = scmp.le.s32.totalorder 2, %s13
    // Predicated region
    $region61: #{basic_block.1} parent=5 // pred_check
      %p5061 = pneg %p5060
    $region62: #{basic_block.1} parent=5 // pred_check_branch
      %5063 = sbr.rel (%p5061) target = $region64
    $region63: #{basic_block.1} parent=5 // pred_region
      %s5064 = ssub.s32 %s13, 2
      // Predicated region
      $region65: #{basic_block.1} parent=63 // pred_check
        %p5065 = pneg %p208
      $region66: #{basic_block.1} parent=63 // pred_check_branch
        %5067 = sbr.rel (%p5065) target = $region68
      $region67: #{basic_block.1} parent=63 // pred_region
        %s5068 = smul.u32 8, %s25
        %p5069 = scmp.lt.s32.totalorder %s24, 1
        %s5070 = scalar_select %p5069, %s24, 1
        %p5071 = scmp.lt.s32.totalorder %s5068, 15
        %s5072 = scalar_select %p5071, %s5068, 15
        %s5073 = smul.addr %s5072, 2
        %s5074 = smul.addr %s5070, 32
        %s5075 = sadd.s32 %s5073, %s5074
        %s5076 = smul.addr %s5075, 8
        %s5077 = scalar_lea.vmem %s7, %s5076
      $region68: #{basic_block.1} parent=63 // pred_fallthru
        _
    $region64: #{basic_block.1} parent=5 // pred_fallthru
      _
  $region6: #{basic_block.1} parent=0 // loop_footer
    %s17 = sadd.s32 1, %s13
  $region7: #{basic_block.1} parent=0 // loop_footer_branch
    %12 = sbr.rel target = $region3
  $region8: #{basic_block.1} parent=0 // loop_exit
    _

</llo_original>
